<compile_context>
chip_gen: v7x
topology: tpu7x:2x2x1
jax: 0.10.0
libtpu: 0.0.40
codegen_flags: <defaults>
</compile_context>

<pallas_src>
import functools

import jax
import jax.numpy as jnp
from jax import lax
from jax.experimental import pallas as pl
from jax.experimental.pallas import tpu as pltpu

LANE = 128
SUBLANE = 8


def _round_up(v, m):
    return ((v + m - 1) // m) * m


def _sepconv_kernel(x_ref, w_ref, o_ref, *, K, TH, Wo, cin, tco):
    """Fused depthwise(KxK) + pointwise(1x1) conv on one halo'd row tile.

    x_ref: (1, TH + K - 1, W, Cin)   input rows incl. K-1 halo rows
    w_ref: (K*K, Cin, TCO)           fused per-tap weights  dw[c,kh,kw] * pw[o,c]
    o_ref: (1, TH, Wo, TCO)
    """
    x = x_ref[0]                                            # (TH+K-1, W, Cin)
    acc = jnp.zeros((TH * Wo, tco), dtype=jnp.float32)
    # One MXU matmul per tap, accumulated in f32.  Taps are unrolled statically so the
    # LLO scheduler can interleave window slicing (VPU/XLU) with the matmuls (MXU).
    for kh in range(K):
        rows = x[kh:kh + TH]                                # (TH, W, Cin), hoisted per kh
        for kw in range(K):
            lhs = rows[:, kw:kw + Wo, :].reshape(TH * Wo, cin)
            acc = acc + jnp.dot(lhs, w_ref[kh * K + kw],
                                preferred_element_type=jnp.float32)
    o_ref[0] = acc.reshape(TH, Wo, tco).astype(o_ref.dtype)


def _tile_vmem_bytes(th, K, W, Wo, cin, tco, isize):
    """Rough per-grid-step VMEM footprint (double-buffered blocks + temporaries)."""
    x_blk = 2 * (th + K - 1) * _round_up(W, SUBLANE) * _round_up(cin, LANE) * isize
    w_blk = 2 * K * K * _round_up(cin, SUBLANE) * _round_up(tco, LANE) * isize
    o_blk = 2 * th * _round_up(Wo, SUBLANE) * _round_up(tco, LANE) * isize
    acc = th * _round_up(Wo, SUBLANE) * _round_up(tco, LANE) * 4
    tmp = 2 * th * _round_up(Wo, SUBLANE) * _round_up(cin, LANE) * 4
    return x_blk + w_blk + o_blk + acc + tmp


def _pick_row_tile(Ho, K, W, Wo, cin, tco, isize, budget_bytes):
    for th in range(Ho, 0, -1):
        if Ho % th == 0 and _tile_vmem_bytes(th, K, W, Wo, cin, tco, isize) <= budget_bytes:
            return th
    # TODO(synk): add W tiling for images where even a single output row exceeds VMEM.
    return 1


def separable_conv2d_nhwc(x_nhwc, dw_weight, pw_weight, *, kernel_size=3, row_tile=None):
    """NHWC separable conv (stride=1, padding=0, no bias). Returns (N, Ho, Wo, Cout)."""
    N, H, W, Cin = x_nhwc.shape
    K = kernel_size
    Cout = pw_weight.shape[0]
    Ho, Wo = H - K + 1, W - K + 1
    # TODO(synk): stride > 1 / padding > 0 constructor options are not implemented
    # (the module's forward under test uses the defaults stride=1, padding=0).

    # Fused per-tap weights: W_tap[kh, kw][c, o] = dw[c, 0, kh, kw] * pw[o, c, 0, 0].
    dw = jnp.transpose(dw_weight[:, 0, :, :], (1, 2, 0)).astype(jnp.float32)   # (K, K, Cin)
    pw = jnp.transpose(pw_weight[:, :, 0, 0], (1, 0)).astype(jnp.float32)      # (Cin, Cout)
    w_taps = (dw[:, :, :, None] * pw[None, None, :, :]).reshape(K * K, Cin, Cout)

    # Lane-dense output: pad Cout to a multiple of 128 (unmasked stores, full MXU N dim).
    cout_pad = _round_up(Cout, LANE)
    tco = LANE
    if cout_pad != Cout:
        w_taps = jnp.pad(w_taps, ((0, 0), (0, 0), (0, cout_pad - Cout)))
    # bf16 activations -> bf16 MXU operands (f32 accumulation via preferred_element_type);
    # f32 activations stay f32.
    w_taps = w_taps.astype(x_nhwc.dtype)

    isize = jnp.dtype(x_nhwc.dtype).itemsize
    if row_tile is None:
        row_tile = _pick_row_tile(Ho, K, W, Wo, Cin, tco, isize,
                                  budget_bytes=16 * 1024 * 1024)
    if Ho % row_tile != 0:
        raise ValueError(f"row_tile={row_tile} must divide Ho={Ho}")
    num_co = cout_pad // tco

    def _run(th, use_halo):
        num_h = Ho // th
        if use_halo:
            # K-1 row halo via element-offset indexing on H (3rd-from-last dim, so the
            # (8,128) tiling constraint does not apply to it).
            x_spec = pl.BlockSpec((1, pl.Element(th + K - 1), W, Cin),
                                  lambda n, h, co: (n, h * th, 0, 0))
        else:
            # th == Ho: whole height in one block, plain blocked indexing.
            x_spec = pl.BlockSpec((1, H, W, Cin), lambda n, h, co: (n, 0, 0, 0))
        kernel = functools.partial(_sepconv_kernel, K=K, TH=th, Wo=Wo, cin=Cin, tco=tco)
        vmem_need = _tile_vmem_bytes(th, K, W, Wo, Cin, tco, isize)
        vmem_limit = int(min(48 * 1024 * 1024, max(16 * 1024 * 1024, 2 * vmem_need)))
        return pl.pallas_call(
            kernel,
            out_shape=jax.ShapeDtypeStruct((N, Ho, Wo, cout_pad), x_nhwc.dtype),
            grid_spec=pltpu.PrefetchScalarGridSpec(
                num_scalar_prefetch=0,
                # co innermost: the (bigger) x block index is constant across co, so it
                # is not re-DMA'd while cycling output-channel tiles.
                grid=(N, num_h, num_co),
                in_specs=[
                    x_spec,
                    pl.BlockSpec((K * K, Cin, tco), lambda n, h, co: (0, 0, co)),
                ],
                out_specs=pl.BlockSpec((1, th, Wo, tco),
                                       lambda n, h, co: (n, h, 0, co)),
            ),
            compiler_params=pltpu.CompilerParams(
                dimension_semantics=("parallel", "parallel", "arbitrary"),
                vmem_limit_bytes=vmem_limit),
        )(x_nhwc, w_taps)

    if row_tile == Ho:
        out = _run(Ho, False)
    else:
        try:
            out = _run(row_tile, True)
        except Exception:
            # TODO(synk): element-offset (halo) indexing unavailable in this environment;
            # fall back to whole-height row blocks (same math, larger VMEM blocks).
            out = _run(Ho, False)

    if cout_pad != Cout:
        out = out[..., :Cout]
    return out


def separable_conv2d(x_nchw, dw_weight, pw_weight, *, kernel_size=3, row_tile=None):
    """PyTorch-layout entry point (NCHW in / NCHW out), matching SeparableConv2d.forward.

    For best performance keep the surrounding model NHWC end-to-end and call
    separable_conv2d_nhwc directly: each transpose below is an extra HBM round trip.
    """
    x_nhwc = jnp.transpose(x_nchw, (0, 2, 3, 1))
    out_nhwc = separable_conv2d_nhwc(x_nhwc, dw_weight, pw_weight,
                                     kernel_size=kernel_size, row_tile=row_tile)
    return jnp.transpose(out_nhwc, (0, 3, 1, 2))


def _reference(x_nchw, dw_weight, pw_weight):
    """Pure-JAX reference (matches torch semantics) for the correctness check."""
    cin = x_nchw.shape[1]
    y = lax.conv_general_dilated(
        x_nchw.astype(jnp.float32), dw_weight.astype(jnp.float32),
        window_strides=(1, 1), padding="VALID",
        feature_group_count=cin,
        dimension_numbers=("NCHW", "OIHW", "NCHW"))
    y = lax.conv_general_dilated(
        y, pw_weight.astype(jnp.float32),
        window_strides=(1, 1), padding="VALID",
        dimension_numbers=("NCHW", "OIHW", "NCHW"))
    return y.astype(x_nchw.dtype)


if __name__ == "__main__":
    key = jax.random.PRNGKey(0)
    kx, kdw, kpw = jax.random.split(key, 3)

    N, Cin, H, W = 2, 4, 16, 16
    Cout, K = 8, 3

    x = jax.random.normal(kx, (N, Cin, H, W), dtype=jnp.float32)
    # Deterministic parameters (shapes match the nn.Conv2d weights in __init__).
    dw_weight = jax.random.normal(kdw, (Cin, 1, K, K), dtype=jnp.float32) * 0.1
    pw_weight = jax.random.normal(kpw, (Cout, Cin, 1, 1), dtype=jnp.float32) * 0.1

    ref = jax.block_until_ready(_reference(x, dw_weight, pw_weight))

    # Path 1: row_tile=7 -> two halo'd row tiles over Ho=14 (exercises the tiled path).
    out_tiled = separable_conv2d(x, dw_weight, pw_weight, kernel_size=K, row_tile=7)
    out_tiled = jax.block_until_ready(out_tiled)
    assert out_tiled.shape == (N, Cout, H - K + 1, W - K + 1), out_tiled.shape
    assert jnp.allclose(out_tiled, ref, atol=1e-4, rtol=1e-4), \
        float(jnp.max(jnp.abs(out_tiled - ref)))

    # Path 2: auto tile selection (small image -> single whole-height block per batch).
    out_auto = separable_conv2d(x, dw_weight, pw_weight, kernel_size=K)
    out_auto = jax.block_until_ready(out_auto)
    assert jnp.allclose(out_auto, ref, atol=1e-4, rtol=1e-4), \
        float(jnp.max(jnp.abs(out_auto - ref)))

    print("KERNEL_OK")
</pallas_src>

<mosaic_0001>
module attributes {stable_mosaic.version = 11 : i64} {
  func.func @_sepconv_kernel(%arg0: i32, %arg1: i32, %arg2: i32, %arg3: memref<1x16x16x4xf32, #tpu.memory_space<vmem>>, %arg4: memref<9x4x128xf32, #tpu.memory_space<vmem>>, %arg5: memref<1x14x14x128xf32, #tpu.memory_space<vmem>>) attributes {dimension_semantics = [#tpu.dimension_semantics<parallel>, #tpu.dimension_semantics<parallel>, #tpu.dimension_semantics<arbitrary>], iteration_bounds = array<i64: 2, 1, 1>, scalar_prefetch = 0 : i64, scratch_operands = 0 : i64, tpu.core_type = #tpu.core_type<tc>, window_params = [{transform_indices = @transform_0, window_bounds = array<i64: 1, 16, 16, 4>}, {transform_indices = @transform_1, window_bounds = array<i64: 9, 4, 128>}, {transform_indices = @transform_2, window_bounds = array<i64: 1, 14, 14, 128>}]} {
    %c0 = arith.constant 0 : index
    %c0_0 = arith.constant 0 : index
    %c0_1 = arith.constant 0 : index
    %c0_2 = arith.constant 0 : index
    %0 = vector.load %arg3[%c0, %c0_0, %c0_1, %c0_2] : memref<1x16x16x4xf32, #tpu.memory_space<vmem>>, vector<1x16x16x4xf32>
    %1 = vector.shape_cast %0 : vector<1x16x16x4xf32> to vector<16x16x4xf32>
    %cst = arith.constant 0.000000e+00 : f32
    %2 = vector.broadcast %cst : f32 to vector<196x128xf32>
    %3 = vector.extract_strided_slice %1 {offsets = [0, 0, 0], sizes = [14, 16, 4], strides = [1, 1, 1]} : vector<16x16x4xf32> to vector<14x16x4xf32>
    %4 = vector.extract_strided_slice %3 {offsets = [0, 0, 0], sizes = [14, 14, 4], strides = [1, 1, 1]} : vector<14x16x4xf32> to vector<14x14x4xf32>
    %5 = vector.shape_cast %4 : vector<14x14x4xf32> to vector<196x4xf32>
    %c0_3 = arith.constant 0 : index
    %c0_4 = arith.constant 0 : index
    %c0_5 = arith.constant 0 : index
    %6 = vector.load %arg4[%c0_3, %c0_4, %c0_5] : memref<9x4x128xf32, #tpu.memory_space<vmem>>, vector<1x4x128xf32>
    %7 = vector.shape_cast %6 : vector<1x4x128xf32> to vector<4x128xf32>
    %cst_6 = arith.constant dense<0.000000e+00> : vector<196x128xf32>
    %8 = tpu.matmul %5, %7, %cst_6 {dimension_numbers = #tpu.dot_dimension_numbers<[1], [0], [0], [1], [0, 0, 1, 1], [], []>} : vector<196x4xf32>, vector<4x128xf32>, vector<196x128xf32> -> vector<196x128xf32>
    %9 = arith.addf %2, %8 : vector<196x128xf32>
    %10 = vector.extract_strided_slice %3 {offsets = [0, 1, 0], sizes = [14, 14, 4], strides = [1, 1, 1]} : vector<14x16x4xf32> to vector<14x14x4xf32>
    %11 = vector.shape_cast %10 : vector<14x14x4xf32> to vector<196x4xf32>
    %c1 = arith.constant 1 : index
    %c0_7 = arith.constant 0 : index
    %c0_8 = arith.constant 0 : index
    %12 = vector.load %arg4[%c1, %c0_7, %c0_8] : memref<9x4x128xf32, #tpu.memory_space<vmem>>, vector<1x4x128xf32>
    %13 = vector.shape_cast %12 : vector<1x4x128xf32> to vector<4x128xf32>
    %cst_9 = arith.constant dense<0.000000e+00> : vector<196x128xf32>
    %14 = tpu.matmul %11, %13, %cst_9 {dimension_numbers = #tpu.dot_dimension_numbers<[1], [0], [0], [1], [0, 0, 1, 1], [], []>} : vector<196x4xf32>, vector<4x128xf32>, vector<196x128xf32> -> vector<196x128xf32>
    %15 = arith.addf %9, %14 : vector<196x128xf32>
    %16 = vector.extract_strided_slice %3 {offsets = [0, 2, 0], sizes = [14, 14, 4], strides = [1, 1, 1]} : vector<14x16x4xf32> to vector<14x14x4xf32>
    %17 = vector.shape_cast %16 : vector<14x14x4xf32> to vector<196x4xf32>
    %c2 = arith.constant 2 : index
    %c0_10 = arith.constant 0 : index
    %c0_11 = arith.constant 0 : index
    %18 = vector.load %arg4[%c2, %c0_10, %c0_11] : memref<9x4x128xf32, #tpu.memory_space<vmem>>, vector<1x4x128xf32>
    %19 = vector.shape_cast %18 : vector<1x4x128xf32> to vector<4x128xf32>
    %cst_12 = arith.constant dense<0.000000e+00> : vector<196x128xf32>
    %20 = tpu.matmul %17, %19, %cst_12 {dimension_numbers = #tpu.dot_dimension_numbers<[1], [0], [0], [1], [0, 0, 1, 1], [], []>} : vector<196x4xf32>, vector<4x128xf32>, vector<196x128xf32> -> vector<196x128xf32>
    %21 = arith.addf %15, %20 : vector<196x128xf32>
    %22 = vector.extract_strided_slice %1 {offsets = [1, 0, 0], sizes = [14, 16, 4], strides = [1, 1, 1]} : vector<16x16x4xf32> to vector<14x16x4xf32>
    %23 = vector.extract_strided_slice %22 {offsets = [0, 0, 0], sizes = [14, 14, 4], strides = [1, 1, 1]} : vector<14x16x4xf32> to vector<14x14x4xf32>
    %24 = vector.shape_cast %23 : vector<14x14x4xf32> to vector<196x4xf32>
    %c3 = arith.constant 3 : index
    %c0_13 = arith.constant 0 : index
    %c0_14 = arith.constant 0 : index
    %25 = vector.load %arg4[%c3, %c0_13, %c0_14] : memref<9x4x128xf32, #tpu.memory_space<vmem>>, vector<1x4x128xf32>
    %26 = vector.shape_cast %25 : vector<1x4x128xf32> to vector<4x128xf32>
    %cst_15 = arith.constant dense<0.000000e+00> : vector<196x128xf32>
    %27 = tpu.matmul %24, %26, %cst_15 {dimension_numbers = #tpu.dot_dimension_numbers<[1], [0], [0], [1], [0, 0, 1, 1], [], []>} : vector<196x4xf32>, vector<4x128xf32>, vector<196x128xf32> -> vector<196x128xf32>
    %28 = arith.addf %21, %27 : vector<196x128xf32>
    %29 = vector.extract_strided_slice %22 {offsets = [0, 1, 0], sizes = [14, 14, 4], strides = [1, 1, 1]} : vector<14x16x4xf32> to vector<14x14x4xf32>
    %30 = vector.shape_cast %29 : vector<14x14x4xf32> to vector<196x4xf32>
    %c4 = arith.constant 4 : index
    %c0_16 = arith.constant 0 : index
    %c0_17 = arith.constant 0 : index
    %31 = vector.load %arg4[%c4, %c0_16, %c0_17] : memref<9x4x128xf32, #tpu.memory_space<vmem>>, vector<1x4x128xf32>
    %32 = vector.shape_cast %31 : vector<1x4x128xf32> to vector<4x128xf32>
    %cst_18 = arith.constant dense<0.000000e+00> : vector<196x128xf32>
    %33 = tpu.matmul %30, %32, %cst_18 {dimension_numbers = #tpu.dot_dimension_numbers<[1], [0], [0], [1], [0, 0, 1, 1], [], []>} : vector<196x4xf32>, vector<4x128xf32>, vector<196x128xf32> -> vector<196x128xf32>
    %34 = arith.addf %28, %33 : vector<196x128xf32>
    %35 = vector.extract_strided_slice %22 {offsets = [0, 2, 0], sizes = [14, 14, 4], strides = [1, 1, 1]} : vector<14x16x4xf32> to vector<14x14x4xf32>
    %36 = vector.shape_cast %35 : vector<14x14x4xf32> to vector<196x4xf32>
    %c5 = arith.constant 5 : index
    %c0_19 = arith.constant 0 : index
    %c0_20 = arith.constant 0 : index
    %37 = vector.load %arg4[%c5, %c0_19, %c0_20] : memref<9x4x128xf32, #tpu.memory_space<vmem>>, vector<1x4x128xf32>
    %38 = vector.shape_cast %37 : vector<1x4x128xf32> to vector<4x128xf32>
    %cst_21 = arith.constant dense<0.000000e+00> : vector<196x128xf32>
    %39 = tpu.matmul %36, %38, %cst_21 {dimension_numbers = #tpu.dot_dimension_numbers<[1], [0], [0], [1], [0, 0, 1, 1], [], []>} : vector<196x4xf32>, vector<4x128xf32>, vector<196x128xf32> -> vector<196x128xf32>
    %40 = arith.addf %34, %39 : vector<196x128xf32>
    %41 = vector.extract_strided_slice %1 {offsets = [2, 0, 0], sizes = [14, 16, 4], strides = [1, 1, 1]} : vector<16x16x4xf32> to vector<14x16x4xf32>
    %42 = vector.extract_strided_slice %41 {offsets = [0, 0, 0], sizes = [14, 14, 4], strides = [1, 1, 1]} : vector<14x16x4xf32> to vector<14x14x4xf32>
    %43 = vector.shape_cast %42 : vector<14x14x4xf32> to vector<196x4xf32>
    %c6 = arith.constant 6 : index
    %c0_22 = arith.constant 0 : index
    %c0_23 = arith.constant 0 : index
    %44 = vector.load %arg4[%c6, %c0_22, %c0_23] : memref<9x4x128xf32, #tpu.memory_space<vmem>>, vector<1x4x128xf32>
    %45 = vector.shape_cast %44 : vector<1x4x128xf32> to vector<4x128xf32>
    %cst_24 = arith.constant dense<0.000000e+00> : vector<196x128xf32>
    %46 = tpu.matmul %43, %45, %cst_24 {dimension_numbers = #tpu.dot_dimension_numbers<[1], [0], [0], [1], [0, 0, 1, 1], [], []>} : vector<196x4xf32>, vector<4x128xf32>, vector<196x128xf32> -> vector<196x128xf32>
    %47 = arith.addf %40, %46 : vector<196x128xf32>
    %48 = vector.extract_strided_slice %41 {offsets = [0, 1, 0], sizes = [14, 14, 4], strides = [1, 1, 1]} : vector<14x16x4xf32> to vector<14x14x4xf32>
    %49 = vector.shape_cast %48 : vector<14x14x4xf32> to vector<196x4xf32>
    %c7 = arith.constant 7 : index
    %c0_25 = arith.constant 0 : index
    %c0_26 = arith.constant 0 : index
    %50 = vector.load %arg4[%c7, %c0_25, %c0_26] : memref<9x4x128xf32, #tpu.memory_space<vmem>>, vector<1x4x128xf32>
    %51 = vector.shape_cast %50 : vector<1x4x128xf32> to vector<4x128xf32>
    %cst_27 = arith.constant dense<0.000000e+00> : vector<196x128xf32>
    %52 = tpu.matmul %49, %51, %cst_27 {dimension_numbers = #tpu.dot_dimension_numbers<[1], [0], [0], [1], [0, 0, 1, 1], [], []>} : vector<196x4xf32>, vector<4x128xf32>, vector<196x128xf32> -> vector<196x128xf32>
    %53 = arith.addf %47, %52 : vector<196x128xf32>
    %54 = vector.extract_strided_slice %41 {offsets = [0, 2, 0], sizes = [14, 14, 4], strides = [1, 1, 1]} : vector<14x16x4xf32> to vector<14x14x4xf32>
    %55 = vector.shape_cast %54 : vector<14x14x4xf32> to vector<196x4xf32>
    %c8 = arith.constant 8 : index
    %c0_28 = arith.constant 0 : index
    %c0_29 = arith.constant 0 : index
    %56 = vector.load %arg4[%c8, %c0_28, %c0_29] : memref<9x4x128xf32, #tpu.memory_space<vmem>>, vector<1x4x128xf32>
    %57 = vector.shape_cast %56 : vector<1x4x128xf32> to vector<4x128xf32>
    %cst_30 = arith.constant dense<0.000000e+00> : vector<196x128xf32>
    %58 = tpu.matmul %55, %57, %cst_30 {dimension_numbers = #tpu.dot_dimension_numbers<[1], [0], [0], [1], [0, 0, 1, 1], [], []>} : vector<196x4xf32>, vector<4x128xf32>, vector<196x128xf32> -> vector<196x128xf32>
    %59 = arith.addf %53, %58 : vector<196x128xf32>
    %60 = vector.shape_cast %59 : vector<196x128xf32> to vector<14x14x128xf32>
    %c0_31 = arith.constant 0 : index
    %c0_32 = arith.constant 0 : index
    %c0_33 = arith.constant 0 : index
    %c0_34 = arith.constant 0 : index
    %61 = vector.load %arg5[%c0_31, %c0_32, %c0_33, %c0_34] : memref<1x14x14x128xf32, #tpu.memory_space<vmem>>, vector<1x14x14x128xf32>
    %62 = vector.shape_cast %61 : vector<1x14x14x128xf32> to vector<14x14x128xf32>
    %63 = vector.shape_cast %60 : vector<14x14x128xf32> to vector<1x14x14x128xf32>
    tpu.vector_store %arg5[%c0_31, %c0_32, %c0_33, %c0_34], %63 {strides = array<i32>} : memref<1x14x14x128xf32, #tpu.memory_space<vmem>>, vector<1x14x14x128xf32>,
    return
  }
  func.func @transform_0(%arg0: i32, %arg1: i32, %arg2: i32) -> (i32, i32, i32, i32) {
    %c0_i32 = arith.constant 0 : i32
    %c0_i32_0 = arith.constant 0 : i32
    %c0_i32_1 = arith.constant 0 : i32
    %c0_i32_2 = arith.constant 0 : i32
    return %arg0, %c0_i32, %c0_i32_0, %c0_i32_1 : i32, i32, i32, i32
  }
  func.func @transform_1(%arg0: i32, %arg1: i32, %arg2: i32) -> (i32, i32, i32) {
    %c0_i32 = arith.constant 0 : i32
    %c0_i32_0 = arith.constant 0 : i32
    %c0_i32_1 = arith.constant 0 : i32
    return %c0_i32, %c0_i32_0, %arg2 : i32, i32, i32
  }
  func.func @transform_2(%arg0: i32, %arg1: i32, %arg2: i32) -> (i32, i32, i32, i32) {
    %c0_i32 = arith.constant 0 : i32
    %c0_i32_0 = arith.constant 0 : i32
    return %arg0, %arg1, %c0_i32, %arg2 : i32, i32, i32, i32
  }
}

</mosaic_0001>

<llo_original>
// kernel: tpu_custom_call.1
$region0: #{tpu_custom_call.1}
  #allocation0 [shape = 'u32[]', space=smem, size = 0x4, offset = 0x4, fixed_abs, tag = 'smem constant byte address 0x4 - core index']
  #allocation1 [shape = 'u32[144,128]{1,0:T(1,128)}', space=vmem, size = 0x12000, scoped, tag = 'internal scratch']
  %s0 = inlined_call_operand.vmem [shape: f32[2,16,16,4], index: 0, kind: input, shape index: {}]
  %s1 = inlined_call_operand.vmem [shape: f32[9,4,128], index: 1, kind: input, shape index: {}]
  %s2 = inlined_call_operand.vmem [shape: f32[2,14,14,128], index: 2, kind: output, shape index: {}]
  %s3 = sld [smem:[#allocation0]]
  $region41: #{tpu_custom_call.1} parent=0
    _
  %s5 = ssub.s32 1, %s3
  %s6 = scalar_select 0, %s5, %s3
  loop: start=0, step=1, limit=4
  $region2: #{tpu_custom_call.1} parent=0 // loop_pre_header
    _
  $region3: #{tpu_custom_call.1} parent=0 // loop_header
    %s8 = sphi 0, %s12
    %p9 = scmp.ge.s32.totalorder %s8, 4
    %s15 = sphi 0, %s34
    %s16 = sphi 0, %s30
    %s17 = sphi 0, %s26
    %s18 = sphi 0, %s15
    %s19 = sphi 0, %s16
    %s20 = sphi 0, %s17
    %s21 = sphi 0, %s18
    %s22 = sphi 0, %s19
    %s23 = sphi 0, %s20
    %s37 = sphi 0, %s39
    %s40 = sphi 0, %s37
    %s41 = sphi 0, %s40
    %s57 = sphi 0, %s41
    %s63 = sphi 0, %s65
    %s66 = sphi 0, %s63
    %s67 = sphi 0, %s66
    %s83 = sphi 0, %s67
    %s93 = sphi 0, %s95
    %s96 = sphi 0, %s93
    %s97 = sphi 0, %s96
    %s113 = sphi 0, %s97
  $region4: #{tpu_custom_call.1} parent=0 // loop_header_branch
    %11 = sbr.rel (%p9) target = $region8
  $region5: #{tpu_custom_call.1} parent=0 // loop_body
    %s13 = ssub.s32 %s8, 1
    %s14 = ssub.s32 %s8, 2
    %s24 = sadd.s32 1, %s17
    %p25 = scmp.ge.s32.totalorder %s24, 1
    %s26 = scalar_select %p25, 0, %s24
    %s27 = sadd.s32 1, %s16
    %s28 = scalar_select %p25, %s27, %s16
    %p29 = scmp.ge.s32.totalorder %s28, 1
    %s30 = scalar_select %p29, 0, %s28
    %s31 = sadd.s32 1, %s15
    %s32 = scalar_select %p29, %s31, %s15
    %p33 = scmp.ge.s32.totalorder %s32, 2
    %s34 = scalar_select %p33, 0, %s32
    %s35 = ssub.s32 %s15, %s34
    %p36 = scmp.eq.s32.totalorder %s35, 0
    %s38 = sadd.s32 %s37, 1
    %s39 = scalar_select %p36, %s37, %s38
    %p42 = pneg %p36
    %p43 = scmp.eq.s32.totalorder %s8, 1
    %p44 = por %p42, %p43
    %p45 = scmp.ne.s32.totalorder %s37, %s40
    %p46 = scmp.eq.s32.totalorder %s8, 0
    %p47 = por %p45, %p46
    %p48 = scmp.ne.s32.totalorder %s37, %s40
    %p49 = scmp.eq.s32.totalorder %s13, 1
    %p50 = por %p48, %p49
    %p51 = scmp.ne.s32.totalorder %s40, %s41
    %p52 = scmp.eq.s32.totalorder %s13, 0
    %p53 = por %p51, %p52
    %p54 = scmp.ne.s32.totalorder %s40, %s41
    %p55 = scmp.eq.s32.totalorder %s14, 1
    %p56 = por %p54, %p55
    %p58 = scmp.ne.s32.totalorder %s41, %s57
    %p59 = scmp.eq.s32.totalorder %s14, 0
    %p60 = por %p58, %p59
    %s61 = ssub.s32 %s17, %s26
    %p62 = scmp.eq.s32.totalorder %s61, 0
    %s64 = sadd.s32 %s63, 1
    %s65 = scalar_select %p62, %s63, %s64
    %p68 = pneg %p62
    %p69 = scmp.eq.s32.totalorder %s8, 1
    %p70 = por %p68, %p69
    %p71 = scmp.ne.s32.totalorder %s63, %s66
    %p72 = scmp.eq.s32.totalorder %s8, 0
    %p73 = por %p71, %p72
    %p74 = scmp.ne.s32.totalorder %s63, %s66
    %p75 = scmp.eq.s32.totalorder %s13, 1
    %p76 = por %p74, %p75
    %p77 = scmp.ne.s32.totalorder %s66, %s67
    %p78 = scmp.eq.s32.totalorder %s13, 0
    %p79 = por %p77, %p78
    %p80 = scmp.ne.s32.totalorder %s66, %s67
    %p81 = scmp.eq.s32.totalorder %s14, 1
    %p82 = por %p80, %p81
    %p84 = scmp.ne.s32.totalorder %s67, %s83
    %p85 = scmp.eq.s32.totalorder %s14, 0
    %p86 = por %p84, %p85
    %s87 = ssub.s32 %s15, %s34
    %s88 = ssub.s32 %s16, %s30
    %s89 = sor.u32 %s87, %s88
    %s90 = ssub.s32 %s17, %s26
    %s91 = sor.u32 %s89, %s90
    %p92 = scmp.eq.s32.totalorder %s91, 0
    %s94 = sadd.s32 %s93, 1
    %s95 = scalar_select %p92, %s93, %s94
    %p98 = pneg %p92
    %p99 = scmp.eq.s32.totalorder %s8, 1
    %p100 = por %p98, %p99
    %p101 = scmp.ne.s32.totalorder %s93, %s96
    %p102 = scmp.eq.s32.totalorder %s8, 0
    %p103 = por %p101, %p102
    %p104 = scmp.ne.s32.totalorder %s93, %s96
    %p105 = scmp.eq.s32.totalorder %s13, 1
    %p106 = por %p104, %p105
    %p107 = scmp.ne.s32.totalorder %s96, %s97
    %p108 = scmp.eq.s32.totalorder %s13, 0
    %p109 = por %p107, %p108
    %p110 = scmp.ne.s32.totalorder %s96, %s97
    %p111 = scmp.eq.s32.totalorder %s14, 1
    %p112 = por %p110, %p111
    %p114 = scmp.ne.s32.totalorder %s97, %s113
    %p115 = scmp.eq.s32.totalorder %s14, 0
    %p116 = por %p114, %p115
    %p117 = scmp.le.s32.totalorder 1, %s8
    %p118 = scmp.lt.s32.totalorder %s8, 3
    %p119 = pnand %p117, %p118
    %p120 = pneg %p119
    // Predicated region
    $region9: #{tpu_custom_call.1} parent=5 // pred_check
      _
    $region10: #{tpu_custom_call.1} parent=5 // pred_check_branch
      %122 = sbr.rel (%p119) target = $region12
    $region11: #{tpu_custom_call.1} parent=5 // pred_region
      %s123 = ssub.s32 %s8, 1
      // Predicated region
      $region13: #{tpu_custom_call.1} parent=11 // pred_check
        %p124 = pneg %p79
      $region14: #{tpu_custom_call.1} parent=11 // pred_check_branch
        %126 = sbr.rel (%p124) target = $region16
      $region15: #{tpu_custom_call.1} parent=11 // pred_region
        %p127 = scmp.lt.s32.totalorder %s20, 0
        %s128 = scalar_select %p127, %s20, 0
        %s129 = smul.addr %s128, 4
        %s130 = scalar_lea.vmem %s1, %s129
      $region16: #{tpu_custom_call.1} parent=11 // pred_fallthru
        _
    $region12: #{tpu_custom_call.1} parent=5 // pred_fallthru
      _
    %p131 = scmp.lt.s32.totalorder %s8, 2
    // Predicated region
    $region17: #{tpu_custom_call.1} parent=5 // pred_check
      %p132 = pneg %p131
    $region18: #{tpu_custom_call.1} parent=5 // pred_check_branch
      %134 = sbr.rel (%p132) target = $region20
    $region19: #{tpu_custom_call.1} parent=5 // pred_region
      // Predicated region
      $region21: #{tpu_custom_call.1} parent=19 // pred_check
        %p135 = pneg %p47
      $region22: #{tpu_custom_call.1} parent=19 // pred_check_branch
        %137 = sbr.rel (%p135) target = $region24
      $region23: #{tpu_custom_call.1} parent=19 // pred_region
        %p138 = scmp.lt.s32.totalorder %s15, 1
        %s139 = scalar_select %p138, %s15, 1
        %s140 = smul.addr %s139, 32
        %s141 = smul.addr %s140, 8
        %s142 = scalar_lea.vmem %s0, %s141
      $region24: #{tpu_custom_call.1} parent=19 // pred_fallthru
        _
    $region20: #{tpu_custom_call.1} parent=5 // pred_fallthru
      _
    %p143 = scmp.le.s32.totalorder 1, %s8
    %p144 = scmp.lt.s32.totalorder %s8, 3
    %p145 = pnand %p143, %p144
    %p146 = pneg %p145
    // Predicated region
    $region25: #{tpu_custom_call.1} parent=5 // pred_check
      _
    $region26: #{tpu_custom_call.1} parent=5 // pred_check_branch
      %148 = sbr.rel (%p145) target = $region28
    $region27: #{tpu_custom_call.1} parent=5 // pred_region
      %s149 = ssub.s32 %s8, 1
      %p150 = scmp.lt.s32.totalorder %s18, 1
      %s151 = scalar_select %p150, %s18, 1
      %s152 = smul.addr %s151, 32
      %s153 = smul.addr %s152, 8
      %s154 = scalar_lea.vmem %s0, %s153
      %p155 = pneg %p53
      %p156 = pneg %p50
      %p157 = scmp.lt.s32.totalorder %s20, 0
      %s158 = scalar_select %p157, %s20, 0
      %s159 = smul.addr %s158, 4
      %s160 = scalar_lea.vmem %s1, %s159
      %p161 = pneg %p79
      %p162 = pneg %p76
      %p163 = pneg %p109
      %p164 = pneg %p106
      %s165 = smul.u32 14, %s19
      %p166 = scmp.lt.s32.totalorder %s18, 1
      %s167 = scalar_select %p166, %s18, 1
      %p168 = scmp.lt.s32.totalorder %s165, 13
      %s169 = scalar_select %p168, %s165, 13
      %p170 = scmp.lt.s32.totalorder %s20, 0
      %s171 = scalar_select %p170, %s20, 0
      %s172 = smul.addr %s169, 2
      %s173 = sadd.s32 %s171, %s172
      %s174 = smul.addr %s167, 28
      %s175 = sadd.s32 %s173, %s174
      %s176 = smul.addr %s175, 8
      %s177 = scalar_lea.vmem %s2, %s176
      %p178 = scmp.lt.s32.totalorder %s18, 1
      %s179 = scalar_select %p178, %s18, 1
      %s180 = smul.addr %s179, 32
      %s181 = smul.addr %s180, 8
      %s182 = scalar_lea.vmem %s0, %s181
      %p183 = scmp.lt.s32.totalorder %s20, 0
      %s184 = scalar_select %p183, %s20, 0
      %s185 = smul.addr %s184, 4
      %s186 = scalar_lea.vmem %s1, %s185
      %s187 = smul.u32 14, %s19
      %p188 = scmp.lt.s32.totalorder %s18, 1
      %s189 = scalar_select %p188, %s18, 1
      %p190 = scmp.lt.s32.totalorder %s187, 13
      %s191 = scalar_select %p190, %s187, 13
      %p192 = scmp.lt.s32.totalorder %s20, 0
      %s193 = scalar_select %p192, %s20, 0
      %s194 = smul.addr %s191, 2
      %s195 = sadd.s32 %s193, %s194
      %s196 = smul.addr %s189, 28
      %s197 = sadd.s32 %s195, %s196
      %s198 = smul.addr %s197, 8
      %s199 = scalar_lea.vmem %s2, %s198
      %s200 = smul.u32 14, %s19
      %v201 = vld [vmem:[%s182] sm:$0xff]
      %v202 = vld [vmem:[%s182 + $0x8] sm:$0xff]
      %v203 = vld [vmem:[%s182 + $0x10] sm:$0xff]
      %v204 = vld [vmem:[%s182 + $0x18] sm:$0xff]
      %v205 = vld [vmem:[%s182 + $0x20] sm:$0xff]
      %v206 = vld [vmem:[%s182 + $0x28] sm:$0xff]
      %v207 = vld [vmem:[%s182 + $0x30] sm:$0xff]
      %v208 = vld [vmem:[%s182 + $0x38] sm:$0xff]
      %v209 = vld [vmem:[%s182 + $0x40] sm:$0xff]
      %v210 = vld [vmem:[%s182 + $0x48] sm:$0xff]
      %v211 = vld [vmem:[%s182 + $0x50] sm:$0xff]
      %v212 = vld [vmem:[%s182 + $0x58] sm:$0xff]
      %v213 = vld [vmem:[%s182 + $0x60] sm:$0xff]
      %v214 = vld [vmem:[%s182 + $0x68] sm:$0xff]
      %v215 = vld [vmem:[%s182 + $0x70] sm:$0xff]
      %v216 = vld [vmem:[%s182 + $0x78] sm:$0xff]
      %v217 = vld [vmem:[%s182 + $0x80] sm:$0xff]
      %v218 = vld [vmem:[%s182 + $0x88] sm:$0xff]
      %v219 = vld [vmem:[%s182 + $0x90] sm:$0xff]
      %v220 = vld [vmem:[%s182 + $0x98] sm:$0xff]
      %v221 = vld [vmem:[%s182 + $0xa0] sm:$0xff]
      %v222 = vld [vmem:[%s182 + $0xa8] sm:$0xff]
      %v223 = vld [vmem:[%s182 + $0xb0] sm:$0xff]
      %v224 = vld [vmem:[%s182 + $0xb8] sm:$0xff]
      %v225 = vld [vmem:[%s182 + $0xc0] sm:$0xff]
      %v226 = vld [vmem:[%s182 + $0xc8] sm:$0xff]
      %v227 = vld [vmem:[%s182 + $0xd0] sm:$0xff]
      %v228 = vld [vmem:[%s182 + $0xd8] sm:$0xff]
      %v229 = vld [vmem:[%s182 + $0xe0] sm:$0xff]
      %v230 = vld [vmem:[%s182 + $0xe8] sm:$0xff]
      %v231 = vld [vmem:[%s182 + $0xf0] sm:$0xff]
      %v232 = vld [vmem:[%s182 + $0xf8] sm:$0xff]
      %v261 = vcombine.high %v201, %v201
      %v263 = vunpack.c.l.s4 1983009808
      %v264 = vunpack.c.0.s8 %v263
      %v265 = vlaneseq
      %v266 = vshrl.u32 %v265, 7
      %v267 = vsub.s32 %v264, %v266
      %v268 = vrot.slane %v201, %v267
      %v270 = vunpack.c.l.s4 1983009808
      %v271 = vunpack.c.0.s8 %v270
      %v272 = vlaneseq
      %v273 = vshrl.u32 %v272, 7
      %v274 = vsub.s32 %v271, %v273
      %v275 = vrot.slane %v261, %v274
      %v276 = vcombine.high %v268, %v268
      %v277 = vcombine.high %v275, %v275
      %v278 = vcombine.high %v202, %v202
      %v280 = vunpack.c.l.s4 1983009808
      %v281 = vunpack.c.0.s8 %v280
      %v282 = vlaneseq
      %v283 = vshrl.u32 %v282, 7
      %v284 = vsub.s32 %v281, %v283
      %v285 = vrot.slane %v202, %v284
      %v287 = vunpack.c.l.s4 1983009808
      %v288 = vunpack.c.0.s8 %v287
      %v289 = vlaneseq
      %v290 = vshrl.u32 %v289, 7
      %v291 = vsub.s32 %v288, %v290
      %v292 = vrot.slane %v278, %v291
      %v293 = vcombine.high %v285, %v285
      %v294 = vcombine.high %v203, %v203
      %v296 = vunpack.c.l.s4 1983009808
      %v297 = vunpack.c.0.s8 %v296
      %v298 = vlaneseq
      %v299 = vshrl.u32 %v298, 7
      %v300 = vsub.s32 %v297, %v299
      %v301 = vrot.slane %v203, %v300
      %v303 = vunpack.c.l.s4 1983009808
      %v304 = vunpack.c.0.s8 %v303
      %v305 = vlaneseq
      %v306 = vshrl.u32 %v305, 7
      %v307 = vsub.s32 %v304, %v306
      %v308 = vrot.slane %v294, %v307
      %v309 = vcombine.high %v301, %v301
      %v310 = vcombine.high %v308, %v308
      %v311 = vcombine.high %v204, %v204
      %v313 = vunpack.c.l.s4 1983009808
      %v314 = vunpack.c.0.s8 %v313
      %v315 = vlaneseq
      %v316 = vshrl.u32 %v315, 7
      %v317 = vsub.s32 %v314, %v316
      %v318 = vrot.slane %v204, %v317
      %v320 = vunpack.c.l.s4 1983009808
      %v321 = vunpack.c.0.s8 %v320
      %v322 = vlaneseq
      %v323 = vshrl.u32 %v322, 7
      %v324 = vsub.s32 %v321, %v323
      %v325 = vrot.slane %v311, %v324
      %v326 = vcombine.high %v318, %v318
      %v327 = vcombine.high %v205, %v205
      %v329 = vunpack.c.l.s4 1983009808
      %v330 = vunpack.c.0.s8 %v329
      %v331 = vlaneseq
      %v332 = vshrl.u32 %v331, 7
      %v333 = vsub.s32 %v330, %v332
      %v334 = vrot.slane %v205, %v333
      %v336 = vunpack.c.l.s4 1983009808
      %v337 = vunpack.c.0.s8 %v336
      %v338 = vlaneseq
      %v339 = vshrl.u32 %v338, 7
      %v340 = vsub.s32 %v337, %v339
      %v341 = vrot.slane %v327, %v340
      %v342 = vcombine.high %v334, %v334
      %v343 = vcombine.high %v341, %v341
      %v344 = vcombine.high %v206, %v206
      %v346 = vunpack.c.l.s4 1983009808
      %v347 = vunpack.c.0.s8 %v346
      %v348 = vlaneseq
      %v349 = vshrl.u32 %v348, 7
      %v350 = vsub.s32 %v347, %v349
      %v351 = vrot.slane %v206, %v350
      %v353 = vunpack.c.l.s4 1983009808
      %v354 = vunpack.c.0.s8 %v353
      %v355 = vlaneseq
      %v356 = vshrl.u32 %v355, 7
      %v357 = vsub.s32 %v354, %v356
      %v358 = vrot.slane %v344, %v357
      %v359 = vcombine.high %v351, %v351
      %v360 = vcombine.high %v207, %v207
      %v362 = vunpack.c.l.s4 1983009808
      %v363 = vunpack.c.0.s8 %v362
      %v364 = vlaneseq
      %v365 = vshrl.u32 %v364, 7
      %v366 = vsub.s32 %v363, %v365
      %v367 = vrot.slane %v207, %v366
      %v369 = vunpack.c.l.s4 1983009808
      %v370 = vunpack.c.0.s8 %v369
      %v371 = vlaneseq
      %v372 = vshrl.u32 %v371, 7
      %v373 = vsub.s32 %v370, %v372
      %v374 = vrot.slane %v360, %v373
      %v375 = vcombine.high %v367, %v367
      %v376 = vcombine.high %v374, %v374
      %v377 = vcombine.high %v208, %v208
      %v379 = vunpack.c.l.s4 1983009808
      %v380 = vunpack.c.0.s8 %v379
      %v381 = vlaneseq
      %v382 = vshrl.u32 %v381, 7
      %v383 = vsub.s32 %v380, %v382
      %v384 = vrot.slane %v208, %v383
      %v386 = vunpack.c.l.s4 1983009808
      %v387 = vunpack.c.0.s8 %v386
      %v388 = vlaneseq
      %v389 = vshrl.u32 %v388, 7
      %v390 = vsub.s32 %v387, %v389
      %v391 = vrot.slane %v377, %v390
      %v392 = vcombine.high %v384, %v384
      %v393 = vcombine.high %v209, %v209
      %v395 = vunpack.c.l.s4 1983009808
      %v396 = vunpack.c.0.s8 %v395
      %v397 = vlaneseq
      %v398 = vshrl.u32 %v397, 7
      %v399 = vsub.s32 %v396, %v398
      %v400 = vrot.slane %v209, %v399
      %v402 = vunpack.c.l.s4 1983009808
      %v403 = vunpack.c.0.s8 %v402
      %v404 = vlaneseq
      %v405 = vshrl.u32 %v404, 7
      %v406 = vsub.s32 %v403, %v405
      %v407 = vrot.slane %v393, %v406
      %v408 = vcombine.high %v400, %v400
      %v409 = vcombine.high %v407, %v407
      %v410 = vcombine.high %v210, %v210
      %v412 = vunpack.c.l.s4 1983009808
      %v413 = vunpack.c.0.s8 %v412
      %v414 = vlaneseq
      %v415 = vshrl.u32 %v414, 7
      %v416 = vsub.s32 %v413, %v415
      %v417 = vrot.slane %v210, %v416
      %v419 = vunpack.c.l.s4 1983009808
      %v420 = vunpack.c.0.s8 %v419
      %v421 = vlaneseq
      %v422 = vshrl.u32 %v421, 7
      %v423 = vsub.s32 %v420, %v422
      %v424 = vrot.slane %v410, %v423
      %v425 = vcombine.high %v417, %v417
      %v426 = vcombine.high %v211, %v211
      %v428 = vunpack.c.l.s4 1983009808
      %v429 = vunpack.c.0.s8 %v428
      %v430 = vlaneseq
      %v431 = vshrl.u32 %v430, 7
      %v432 = vsub.s32 %v429, %v431
      %v433 = vrot.slane %v211, %v432
      %v435 = vunpack.c.l.s4 1983009808
      %v436 = vunpack.c.0.s8 %v435
      %v437 = vlaneseq
      %v438 = vshrl.u32 %v437, 7
      %v439 = vsub.s32 %v436, %v438
      %v440 = vrot.slane %v426, %v439
      %v441 = vcombine.high %v433, %v433
      %v442 = vcombine.high %v440, %v440
      %v443 = vcombine.high %v212, %v212
      %v445 = vunpack.c.l.s4 1983009808
      %v446 = vunpack.c.0.s8 %v445
      %v447 = vlaneseq
      %v448 = vshrl.u32 %v447, 7
      %v449 = vsub.s32 %v446, %v448
      %v450 = vrot.slane %v212, %v449
      %v452 = vunpack.c.l.s4 1983009808
      %v453 = vunpack.c.0.s8 %v452
      %v454 = vlaneseq
      %v455 = vshrl.u32 %v454, 7
      %v456 = vsub.s32 %v453, %v455
      %v457 = vrot.slane %v443, %v456
      %v458 = vcombine.high %v450, %v450
      %v459 = vcombine.high %v213, %v213
      %v461 = vunpack.c.l.s4 1983009808
      %v462 = vunpack.c.0.s8 %v461
      %v463 = vlaneseq
      %v464 = vshrl.u32 %v463, 7
      %v465 = vsub.s32 %v462, %v464
      %v466 = vrot.slane %v213, %v465
      %v468 = vunpack.c.l.s4 1983009808
      %v469 = vunpack.c.0.s8 %v468
      %v470 = vlaneseq
      %v471 = vshrl.u32 %v470, 7
      %v472 = vsub.s32 %v469, %v471
      %v473 = vrot.slane %v459, %v472
      %v474 = vcombine.high %v466, %v466
      %v475 = vcombine.high %v473, %v473
      %v476 = vcombine.high %v214, %v214
      %v478 = vunpack.c.l.s4 1983009808
      %v479 = vunpack.c.0.s8 %v478
      %v480 = vlaneseq
      %v481 = vshrl.u32 %v480, 7
      %v482 = vsub.s32 %v479, %v481
      %v483 = vrot.slane %v214, %v482
      %v485 = vunpack.c.l.s4 1983009808
      %v486 = vunpack.c.0.s8 %v485
      %v487 = vlaneseq
      %v488 = vshrl.u32 %v487, 7
      %v489 = vsub.s32 %v486, %v488
      %v490 = vrot.slane %v476, %v489
      %v491 = vcombine.high %v483, %v483
      %v492 = vcombine.high %v215, %v215
      %v494 = vunpack.c.l.s4 1983009808
      %v495 = vunpack.c.0.s8 %v494
      %v496 = vlaneseq
      %v497 = vshrl.u32 %v496, 7
      %v498 = vsub.s32 %v495, %v497
      %v499 = vrot.slane %v215, %v498
      %v501 = vunpack.c.l.s4 1983009808
      %v502 = vunpack.c.0.s8 %v501
      %v503 = vlaneseq
      %v504 = vshrl.u32 %v503, 7
      %v505 = vsub.s32 %v502, %v504
      %v506 = vrot.slane %v492, %v505
      %v507 = vcombine.high %v499, %v499
      %v508 = vcombine.high %v506, %v506
      %v509 = vcombine.high %v216, %v216
      %v511 = vunpack.c.l.s4 1983009808
      %v512 = vunpack.c.0.s8 %v511
      %v513 = vlaneseq
      %v514 = vshrl.u32 %v513, 7
      %v515 = vsub.s32 %v512, %v514
      %v516 = vrot.slane %v216, %v515
      %v518 = vunpack.c.l.s4 1983009808
      %v519 = vunpack.c.0.s8 %v518
      %v520 = vlaneseq
      %v521 = vshrl.u32 %v520, 7
      %v522 = vsub.s32 %v519, %v521
      %v523 = vrot.slane %v509, %v522
      %v524 = vcombine.high %v516, %v516
      %v525 = vcombine.high %v217, %v217
      %v527 = vunpack.c.l.s4 1983009808
      %v528 = vunpack.c.0.s8 %v527
      %v529 = vlaneseq
      %v530 = vshrl.u32 %v529, 7
      %v531 = vsub.s32 %v528, %v530
      %v532 = vrot.slane %v217, %v531
      %v534 = vunpack.c.l.s4 1983009808
      %v535 = vunpack.c.0.s8 %v534
      %v536 = vlaneseq
      %v537 = vshrl.u32 %v536, 7
      %v538 = vsub.s32 %v535, %v537
      %v539 = vrot.slane %v525, %v538
      %v540 = vcombine.high %v532, %v532
      %v541 = vcombine.high %v539, %v539
      %v542 = vcombine.high %v218, %v218
      %v544 = vunpack.c.l.s4 1983009808
      %v545 = vunpack.c.0.s8 %v544
      %v546 = vlaneseq
      %v547 = vshrl.u32 %v546, 7
      %v548 = vsub.s32 %v545, %v547
      %v549 = vrot.slane %v218, %v548
      %v551 = vunpack.c.l.s4 1983009808
      %v552 = vunpack.c.0.s8 %v551
      %v553 = vlaneseq
      %v554 = vshrl.u32 %v553, 7
      %v555 = vsub.s32 %v552, %v554
      %v556 = vrot.slane %v542, %v555
      %v557 = vcombine.high %v549, %v549
      %v558 = vcombine.high %v219, %v219
      %v560 = vunpack.c.l.s4 1983009808
      %v561 = vunpack.c.0.s8 %v560
      %v562 = vlaneseq
      %v563 = vshrl.u32 %v562, 7
      %v564 = vsub.s32 %v561, %v563
      %v565 = vrot.slane %v219, %v564
      %v567 = vunpack.c.l.s4 1983009808
      %v568 = vunpack.c.0.s8 %v567
      %v569 = vlaneseq
      %v570 = vshrl.u32 %v569, 7
      %v571 = vsub.s32 %v568, %v570
      %v572 = vrot.slane %v558, %v571
      %v573 = vcombine.high %v565, %v565
      %v574 = vcombine.high %v572, %v572
      %v575 = vcombine.high %v220, %v220
      %v577 = vunpack.c.l.s4 1983009808
      %v578 = vunpack.c.0.s8 %v577
      %v579 = vlaneseq
      %v580 = vshrl.u32 %v579, 7
      %v581 = vsub.s32 %v578, %v580
      %v582 = vrot.slane %v220, %v581
      %v584 = vunpack.c.l.s4 1983009808
      %v585 = vunpack.c.0.s8 %v584
      %v586 = vlaneseq
      %v587 = vshrl.u32 %v586, 7
      %v588 = vsub.s32 %v585, %v587
      %v589 = vrot.slane %v575, %v588
      %v590 = vcombine.high %v582, %v582
      %v591 = vcombine.high %v221, %v221
      %v593 = vunpack.c.l.s4 1983009808
      %v594 = vunpack.c.0.s8 %v593
      %v595 = vlaneseq
      %v596 = vshrl.u32 %v595, 7
      %v597 = vsub.s32 %v594, %v596
      %v598 = vrot.slane %v221, %v597
      %v600 = vunpack.c.l.s4 1983009808
      %v601 = vunpack.c.0.s8 %v600
      %v602 = vlaneseq
      %v603 = vshrl.u32 %v602, 7
      %v604 = vsub.s32 %v601, %v603
      %v605 = vrot.slane %v591, %v604
      %v606 = vcombine.high %v598, %v598
      %v607 = vcombine.high %v605, %v605
      %v608 = vcombine.high %v222, %v222
      %v610 = vunpack.c.l.s4 1983009808
      %v611 = vunpack.c.0.s8 %v610
      %v612 = vlaneseq
      %v613 = vshrl.u32 %v612, 7
      %v614 = vsub.s32 %v611, %v613
      %v615 = vrot.slane %v222, %v614
      %v617 = vunpack.c.l.s4 1983009808
      %v618 = vunpack.c.0.s8 %v617
      %v619 = vlaneseq
      %v620 = vshrl.u32 %v619, 7
      %v621 = vsub.s32 %v618, %v620
      %v622 = vrot.slane %v608, %v621
      %v623 = vcombine.high %v615, %v615
      %v624 = vcombine.high %v223, %v223
      %v626 = vunpack.c.l.s4 1983009808
      %v627 = vunpack.c.0.s8 %v626
      %v628 = vlaneseq
      %v629 = vshrl.u32 %v628, 7
      %v630 = vsub.s32 %v627, %v629
      %v631 = vrot.slane %v223, %v630
      %v633 = vunpack.c.l.s4 1983009808
      %v634 = vunpack.c.0.s8 %v633
      %v635 = vlaneseq
      %v636 = vshrl.u32 %v635, 7
      %v637 = vsub.s32 %v634, %v636
      %v638 = vrot.slane %v624, %v637
      %v639 = vcombine.high %v631, %v631
      %v640 = vcombine.high %v638, %v638
      %v641 = vcombine.high %v224, %v224
      %v643 = vunpack.c.l.s4 1983009808
      %v644 = vunpack.c.0.s8 %v643
      %v645 = vlaneseq
      %v646 = vshrl.u32 %v645, 7
      %v647 = vsub.s32 %v644, %v646
      %v648 = vrot.slane %v224, %v647
      %v650 = vunpack.c.l.s4 1983009808
      %v651 = vunpack.c.0.s8 %v650
      %v652 = vlaneseq
      %v653 = vshrl.u32 %v652, 7
      %v654 = vsub.s32 %v651, %v653
      %v655 = vrot.slane %v641, %v654
      %v656 = vcombine.high %v648, %v648
      %v657 = vcombine.high %v225, %v225
      %v659 = vunpack.c.l.s4 1983009808
      %v660 = vunpack.c.0.s8 %v659
      %v661 = vlaneseq
      %v662 = vshrl.u32 %v661, 7
      %v663 = vsub.s32 %v660, %v662
      %v664 = vrot.slane %v225, %v663
      %v666 = vunpack.c.l.s4 1983009808
      %v667 = vunpack.c.0.s8 %v666
      %v668 = vlaneseq
      %v669 = vshrl.u32 %v668, 7
      %v670 = vsub.s32 %v667, %v669
      %v671 = vrot.slane %v657, %v670
      %v672 = vcombine.high %v664, %v664
      %v673 = vcombine.high %v671, %v671
      %v674 = vcombine.high %v226, %v226
      %v676 = vunpack.c.l.s4 1983009808
      %v677 = vunpack.c.0.s8 %v676
      %v678 = vlaneseq
      %v679 = vshrl.u32 %v678, 7
      %v680 = vsub.s32 %v677, %v679
      %v681 = vrot.slane %v226, %v680
      %v683 = vunpack.c.l.s4 1983009808
      %v684 = vunpack.c.0.s8 %v683
      %v685 = vlaneseq
      %v686 = vshrl.u32 %v685, 7
      %v687 = vsub.s32 %v684, %v686
      %v688 = vrot.slane %v674, %v687
      %v689 = vcombine.high %v681, %v681
      %v690 = vcombine.high %v227, %v227
      %v692 = vunpack.c.l.s4 1983009808
      %v693 = vunpack.c.0.s8 %v692
      %v694 = vlaneseq
      %v695 = vshrl.u32 %v694, 7
      %v696 = vsub.s32 %v693, %v695
      %v697 = vrot.slane %v227, %v696
      %v699 = vunpack.c.l.s4 1983009808
      %v700 = vunpack.c.0.s8 %v699
      %v701 = vlaneseq
      %v702 = vshrl.u32 %v701, 7
      %v703 = vsub.s32 %v700, %v702
      %v704 = vrot.slane %v690, %v703
      %v705 = vcombine.high %v697, %v697
      %v706 = vcombine.high %v704, %v704
      %v707 = vcombine.high %v228, %v228
      %v709 = vunpack.c.l.s4 1983009808
      %v710 = vunpack.c.0.s8 %v709
      %v711 = vlaneseq
      %v712 = vshrl.u32 %v711, 7
      %v713 = vsub.s32 %v710, %v712
      %v714 = vrot.slane %v228, %v713
      %v716 = vunpack.c.l.s4 1983009808
      %v717 = vunpack.c.0.s8 %v716
      %v718 = vlaneseq
      %v719 = vshrl.u32 %v718, 7
      %v720 = vsub.s32 %v717, %v719
      %v721 = vrot.slane %v707, %v720
      %v722 = vcombine.high %v714, %v714
      %v723 = vld [vmem:[%s186] sm:$0xf]
      %v724 = vcombine.high %v292, %v292
      %v725 = vcombine.high %v325, %v325
      %v726 = vcombine.high %v358, %v358
      %v727 = vcombine.high %v391, %v391
      %v728 = vcombine.high %v424, %v424
      %v729 = vcombine.high %v457, %v457
      %v730 = vcombine.high %v490, %v490
      %v731 = vcombine.high %v523, %v523
      %v732 = vcombine.high %v556, %v556
      %v733 = vcombine.high %v589, %v589
      %v734 = vcombine.high %v622, %v622
      %v735 = vcombine.high %v655, %v655
      %v736 = vcombine.high %v688, %v688
      %v737 = vcombine.high %v721, %v721
      %vm738 = vcmask 1040384
      %vm739 = vcmask 1042434
      %vm740 = vmor %vm738, %vm739
      %vm741 = vcmask 1044484
      %vm742 = vmor %vm740, %vm741
      %vm743 = vcmask 1046534
      %vm744 = vmor %vm742, %vm743
      %v745 = vrot.slane %v268, 7
      %v746 = vrot.slane %v745, 2
      %v747 = vrot.slane %v276, 7
      %v748 = vsel %vm744, %v746, %v747
      %v749 = vrot.slane %v747, 2
      %v750 = vrot.slane %v275, 7
      %v751 = vsel %vm744, %v749, %v750
      %v752 = vrot.slane %v750, 2
      %v753 = vrot.slane %v277, 7
      %v754 = vsel %vm744, %v752, %v753
      %v755 = vrot.slane %v753, 2
      %v756 = vrot.slane %v285, 7
      %v757 = vsel %vm744, %v755, %v756
      %v758 = vrot.slane %v756, 2
      %v759 = vrot.slane %v293, 7
      %v760 = vsel %vm744, %v758, %v759
      %v761 = vrot.slane %v759, 2
      %v762 = vrot.slane %v292, 7
      %v763 = vsel %vm744, %v761, %v762
      %v764 = vrot.slane %v762, 2
      %v765 = vrot.slane %v724, 7
      %v766 = vsel %vm744, %v764, %v765
      %v767 = vrot.slane %v301, 7
      %v768 = vrot.slane %v767, 2
      %v769 = vrot.slane %v309, 7
      %v770 = vsel %vm744, %v768, %v769
      %v771 = vrot.slane %v769, 2
      %v772 = vrot.slane %v308, 7
      %v773 = vsel %vm744, %v771, %v772
      %v774 = vrot.slane %v772, 2
      %v775 = vrot.slane %v310, 7
      %v776 = vsel %vm744, %v774, %v775
      %v777 = vrot.slane %v775, 2
      %v778 = vrot.slane %v318, 7
      %v779 = vsel %vm744, %v777, %v778
      %v780 = vrot.slane %v778, 2
      %v781 = vrot.slane %v326, 7
      %v782 = vsel %vm744, %v780, %v781
      %v783 = vrot.slane %v781, 2
      %v784 = vrot.slane %v325, 7
      %v785 = vsel %vm744, %v783, %v784
      %v786 = vrot.slane %v784, 2
      %v787 = vrot.slane %v725, 7
      %v788 = vsel %vm744, %v786, %v787
      %v789 = vrot.slane %v334, 7
      %v790 = vrot.slane %v789, 2
      %v791 = vrot.slane %v342, 7
      %v792 = vsel %vm744, %v790, %v791
      %v793 = vrot.slane %v791, 2
      %v794 = vrot.slane %v341, 7
      %v795 = vsel %vm744, %v793, %v794
      %v796 = vrot.slane %v794, 2
      %v797 = vrot.slane %v343, 7
      %v798 = vsel %vm744, %v796, %v797
      %v799 = vrot.slane %v797, 2
      %v800 = vrot.slane %v351, 7
      %v801 = vsel %vm744, %v799, %v800
      %v802 = vrot.slane %v800, 2
      %v803 = vrot.slane %v359, 7
      %v804 = vsel %vm744, %v802, %v803
      %v805 = vrot.slane %v803, 2
      %v806 = vrot.slane %v358, 7
      %v807 = vsel %vm744, %v805, %v806
      %v808 = vrot.slane %v806, 2
      %v809 = vrot.slane %v726, 7
      %v810 = vsel %vm744, %v808, %v809
      %v811 = vrot.slane %v367, 7
      %v812 = vrot.slane %v811, 2
      %v813 = vrot.slane %v375, 7
      %v814 = vsel %vm744, %v812, %v813
      %v815 = vrot.slane %v813, 2
      %v816 = vrot.slane %v374, 7
      %v817 = vsel %vm744, %v815, %v816
      %v818 = vrot.slane %v816, 2
      %v819 = vrot.slane %v376, 7
      %v820 = vsel %vm744, %v818, %v819
      %v821 = vrot.slane %v819, 2
      %v822 = vrot.slane %v384, 7
      %v823 = vsel %vm744, %v821, %v822
      %v824 = vrot.slane %v822, 2
      %v825 = vrot.slane %v392, 7
      %v826 = vsel %vm744, %v824, %v825
      %v827 = vrot.slane %v825, 2
      %v828 = vrot.slane %v391, 7
      %v829 = vsel %vm744, %v827, %v828
      %v830 = vrot.slane %v828, 2
      %v831 = vrot.slane %v727, 7
      %v832 = vsel %vm744, %v830, %v831
      %v833 = vrot.slane %v400, 7
      %v834 = vrot.slane %v833, 2
      %v835 = vrot.slane %v408, 7
      %v836 = vsel %vm744, %v834, %v835
      %v837 = vrot.slane %v835, 2
      %v838 = vrot.slane %v407, 7
      %v839 = vsel %vm744, %v837, %v838
      %v840 = vrot.slane %v838, 2
      %v841 = vrot.slane %v409, 7
      %v842 = vsel %vm744, %v840, %v841
      %v843 = vrot.slane %v841, 2
      %v844 = vrot.slane %v417, 7
      %v845 = vsel %vm744, %v843, %v844
      %v846 = vrot.slane %v844, 2
      %v847 = vrot.slane %v425, 7
      %v848 = vsel %vm744, %v846, %v847
      %v849 = vrot.slane %v847, 2
      %v850 = vrot.slane %v424, 7
      %v851 = vsel %vm744, %v849, %v850
      %v852 = vrot.slane %v850, 2
      %v853 = vrot.slane %v728, 7
      %v854 = vsel %vm744, %v852, %v853
      %v855 = vrot.slane %v433, 7
      %v856 = vrot.slane %v855, 2
      %v857 = vrot.slane %v441, 7
      %v858 = vsel %vm744, %v856, %v857
      %v859 = vrot.slane %v857, 2
      %v860 = vrot.slane %v440, 7
      %v861 = vsel %vm744, %v859, %v860
      %v862 = vrot.slane %v860, 2
      %v863 = vrot.slane %v442, 7
      %v864 = vsel %vm744, %v862, %v863
      %v865 = vrot.slane %v863, 2
      %v866 = vrot.slane %v450, 7
      %v867 = vsel %vm744, %v865, %v866
      %v868 = vrot.slane %v866, 2
      %v869 = vrot.slane %v458, 7
      %v870 = vsel %vm744, %v868, %v869
      %v871 = vrot.slane %v869, 2
      %v872 = vrot.slane %v457, 7
      %v873 = vsel %vm744, %v871, %v872
      %v874 = vrot.slane %v872, 2
      %v875 = vrot.slane %v729, 7
      %v876 = vsel %vm744, %v874, %v875
      %v877 = vrot.slane %v466, 7
      %v878 = vrot.slane %v877, 2
      %v879 = vrot.slane %v474, 7
      %v880 = vsel %vm744, %v878, %v879
      %v881 = vrot.slane %v879, 2
      %v882 = vrot.slane %v473, 7
      %v883 = vsel %vm744, %v881, %v882
      %v884 = vrot.slane %v882, 2
      %v885 = vrot.slane %v475, 7
      %v886 = vsel %vm744, %v884, %v885
      %v887 = vrot.slane %v885, 2
      %v888 = vrot.slane %v483, 7
      %v889 = vsel %vm744, %v887, %v888
      %v890 = vrot.slane %v888, 2
      %v891 = vrot.slane %v491, 7
      %v892 = vsel %vm744, %v890, %v891
      %v893 = vrot.slane %v891, 2
      %v894 = vrot.slane %v490, 7
      %v895 = vsel %vm744, %v893, %v894
      %v896 = vrot.slane %v894, 2
      %v897 = vrot.slane %v730, 7
      %v898 = vsel %vm744, %v896, %v897
      %v899 = vrot.slane %v499, 7
      %v900 = vrot.slane %v899, 2
      %v901 = vrot.slane %v507, 7
      %v902 = vsel %vm744, %v900, %v901
      %v903 = vrot.slane %v901, 2
      %v904 = vrot.slane %v506, 7
      %v905 = vsel %vm744, %v903, %v904
      %v906 = vrot.slane %v904, 2
      %v907 = vrot.slane %v508, 7
      %v908 = vsel %vm744, %v906, %v907
      %v909 = vrot.slane %v907, 2
      %v910 = vrot.slane %v516, 7
      %v911 = vsel %vm744, %v909, %v910
      %v912 = vrot.slane %v910, 2
      %v913 = vrot.slane %v524, 7
      %v914 = vsel %vm744, %v912, %v913
      %v915 = vrot.slane %v913, 2
      %v916 = vrot.slane %v523, 7
      %v917 = vsel %vm744, %v915, %v916
      %v918 = vrot.slane %v916, 2
      %v919 = vrot.slane %v731, 7
      %v920 = vsel %vm744, %v918, %v919
      %v921 = vrot.slane %v532, 7
      %v922 = vrot.slane %v921, 2
      %v923 = vrot.slane %v540, 7
      %v924 = vsel %vm744, %v922, %v923
      %v925 = vrot.slane %v923, 2
      %v926 = vrot.slane %v539, 7
      %v927 = vsel %vm744, %v925, %v926
      %v928 = vrot.slane %v926, 2
      %v929 = vrot.slane %v541, 7
      %v930 = vsel %vm744, %v928, %v929
      %v931 = vrot.slane %v929, 2
      %v932 = vrot.slane %v549, 7
      %v933 = vsel %vm744, %v931, %v932
      %v934 = vrot.slane %v932, 2
      %v935 = vrot.slane %v557, 7
      %v936 = vsel %vm744, %v934, %v935
      %v937 = vrot.slane %v935, 2
      %v938 = vrot.slane %v556, 7
      %v939 = vsel %vm744, %v937, %v938
      %v940 = vrot.slane %v938, 2
      %v941 = vrot.slane %v732, 7
      %v942 = vsel %vm744, %v940, %v941
      %v943 = vrot.slane %v565, 7
      %v944 = vrot.slane %v943, 2
      %v945 = vrot.slane %v573, 7
      %v946 = vsel %vm744, %v944, %v945
      %v947 = vrot.slane %v945, 2
      %v948 = vrot.slane %v572, 7
      %v949 = vsel %vm744, %v947, %v948
      %v950 = vrot.slane %v948, 2
      %v951 = vrot.slane %v574, 7
      %v952 = vsel %vm744, %v950, %v951
      %v953 = vrot.slane %v951, 2
      %v954 = vrot.slane %v582, 7
      %v955 = vsel %vm744, %v953, %v954
      %v956 = vrot.slane %v954, 2
      %v957 = vrot.slane %v590, 7
      %v958 = vsel %vm744, %v956, %v957
      %v959 = vrot.slane %v957, 2
      %v960 = vrot.slane %v589, 7
      %v961 = vsel %vm744, %v959, %v960
      %v962 = vrot.slane %v960, 2
      %v963 = vrot.slane %v733, 7
      %v964 = vsel %vm744, %v962, %v963
      %v965 = vrot.slane %v598, 7
      %v966 = vrot.slane %v965, 2
      %v967 = vrot.slane %v606, 7
      %v968 = vsel %vm744, %v966, %v967
      %v969 = vrot.slane %v967, 2
      %v970 = vrot.slane %v605, 7
      %v971 = vsel %vm744, %v969, %v970
      %v972 = vrot.slane %v970, 2
      %v973 = vrot.slane %v607, 7
      %v974 = vsel %vm744, %v972, %v973
      %v975 = vrot.slane %v973, 2
      %v976 = vrot.slane %v615, 7
      %v977 = vsel %vm744, %v975, %v976
      %v978 = vrot.slane %v976, 2
      %v979 = vrot.slane %v623, 7
      %v980 = vsel %vm744, %v978, %v979
      %v981 = vrot.slane %v979, 2
      %v982 = vrot.slane %v622, 7
      %v983 = vsel %vm744, %v981, %v982
      %v984 = vrot.slane %v982, 2
      %v985 = vrot.slane %v734, 7
      %v986 = vsel %vm744, %v984, %v985
      %v987 = vrot.slane %v631, 7
      %v988 = vrot.slane %v987, 2
      %v989 = vrot.slane %v639, 7
      %v990 = vsel %vm744, %v988, %v989
      %v991 = vrot.slane %v989, 2
      %v992 = vrot.slane %v638, 7
      %v993 = vsel %vm744, %v991, %v992
      %v994 = vrot.slane %v992, 2
      %v995 = vrot.slane %v640, 7
      %v996 = vsel %vm744, %v994, %v995
      %v997 = vrot.slane %v995, 2
      %v998 = vrot.slane %v648, 7
      %v999 = vsel %vm744, %v997, %v998
      %v1000 = vrot.slane %v998, 2
      %v1001 = vrot.slane %v656, 7
      %v1002 = vsel %vm744, %v1000, %v1001
      %v1003 = vrot.slane %v1001, 2
      %v1004 = vrot.slane %v655, 7
      %v1005 = vsel %vm744, %v1003, %v1004
      %v1006 = vrot.slane %v1004, 2
      %v1007 = vrot.slane %v735, 7
      %v1008 = vsel %vm744, %v1006, %v1007
      %v1009 = vrot.slane %v664, 7
      %v1010 = vrot.slane %v1009, 2
      %v1011 = vrot.slane %v672, 7
      %v1012 = vsel %vm744, %v1010, %v1011
      %v1013 = vrot.slane %v1011, 2
      %v1014 = vrot.slane %v671, 7
      %v1015 = vsel %vm744, %v1013, %v1014
      %v1016 = vrot.slane %v1014, 2
      %v1017 = vrot.slane %v673, 7
      %v1018 = vsel %vm744, %v1016, %v1017
      %v1019 = vrot.slane %v1017, 2
      %v1020 = vrot.slane %v681, 7
      %v1021 = vsel %vm744, %v1019, %v1020
      %v1022 = vrot.slane %v1020, 2
      %v1023 = vrot.slane %v689, 7
      %v1024 = vsel %vm744, %v1022, %v1023
      %v1025 = vrot.slane %v1023, 2
      %v1026 = vrot.slane %v688, 7
      %v1027 = vsel %vm744, %v1025, %v1026
      %v1028 = vrot.slane %v1026, 2
      %v1029 = vrot.slane %v736, 7
      %v1030 = vsel %vm744, %v1028, %v1029
      %v1031 = vrot.slane %v697, 7
      %v1032 = vrot.slane %v1031, 2
      %v1033 = vrot.slane %v705, 7
      %v1034 = vsel %vm744, %v1032, %v1033
      %v1035 = vrot.slane %v1033, 2
      %v1036 = vrot.slane %v704, 7
      %v1037 = vsel %vm744, %v1035, %v1036
      %v1038 = vrot.slane %v1036, 2
      %v1039 = vrot.slane %v706, 7
      %v1040 = vsel %vm744, %v1038, %v1039
      %v1041 = vrot.slane %v1039, 2
      %v1042 = vrot.slane %v714, 7
      %v1043 = vsel %vm744, %v1041, %v1042
      %v1044 = vrot.slane %v1042, 2
      %v1045 = vrot.slane %v722, 7
      %v1046 = vsel %vm744, %v1044, %v1045
      %v1047 = vrot.slane %v1045, 2
      %v1048 = vrot.slane %v721, 7
      %v1049 = vsel %vm744, %v1047, %v1048
      %v1050 = vrot.slane %v1048, 2
      %v1051 = vrot.slane %v737, 7
      %v1052 = vsel %vm744, %v1050, %v1051
      %s1053 = scalar_lea.vmem %s186, 4
      %v1054 = vld [vmem:[%s1053] sm:$0xf]
      %v1055 = vcombine.low %v748, %v751
      %v1056 = vcombine.low %v754, %v757
      %v1058 = vunpack.c.l.s4 1983009808
      %v1059 = vunpack.c.0.s8 %v1058
      %v1060 = vlaneseq
      %v1061 = vshrl.u32 %v1060, 7
      %v1062 = vsub.s32 %v1059, %v1061
      %v1063 = vrot.slane %v1055, %v1062
      %v1065 = vunpack.c.l.s4 1983009808
      %v1066 = vunpack.c.0.s8 %v1065
      %v1067 = vlaneseq
      %v1068 = vshrl.u32 %v1067, 7
      %v1069 = vsub.s32 %v1066, %v1068
      %v1070 = vrot.slane %v1056, %v1069
      %v1071 = vcombine.low %v1063, %v1070
      %v1072 = vcombine.low %v760, %v763
      %v1073 = vcombine.low %v766, %v770
      %v1075 = vunpack.c.l.s4 1983009808
      %v1076 = vunpack.c.0.s8 %v1075
      %v1077 = vlaneseq
      %v1078 = vshrl.u32 %v1077, 7
      %v1079 = vsub.s32 %v1076, %v1078
      %v1080 = vrot.slane %v1072, %v1079
      %v1082 = vunpack.c.l.s4 1983009808
      %v1083 = vunpack.c.0.s8 %v1082
      %v1084 = vlaneseq
      %v1085 = vshrl.u32 %v1084, 7
      %v1086 = vsub.s32 %v1083, %v1085
      %v1087 = vrot.slane %v1073, %v1086
      %v1088 = vcombine.low %v1080, %v1087
      %v1089 = vcombine.low %v773, %v776
      %v1090 = vcombine.low %v779, %v782
      %v1092 = vunpack.c.l.s4 1983009808
      %v1093 = vunpack.c.0.s8 %v1092
      %v1094 = vlaneseq
      %v1095 = vshrl.u32 %v1094, 7
      %v1096 = vsub.s32 %v1093, %v1095
      %v1097 = vrot.slane %v1089, %v1096
      %v1099 = vunpack.c.l.s4 1983009808
      %v1100 = vunpack.c.0.s8 %v1099
      %v1101 = vlaneseq
      %v1102 = vshrl.u32 %v1101, 7
      %v1103 = vsub.s32 %v1100, %v1102
      %v1104 = vrot.slane %v1090, %v1103
      %v1105 = vcombine.low %v1097, %v1104
      %v1106 = vcombine.low %v785, %v788
      %v1107 = vcombine.low %v792, %v795
      %v1109 = vunpack.c.l.s4 1983009808
      %v1110 = vunpack.c.0.s8 %v1109
      %v1111 = vlaneseq
      %v1112 = vshrl.u32 %v1111, 7
      %v1113 = vsub.s32 %v1110, %v1112
      %v1114 = vrot.slane %v1106, %v1113
      %v1116 = vunpack.c.l.s4 1983009808
      %v1117 = vunpack.c.0.s8 %v1116
      %v1118 = vlaneseq
      %v1119 = vshrl.u32 %v1118, 7
      %v1120 = vsub.s32 %v1117, %v1119
      %v1121 = vrot.slane %v1107, %v1120
      %v1122 = vcombine.low %v1114, %v1121
      %v1123 = vcombine.low %v798, %v801
      %v1124 = vcombine.low %v804, %v807
      %v1126 = vunpack.c.l.s4 1983009808
      %v1127 = vunpack.c.0.s8 %v1126
      %v1128 = vlaneseq
      %v1129 = vshrl.u32 %v1128, 7
      %v1130 = vsub.s32 %v1127, %v1129
      %v1131 = vrot.slane %v1123, %v1130
      %v1133 = vunpack.c.l.s4 1983009808
      %v1134 = vunpack.c.0.s8 %v1133
      %v1135 = vlaneseq
      %v1136 = vshrl.u32 %v1135, 7
      %v1137 = vsub.s32 %v1134, %v1136
      %v1138 = vrot.slane %v1124, %v1137
      %v1139 = vcombine.low %v1131, %v1138
      %v1140 = vcombine.low %v810, %v814
      %v1141 = vcombine.low %v817, %v820
      %v1143 = vunpack.c.l.s4 1983009808
      %v1144 = vunpack.c.0.s8 %v1143
      %v1145 = vlaneseq
      %v1146 = vshrl.u32 %v1145, 7
      %v1147 = vsub.s32 %v1144, %v1146
      %v1148 = vrot.slane %v1140, %v1147
      %v1150 = vunpack.c.l.s4 1983009808
      %v1151 = vunpack.c.0.s8 %v1150
      %v1152 = vlaneseq
      %v1153 = vshrl.u32 %v1152, 7
      %v1154 = vsub.s32 %v1151, %v1153
      %v1155 = vrot.slane %v1141, %v1154
      %v1156 = vcombine.low %v1148, %v1155
      %v1157 = vcombine.low %v823, %v826
      %v1158 = vcombine.low %v829, %v832
      %v1160 = vunpack.c.l.s4 1983009808
      %v1161 = vunpack.c.0.s8 %v1160
      %v1162 = vlaneseq
      %v1163 = vshrl.u32 %v1162, 7
      %v1164 = vsub.s32 %v1161, %v1163
      %v1165 = vrot.slane %v1157, %v1164
      %v1167 = vunpack.c.l.s4 1983009808
      %v1168 = vunpack.c.0.s8 %v1167
      %v1169 = vlaneseq
      %v1170 = vshrl.u32 %v1169, 7
      %v1171 = vsub.s32 %v1168, %v1170
      %v1172 = vrot.slane %v1158, %v1171
      %v1173 = vcombine.low %v1165, %v1172
      %v1174 = vcombine.low %v836, %v839
      %v1175 = vcombine.low %v842, %v845
      %v1177 = vunpack.c.l.s4 1983009808
      %v1178 = vunpack.c.0.s8 %v1177
      %v1179 = vlaneseq
      %v1180 = vshrl.u32 %v1179, 7
      %v1181 = vsub.s32 %v1178, %v1180
      %v1182 = vrot.slane %v1174, %v1181
      %v1184 = vunpack.c.l.s4 1983009808
      %v1185 = vunpack.c.0.s8 %v1184
      %v1186 = vlaneseq
      %v1187 = vshrl.u32 %v1186, 7
      %v1188 = vsub.s32 %v1185, %v1187
      %v1189 = vrot.slane %v1175, %v1188
      %v1190 = vcombine.low %v1182, %v1189
      %v1191 = vcombine.low %v848, %v851
      %v1192 = vcombine.low %v854, %v858
      %v1194 = vunpack.c.l.s4 1983009808
      %v1195 = vunpack.c.0.s8 %v1194
      %v1196 = vlaneseq
      %v1197 = vshrl.u32 %v1196, 7
      %v1198 = vsub.s32 %v1195, %v1197
      %v1199 = vrot.slane %v1191, %v1198
      %v1201 = vunpack.c.l.s4 1983009808
      %v1202 = vunpack.c.0.s8 %v1201
      %v1203 = vlaneseq
      %v1204 = vshrl.u32 %v1203, 7
      %v1205 = vsub.s32 %v1202, %v1204
      %v1206 = vrot.slane %v1192, %v1205
      %v1207 = vcombine.low %v1199, %v1206
      %v1208 = vcombine.low %v861, %v864
      %v1209 = vcombine.low %v867, %v870
      %v1211 = vunpack.c.l.s4 1983009808
      %v1212 = vunpack.c.0.s8 %v1211
      %v1213 = vlaneseq
      %v1214 = vshrl.u32 %v1213, 7
      %v1215 = vsub.s32 %v1212, %v1214
      %v1216 = vrot.slane %v1208, %v1215
      %v1218 = vunpack.c.l.s4 1983009808
      %v1219 = vunpack.c.0.s8 %v1218
      %v1220 = vlaneseq
      %v1221 = vshrl.u32 %v1220, 7
      %v1222 = vsub.s32 %v1219, %v1221
      %v1223 = vrot.slane %v1209, %v1222
      %v1224 = vcombine.low %v1216, %v1223
      %v1225 = vcombine.low %v873, %v876
      %v1226 = vcombine.low %v880, %v883
      %v1228 = vunpack.c.l.s4 1983009808
      %v1229 = vunpack.c.0.s8 %v1228
      %v1230 = vlaneseq
      %v1231 = vshrl.u32 %v1230, 7
      %v1232 = vsub.s32 %v1229, %v1231
      %v1233 = vrot.slane %v1225, %v1232
      %v1235 = vunpack.c.l.s4 1983009808
      %v1236 = vunpack.c.0.s8 %v1235
      %v1237 = vlaneseq
      %v1238 = vshrl.u32 %v1237, 7
      %v1239 = vsub.s32 %v1236, %v1238
      %v1240 = vrot.slane %v1226, %v1239
      %v1241 = vcombine.low %v1233, %v1240
      %v1242 = vcombine.low %v886, %v889
      %v1243 = vcombine.low %v892, %v895
      %v1245 = vunpack.c.l.s4 1983009808
      %v1246 = vunpack.c.0.s8 %v1245
      %v1247 = vlaneseq
      %v1248 = vshrl.u32 %v1247, 7
      %v1249 = vsub.s32 %v1246, %v1248
      %v1250 = vrot.slane %v1242, %v1249
      %v1252 = vunpack.c.l.s4 1983009808
      %v1253 = vunpack.c.0.s8 %v1252
      %v1254 = vlaneseq
      %v1255 = vshrl.u32 %v1254, 7
      %v1256 = vsub.s32 %v1253, %v1255
      %v1257 = vrot.slane %v1243, %v1256
      %v1258 = vcombine.low %v1250, %v1257
      %v1259 = vcombine.low %v898, %v902
      %v1260 = vcombine.low %v905, %v908
      %v1262 = vunpack.c.l.s4 1983009808
      %v1263 = vunpack.c.0.s8 %v1262
      %v1264 = vlaneseq
      %v1265 = vshrl.u32 %v1264, 7
      %v1266 = vsub.s32 %v1263, %v1265
      %v1267 = vrot.slane %v1259, %v1266
      %v1269 = vunpack.c.l.s4 1983009808
      %v1270 = vunpack.c.0.s8 %v1269
      %v1271 = vlaneseq
      %v1272 = vshrl.u32 %v1271, 7
      %v1273 = vsub.s32 %v1270, %v1272
      %v1274 = vrot.slane %v1260, %v1273
      %v1275 = vcombine.low %v1267, %v1274
      %v1276 = vcombine.low %v911, %v914
      %v1277 = vcombine.low %v917, %v920
      %v1279 = vunpack.c.l.s4 1983009808
      %v1280 = vunpack.c.0.s8 %v1279
      %v1281 = vlaneseq
      %v1282 = vshrl.u32 %v1281, 7
      %v1283 = vsub.s32 %v1280, %v1282
      %v1284 = vrot.slane %v1276, %v1283
      %v1286 = vunpack.c.l.s4 1983009808
      %v1287 = vunpack.c.0.s8 %v1286
      %v1288 = vlaneseq
      %v1289 = vshrl.u32 %v1288, 7
      %v1290 = vsub.s32 %v1287, %v1289
      %v1291 = vrot.slane %v1277, %v1290
      %v1292 = vcombine.low %v1284, %v1291
      %v1293 = vcombine.low %v924, %v927
      %v1294 = vcombine.low %v930, %v933
      %v1296 = vunpack.c.l.s4 1983009808
      %v1297 = vunpack.c.0.s8 %v1296
      %v1298 = vlaneseq
      %v1299 = vshrl.u32 %v1298, 7
      %v1300 = vsub.s32 %v1297, %v1299
      %v1301 = vrot.slane %v1293, %v1300
      %v1303 = vunpack.c.l.s4 1983009808
      %v1304 = vunpack.c.0.s8 %v1303
      %v1305 = vlaneseq
      %v1306 = vshrl.u32 %v1305, 7
      %v1307 = vsub.s32 %v1304, %v1306
      %v1308 = vrot.slane %v1294, %v1307
      %v1309 = vcombine.low %v1301, %v1308
      %v1310 = vcombine.low %v936, %v939
      %v1311 = vcombine.low %v942, %v946
      %v1313 = vunpack.c.l.s4 1983009808
      %v1314 = vunpack.c.0.s8 %v1313
      %v1315 = vlaneseq
      %v1316 = vshrl.u32 %v1315, 7
      %v1317 = vsub.s32 %v1314, %v1316
      %v1318 = vrot.slane %v1310, %v1317
      %v1320 = vunpack.c.l.s4 1983009808
      %v1321 = vunpack.c.0.s8 %v1320
      %v1322 = vlaneseq
      %v1323 = vshrl.u32 %v1322, 7
      %v1324 = vsub.s32 %v1321, %v1323
      %v1325 = vrot.slane %v1311, %v1324
      %v1326 = vcombine.low %v1318, %v1325
      %v1327 = vcombine.low %v949, %v952
      %v1328 = vcombine.low %v955, %v958
      %v1330 = vunpack.c.l.s4 1983009808
      %v1331 = vunpack.c.0.s8 %v1330
      %v1332 = vlaneseq
      %v1333 = vshrl.u32 %v1332, 7
      %v1334 = vsub.s32 %v1331, %v1333
      %v1335 = vrot.slane %v1327, %v1334
      %v1337 = vunpack.c.l.s4 1983009808
      %v1338 = vunpack.c.0.s8 %v1337
      %v1339 = vlaneseq
      %v1340 = vshrl.u32 %v1339, 7
      %v1341 = vsub.s32 %v1338, %v1340
      %v1342 = vrot.slane %v1328, %v1341
      %v1343 = vcombine.low %v1335, %v1342
      %v1344 = vcombine.low %v961, %v964
      %v1345 = vcombine.low %v968, %v971
      %v1347 = vunpack.c.l.s4 1983009808
      %v1348 = vunpack.c.0.s8 %v1347
      %v1349 = vlaneseq
      %v1350 = vshrl.u32 %v1349, 7
      %v1351 = vsub.s32 %v1348, %v1350
      %v1352 = vrot.slane %v1344, %v1351
      %v1354 = vunpack.c.l.s4 1983009808
      %v1355 = vunpack.c.0.s8 %v1354
      %v1356 = vlaneseq
      %v1357 = vshrl.u32 %v1356, 7
      %v1358 = vsub.s32 %v1355, %v1357
      %v1359 = vrot.slane %v1345, %v1358
      %v1360 = vcombine.low %v1352, %v1359
      %v1361 = vcombine.low %v974, %v977
      %v1362 = vcombine.low %v980, %v983
      %v1364 = vunpack.c.l.s4 1983009808
      %v1365 = vunpack.c.0.s8 %v1364
      %v1366 = vlaneseq
      %v1367 = vshrl.u32 %v1366, 7
      %v1368 = vsub.s32 %v1365, %v1367
      %v1369 = vrot.slane %v1361, %v1368
      %v1371 = vunpack.c.l.s4 1983009808
      %v1372 = vunpack.c.0.s8 %v1371
      %v1373 = vlaneseq
      %v1374 = vshrl.u32 %v1373, 7
      %v1375 = vsub.s32 %v1372, %v1374
      %v1376 = vrot.slane %v1362, %v1375
      %v1377 = vcombine.low %v1369, %v1376
      %v1378 = vcombine.low %v986, %v990
      %v1379 = vcombine.low %v993, %v996
      %v1381 = vunpack.c.l.s4 1983009808
      %v1382 = vunpack.c.0.s8 %v1381
      %v1383 = vlaneseq
      %v1384 = vshrl.u32 %v1383, 7
      %v1385 = vsub.s32 %v1382, %v1384
      %v1386 = vrot.slane %v1378, %v1385
      %v1388 = vunpack.c.l.s4 1983009808
      %v1389 = vunpack.c.0.s8 %v1388
      %v1390 = vlaneseq
      %v1391 = vshrl.u32 %v1390, 7
      %v1392 = vsub.s32 %v1389, %v1391
      %v1393 = vrot.slane %v1379, %v1392
      %v1394 = vcombine.low %v1386, %v1393
      %v1395 = vcombine.low %v999, %v1002
      %v1396 = vcombine.low %v1005, %v1008
      %v1398 = vunpack.c.l.s4 1983009808
      %v1399 = vunpack.c.0.s8 %v1398
      %v1400 = vlaneseq
      %v1401 = vshrl.u32 %v1400, 7
      %v1402 = vsub.s32 %v1399, %v1401
      %v1403 = vrot.slane %v1395, %v1402
      %v1405 = vunpack.c.l.s4 1983009808
      %v1406 = vunpack.c.0.s8 %v1405
      %v1407 = vlaneseq
      %v1408 = vshrl.u32 %v1407, 7
      %v1409 = vsub.s32 %v1406, %v1408
      %v1410 = vrot.slane %v1396, %v1409
      %v1411 = vcombine.low %v1403, %v1410
      %v1412 = vcombine.low %v1012, %v1015
      %v1413 = vcombine.low %v1018, %v1021
      %v1415 = vunpack.c.l.s4 1983009808
      %v1416 = vunpack.c.0.s8 %v1415
      %v1417 = vlaneseq
      %v1418 = vshrl.u32 %v1417, 7
      %v1419 = vsub.s32 %v1416, %v1418
      %v1420 = vrot.slane %v1412, %v1419
      %v1422 = vunpack.c.l.s4 1983009808
      %v1423 = vunpack.c.0.s8 %v1422
      %v1424 = vlaneseq
      %v1425 = vshrl.u32 %v1424, 7
      %v1426 = vsub.s32 %v1423, %v1425
      %v1427 = vrot.slane %v1413, %v1426
      %v1428 = vcombine.low %v1420, %v1427
      %v1429 = vcombine.low %v1024, %v1027
      %v1430 = vcombine.low %v1030, %v1034
      %v1432 = vunpack.c.l.s4 1983009808
      %v1433 = vunpack.c.0.s8 %v1432
      %v1434 = vlaneseq
      %v1435 = vshrl.u32 %v1434, 7
      %v1436 = vsub.s32 %v1433, %v1435
      %v1437 = vrot.slane %v1429, %v1436
      %v1439 = vunpack.c.l.s4 1983009808
      %v1440 = vunpack.c.0.s8 %v1439
      %v1441 = vlaneseq
      %v1442 = vshrl.u32 %v1441, 7
      %v1443 = vsub.s32 %v1440, %v1442
      %v1444 = vrot.slane %v1430, %v1443
      %v1445 = vcombine.low %v1437, %v1444
      %v1446 = vcombine.low %v1037, %v1040
      %v1447 = vcombine.low %v1043, %v1046
      %v1449 = vunpack.c.l.s4 1983009808
      %v1450 = vunpack.c.0.s8 %v1449
      %v1451 = vlaneseq
      %v1452 = vshrl.u32 %v1451, 7
      %v1453 = vsub.s32 %v1450, %v1452
      %v1454 = vrot.slane %v1446, %v1453
      %v1456 = vunpack.c.l.s4 1983009808
      %v1457 = vunpack.c.0.s8 %v1456
      %v1458 = vlaneseq
      %v1459 = vshrl.u32 %v1458, 7
      %v1460 = vsub.s32 %v1457, %v1459
      %v1461 = vrot.slane %v1447, %v1460
      %v1462 = vcombine.low %v1454, %v1461
      %v1463 = vcombine.low %v1049, %v1052
      %v1465 = vunpack.c.l.s4 1983009808
      %v1466 = vunpack.c.0.s8 %v1465
      %v1467 = vlaneseq
      %v1468 = vshrl.u32 %v1467, 7
      %v1469 = vsub.s32 %v1466, %v1468
      %v1470 = vrot.slane %v1463, %v1469
      %vm1471 = vcmask 31744
      %v1472 = vsel %vm1471, %v1071, 0
      %v1474 = vsel %vm1471, %v1088, 0
      %v1476 = vsel %vm1471, %v1105, 0
      %v1478 = vsel %vm1471, %v1122, 0
      %v1480 = vsel %vm1471, %v1139, 0
      %v1482 = vsel %vm1471, %v1156, 0
      %v1484 = vsel %vm1471, %v1173, 0
      %v1486 = vsel %vm1471, %v1190, 0
      %v1488 = vsel %vm1471, %v1207, 0
      %v1490 = vsel %vm1471, %v1224, 0
      %v1492 = vsel %vm1471, %v1241, 0
      %v1494 = vsel %vm1471, %v1258, 0
      %v1496 = vsel %vm1471, %v1275, 0
      %v1498 = vsel %vm1471, %v1292, 0
      %v1500 = vsel %vm1471, %v1309, 0
      %v1502 = vsel %vm1471, %v1326, 0
      %v1504 = vsel %vm1471, %v1343, 0
      %v1506 = vsel %vm1471, %v1360, 0
      %v1508 = vsel %vm1471, %v1377, 0
      %v1510 = vsel %vm1471, %v1394, 0
      %v1512 = vsel %vm1471, %v1411, 0
      %v1514 = vsel %vm1471, %v1428, 0
      %v1516 = vsel %vm1471, %v1445, 0
      %v1518 = vsel %vm1471, %v1462, 0
      %v1520 = vsel %vm1471, %v1470, 0
      %vm1522 = vcmask 1043456
      %v1524 = vsel %vm1522, %v1054, 0
      %1526 = vmatprep.subr.mxu0 0.0
      %1527 = vmatpush1.msra.mxu0 %v1524
      %1528 = vmatprep.subr.mxu0 0.0
      %1529 = vmatpush1.msra.mxu0 0.0
      %1530 = vmatprep.subr.mxu0 0.0
      %1531 = vmatpush1.msra.mxu0 0.0
      %1532 = vmatprep.subr.mxu0 0.0
      %1533 = vmatpush1.msra.mxu0 0.0
      %1534 = vmatprep.subr.mxu0 0.0
      %1535 = vmatpush1.msra.mxu0 0.0
      %1536 = vmatprep.subr.mxu0 0.0
      %1537 = vmatpush1.msra.mxu0 0.0
      %1538 = vmatprep.subr.mxu0 0.0
      %1539 = vmatpush1.msra.mxu0 0.0
      %1540 = vmatprep.subr.mxu0 0.0
      %1541 = vmatpush1.msra.mxu0 0.0
      %1542 = vmatprep.subr.mxu0 0.0
      %1543 = vmatpush1.msra.mxu0 0.0
      %1544 = vmatprep.subr.mxu0 0.0
      %1545 = vmatpush1.msra.mxu0 0.0
      %1546 = vmatprep.subr.mxu0 0.0
      %1547 = vmatpush1.msra.mxu0 0.0
      %1548 = vmatprep.subr.mxu0 0.0
      %1549 = vmatpush1.msra.mxu0 0.0
      %1550 = vmatprep.subr.mxu0 0.0
      %1551 = vmatpush1.msra.mxu0 0.0
      %1552 = vmatprep.subr.mxu0 0.0
      %1553 = vmatpush1.msra.mxu0 0.0
      %1554 = vmatprep.subr.mxu0 0.0
      %1555 = vmatpush1.msra.mxu0 0.0
      %1556 = vmatprep.subr.mxu0 0.0
      %1557 = vmatpush1.msra.mxu0 0.0
      %1558 = vmatprep.subr.mxu0 0.0
      %1559 = vmatpush1.msra.mxu0 0.0
      %1560 = vmatprep.subr.mxu0 0.0
      %1561 = vmatpush1.msra.mxu0 0.0
      %1562 = vmatprep.subr.mxu0 0.0
      %1563 = vmatpush1.msra.mxu0 0.0
      %1564 = vmatprep.subr.mxu0 0.0
      %1565 = vmatpush1.msra.mxu0 0.0
      %1566 = vmatprep.subr.mxu0 0.0
      %1567 = vmatpush1.msra.mxu0 0.0
      %1568 = vmatprep.subr.mxu0 0.0
      %1569 = vmatpush1.msra.mxu0 0.0
      %1570 = vmatprep.subr.mxu0 0.0
      %1571 = vmatpush1.msra.mxu0 0.0
      %1572 = vmatprep.subr.mxu0 0.0
      %1573 = vmatpush1.msra.mxu0 0.0
      %1574 = vmatprep.subr.mxu0 0.0
      %1575 = vmatpush1.msra.mxu0 0.0
      %1576 = vmatprep.subr.mxu0 0.0
      %1577 = vmatpush1.msra.mxu0 0.0
      %1578 = vmatprep.subr.mxu0 0.0
      %1579 = vmatpush1.msra.mxu0 0.0
      %1580 = vmatprep.subr.mxu0 0.0
      %1581 = vmatpush1.msra.mxu0 0.0
      %1582 = vmatprep.subr.mxu0 0.0
      %1583 = vmatpush1.msra.mxu0 0.0
      %1584 = vmatprep.subr.mxu0 0.0
      %1585 = vmatpush1.msra.mxu0 0.0
      %1586 = vmatprep.subr.mxu0 0.0
      %1587 = vmatpush1.msra.mxu0 0.0
      %1588 = vmatprep.subr.mxu0 0.0
      %1589 = vmatpush1.msra.mxu0 0.0
      %1590 = vmatprep.mubr.f32.mxu0 0.0
      %1591 = vmatmul.mubr.f32.gmra.mrb[0].mxu0 %v1472
      %v1592 = vpop.f32.mrb[0].mxu0
      %v1593 = vadd.f32 0.0, %v1592
      %v1594 = vpop.f32.mrb[0].mxu0
      %1595 = vmatprep.mubr.f32.mxu0 0.0
      %1596 = vmatmul.mubr.f32.gmra.mrb[0].mxu0 %v1474
      %v1597 = vpop.f32.mrb[0].mxu0
      %v1598 = vadd.f32 0.0, %v1597
      %v1599 = vpop.f32.mrb[0].mxu0
      %1600 = vmatprep.mubr.f32.mxu0 0.0
      %1601 = vmatmul.mubr.f32.gmra.mrb[0].mxu0 %v1476
      %v1602 = vpop.f32.mrb[0].mxu0
      %v1603 = vadd.f32 0.0, %v1602
      %v1604 = vpop.f32.mrb[0].mxu0
      %1605 = vmatprep.mubr.f32.mxu0 0.0
      %1606 = vmatmul.mubr.f32.gmra.mrb[0].mxu0 %v1478
      %v1607 = vpop.f32.mrb[0].mxu0
      %v1608 = vadd.f32 0.0, %v1607
      %v1609 = vpop.f32.mrb[0].mxu0
      %1610 = vmatprep.mubr.f32.mxu0 0.0
      %1611 = vmatmul.mubr.f32.gmra.mrb[0].mxu0 %v1480
      %v1612 = vpop.f32.mrb[0].mxu0
      %v1613 = vadd.f32 0.0, %v1612
      %v1614 = vpop.f32.mrb[0].mxu0
      %1615 = vmatprep.mubr.f32.mxu0 0.0
      %1616 = vmatmul.mubr.f32.gmra.mrb[0].mxu0 %v1482
      %v1617 = vpop.f32.mrb[0].mxu0
      %v1618 = vadd.f32 0.0, %v1617
      %v1619 = vpop.f32.mrb[0].mxu0
      %1620 = vmatprep.mubr.f32.mxu0 0.0
      %1621 = vmatmul.mubr.f32.gmra.mrb[0].mxu0 %v1484
      %v1622 = vpop.f32.mrb[0].mxu0
      %v1623 = vadd.f32 0.0, %v1622
      %v1624 = vpop.f32.mrb[0].mxu0
      %1625 = vmatprep.mubr.f32.mxu0 0.0
      %1626 = vmatmul.mubr.f32.gmra.mrb[0].mxu0 %v1486
      %v1627 = vpop.f32.mrb[0].mxu0
      %v1628 = vadd.f32 0.0, %v1627
      %v1629 = vpop.f32.mrb[0].mxu0
      %1630 = vmatprep.mubr.f32.mxu0 0.0
      %1631 = vmatmul.mubr.f32.gmra.mrb[0].mxu0 %v1488
      %v1632 = vpop.f32.mrb[0].mxu0
      %v1633 = vadd.f32 0.0, %v1632
      %v1634 = vpop.f32.mrb[0].mxu0
      %1635 = vmatprep.mubr.f32.mxu0 0.0
      %1636 = vmatmul.mubr.f32.gmra.mrb[0].mxu0 %v1490
      %v1637 = vpop.f32.mrb[0].mxu0
      %v1638 = vadd.f32 0.0, %v1637
      %v1639 = vpop.f32.mrb[0].mxu0
      %1640 = vmatprep.mubr.f32.mxu0 0.0
      %1641 = vmatmul.mubr.f32.gmra.mrb[0].mxu0 %v1492
      %v1642 = vpop.f32.mrb[0].mxu0
      %v1643 = vadd.f32 0.0, %v1642
      %v1644 = vpop.f32.mrb[0].mxu0
      %1645 = vmatprep.mubr.f32.mxu0 0.0
      %1646 = vmatmul.mubr.f32.gmra.mrb[0].mxu0 %v1494
      %v1647 = vpop.f32.mrb[0].mxu0
      %v1648 = vadd.f32 0.0, %v1647
      %v1649 = vpop.f32.mrb[0].mxu0
      %1650 = vmatprep.mubr.f32.mxu0 0.0
      %1651 = vmatmul.mubr.f32.gmra.mrb[0].mxu0 %v1496
      %v1652 = vpop.f32.mrb[0].mxu0
      %v1653 = vadd.f32 0.0, %v1652
      %v1654 = vpop.f32.mrb[0].mxu0
      %1655 = vmatprep.mubr.f32.mxu0 0.0
      %1656 = vmatmul.mubr.f32.gmra.mrb[0].mxu0 %v1498
      %v1657 = vpop.f32.mrb[0].mxu0
      %v1658 = vadd.f32 0.0, %v1657
      %v1659 = vpop.f32.mrb[0].mxu0
      %1660 = vmatprep.mubr.f32.mxu0 0.0
      %1661 = vmatmul.mubr.f32.gmra.mrb[0].mxu0 %v1500
      %v1662 = vpop.f32.mrb[0].mxu0
      %v1663 = vadd.f32 0.0, %v1662
      %v1664 = vpop.f32.mrb[0].mxu0
      %1665 = vmatprep.mubr.f32.mxu0 0.0
      %1666 = vmatmul.mubr.f32.gmra.mrb[0].mxu0 %v1502
      %v1667 = vpop.f32.mrb[0].mxu0
      %v1668 = vadd.f32 0.0, %v1667
      %v1669 = vpop.f32.mrb[0].mxu0
      %1670 = vmatprep.mubr.f32.mxu0 0.0
      %1671 = vmatmul.mubr.f32.gmra.mrb[0].mxu0 %v1504
      %v1672 = vpop.f32.mrb[0].mxu0
      %v1673 = vadd.f32 0.0, %v1672
      %v1674 = vpop.f32.mrb[0].mxu0
      %1675 = vmatprep.mubr.f32.mxu0 0.0
      %1676 = vmatmul.mubr.f32.gmra.mrb[0].mxu0 %v1506
      %v1677 = vpop.f32.mrb[0].mxu0
      %v1678 = vadd.f32 0.0, %v1677
      %v1679 = vpop.f32.mrb[0].mxu0
      %1680 = vmatprep.mubr.f32.mxu0 0.0
      %1681 = vmatmul.mubr.f32.gmra.mrb[0].mxu0 %v1508
      %v1682 = vpop.f32.mrb[0].mxu0
      %v1683 = vadd.f32 0.0, %v1682
      %v1684 = vpop.f32.mrb[0].mxu0
      %1685 = vmatprep.mubr.f32.mxu0 0.0
      %1686 = vmatmul.mubr.f32.gmra.mrb[0].mxu0 %v1510
      %v1687 = vpop.f32.mrb[0].mxu0
      %v1688 = vadd.f32 0.0, %v1687
      %v1689 = vpop.f32.mrb[0].mxu0
      %1690 = vmatprep.mubr.f32.mxu0 0.0
      %1691 = vmatmul.mubr.f32.gmra.mrb[0].mxu0 %v1512
      %v1692 = vpop.f32.mrb[0].mxu0
      %v1693 = vadd.f32 0.0, %v1692
      %v1694 = vpop.f32.mrb[0].mxu0
      %1695 = vmatprep.mubr.f32.mxu0 0.0
      %1696 = vmatmul.mubr.f32.gmra.mrb[0].mxu0 %v1514
      %v1697 = vpop.f32.mrb[0].mxu0
      %v1698 = vadd.f32 0.0, %v1697
      %v1699 = vpop.f32.mrb[0].mxu0
      %1700 = vmatprep.mubr.f32.mxu0 0.0
      %1701 = vmatmul.mubr.f32.gmra.mrb[0].mxu0 %v1516
      %v1702 = vpop.f32.mrb[0].mxu0
      %v1703 = vadd.f32 0.0, %v1702
      %v1704 = vpop.f32.mrb[0].mxu0
      %1705 = vmatprep.mubr.f32.mxu0 0.0
      %1706 = vmatmul.mubr.f32.gmra.mrb[0].mxu0 %v1518
      %v1707 = vpop.f32.mrb[0].mxu0
      %v1708 = vadd.f32 0.0, %v1707
      %v1709 = vpop.f32.mrb[0].mxu0
      %1710 = vmatprep.mubr.f32.mxu0 0.0
      %1711 = vmatmul.mubr.f32.gmra.mrb[0].mxu0 %v1520
      %v1712 = vpop.f32.mrb[0].mxu0
      %v1713 = vadd.f32 0.0, %v1712
      %v1714 = vpop.f32.mrb[0].mxu0
      %1715 = vdwg.mxu0
      %v1716 = vcombine.low %v268, %v276
      %v1717 = vcombine.low %v275, %v277
      %v1719 = vunpack.c.l.s4 1983009808
      %v1720 = vunpack.c.0.s8 %v1719
      %v1721 = vlaneseq
      %v1722 = vshrl.u32 %v1721, 7
      %v1723 = vsub.s32 %v1720, %v1722
      %v1724 = vrot.slane %v1716, %v1723
      %v1726 = vunpack.c.l.s4 1983009808
      %v1727 = vunpack.c.0.s8 %v1726
      %v1728 = vlaneseq
      %v1729 = vshrl.u32 %v1728, 7
      %v1730 = vsub.s32 %v1727, %v1729
      %v1731 = vrot.slane %v1717, %v1730
      %v1732 = vcombine.low %v1724, %v1731
      %v1733 = vcombine.low %v285, %v293
      %v1734 = vcombine.low %v292, %v301
      %v1736 = vunpack.c.l.s4 1983009808
      %v1737 = vunpack.c.0.s8 %v1736
      %v1738 = vlaneseq
      %v1739 = vshrl.u32 %v1738, 7
      %v1740 = vsub.s32 %v1737, %v1739
      %v1741 = vrot.slane %v1733, %v1740
      %v1743 = vunpack.c.l.s4 1983009808
      %v1744 = vunpack.c.0.s8 %v1743
      %v1745 = vlaneseq
      %v1746 = vshrl.u32 %v1745, 7
      %v1747 = vsub.s32 %v1744, %v1746
      %v1748 = vrot.slane %v1734, %v1747
      %v1749 = vcombine.low %v1741, %v1748
      %v1750 = vcombine.low %v309, %v308
      %v1751 = vcombine.low %v310, %v318
      %v1753 = vunpack.c.l.s4 1983009808
      %v1754 = vunpack.c.0.s8 %v1753
      %v1755 = vlaneseq
      %v1756 = vshrl.u32 %v1755, 7
      %v1757 = vsub.s32 %v1754, %v1756
      %v1758 = vrot.slane %v1750, %v1757
      %v1760 = vunpack.c.l.s4 1983009808
      %v1761 = vunpack.c.0.s8 %v1760
      %v1762 = vlaneseq
      %v1763 = vshrl.u32 %v1762, 7
      %v1764 = vsub.s32 %v1761, %v1763
      %v1765 = vrot.slane %v1751, %v1764
      %v1766 = vcombine.low %v1758, %v1765
      %v1767 = vcombine.low %v326, %v325
      %v1768 = vcombine.low %v334, %v342
      %v1770 = vunpack.c.l.s4 1983009808
      %v1771 = vunpack.c.0.s8 %v1770
      %v1772 = vlaneseq
      %v1773 = vshrl.u32 %v1772, 7
      %v1774 = vsub.s32 %v1771, %v1773
      %v1775 = vrot.slane %v1767, %v1774
      %v1777 = vunpack.c.l.s4 1983009808
      %v1778 = vunpack.c.0.s8 %v1777
      %v1779 = vlaneseq
      %v1780 = vshrl.u32 %v1779, 7
      %v1781 = vsub.s32 %v1778, %v1780
      %v1782 = vrot.slane %v1768, %v1781
      %v1783 = vcombine.low %v1775, %v1782
      %v1784 = vcombine.low %v341, %v343
      %v1785 = vcombine.low %v351, %v359
      %v1787 = vunpack.c.l.s4 1983009808
      %v1788 = vunpack.c.0.s8 %v1787
      %v1789 = vlaneseq
      %v1790 = vshrl.u32 %v1789, 7
      %v1791 = vsub.s32 %v1788, %v1790
      %v1792 = vrot.slane %v1784, %v1791
      %v1794 = vunpack.c.l.s4 1983009808
      %v1795 = vunpack.c.0.s8 %v1794
      %v1796 = vlaneseq
      %v1797 = vshrl.u32 %v1796, 7
      %v1798 = vsub.s32 %v1795, %v1797
      %v1799 = vrot.slane %v1785, %v1798
      %v1800 = vcombine.low %v1792, %v1799
      %v1801 = vcombine.low %v358, %v367
      %v1802 = vcombine.low %v375, %v374
      %v1804 = vunpack.c.l.s4 1983009808
      %v1805 = vunpack.c.0.s8 %v1804
      %v1806 = vlaneseq
      %v1807 = vshrl.u32 %v1806, 7
      %v1808 = vsub.s32 %v1805, %v1807
      %v1809 = vrot.slane %v1801, %v1808
      %v1811 = vunpack.c.l.s4 1983009808
      %v1812 = vunpack.c.0.s8 %v1811
      %v1813 = vlaneseq
      %v1814 = vshrl.u32 %v1813, 7
      %v1815 = vsub.s32 %v1812, %v1814
      %v1816 = vrot.slane %v1802, %v1815
      %v1817 = vcombine.low %v1809, %v1816
      %v1818 = vcombine.low %v376, %v384
      %v1819 = vcombine.low %v392, %v391
      %v1821 = vunpack.c.l.s4 1983009808
      %v1822 = vunpack.c.0.s8 %v1821
      %v1823 = vlaneseq
      %v1824 = vshrl.u32 %v1823, 7
      %v1825 = vsub.s32 %v1822, %v1824
      %v1826 = vrot.slane %v1818, %v1825
      %v1828 = vunpack.c.l.s4 1983009808
      %v1829 = vunpack.c.0.s8 %v1828
      %v1830 = vlaneseq
      %v1831 = vshrl.u32 %v1830, 7
      %v1832 = vsub.s32 %v1829, %v1831
      %v1833 = vrot.slane %v1819, %v1832
      %v1834 = vcombine.low %v1826, %v1833
      %v1835 = vcombine.low %v400, %v408
      %v1836 = vcombine.low %v407, %v409
      %v1838 = vunpack.c.l.s4 1983009808
      %v1839 = vunpack.c.0.s8 %v1838
      %v1840 = vlaneseq
      %v1841 = vshrl.u32 %v1840, 7
      %v1842 = vsub.s32 %v1839, %v1841
      %v1843 = vrot.slane %v1835, %v1842
      %v1845 = vunpack.c.l.s4 1983009808
      %v1846 = vunpack.c.0.s8 %v1845
      %v1847 = vlaneseq
      %v1848 = vshrl.u32 %v1847, 7
      %v1849 = vsub.s32 %v1846, %v1848
      %v1850 = vrot.slane %v1836, %v1849
      %v1851 = vcombine.low %v1843, %v1850
      %v1852 = vcombine.low %v417, %v425
      %v1853 = vcombine.low %v424, %v433
      %v1855 = vunpack.c.l.s4 1983009808
      %v1856 = vunpack.c.0.s8 %v1855
      %v1857 = vlaneseq
      %v1858 = vshrl.u32 %v1857, 7
      %v1859 = vsub.s32 %v1856, %v1858
      %v1860 = vrot.slane %v1852, %v1859
      %v1862 = vunpack.c.l.s4 1983009808
      %v1863 = vunpack.c.0.s8 %v1862
      %v1864 = vlaneseq
      %v1865 = vshrl.u32 %v1864, 7
      %v1866 = vsub.s32 %v1863, %v1865
      %v1867 = vrot.slane %v1853, %v1866
      %v1868 = vcombine.low %v1860, %v1867
      %v1869 = vcombine.low %v441, %v440
      %v1870 = vcombine.low %v442, %v450
      %v1872 = vunpack.c.l.s4 1983009808
      %v1873 = vunpack.c.0.s8 %v1872
      %v1874 = vlaneseq
      %v1875 = vshrl.u32 %v1874, 7
      %v1876 = vsub.s32 %v1873, %v1875
      %v1877 = vrot.slane %v1869, %v1876
      %v1879 = vunpack.c.l.s4 1983009808
      %v1880 = vunpack.c.0.s8 %v1879
      %v1881 = vlaneseq
      %v1882 = vshrl.u32 %v1881, 7
      %v1883 = vsub.s32 %v1880, %v1882
      %v1884 = vrot.slane %v1870, %v1883
      %v1885 = vcombine.low %v1877, %v1884
      %v1886 = vcombine.low %v458, %v457
      %v1887 = vcombine.low %v466, %v474
      %v1889 = vunpack.c.l.s4 1983009808
      %v1890 = vunpack.c.0.s8 %v1889
      %v1891 = vlaneseq
      %v1892 = vshrl.u32 %v1891, 7
      %v1893 = vsub.s32 %v1890, %v1892
      %v1894 = vrot.slane %v1886, %v1893
      %v1896 = vunpack.c.l.s4 1983009808
      %v1897 = vunpack.c.0.s8 %v1896
      %v1898 = vlaneseq
      %v1899 = vshrl.u32 %v1898, 7
      %v1900 = vsub.s32 %v1897, %v1899
      %v1901 = vrot.slane %v1887, %v1900
      %v1902 = vcombine.low %v1894, %v1901
      %v1903 = vcombine.low %v473, %v475
      %v1904 = vcombine.low %v483, %v491
      %v1906 = vunpack.c.l.s4 1983009808
      %v1907 = vunpack.c.0.s8 %v1906
      %v1908 = vlaneseq
      %v1909 = vshrl.u32 %v1908, 7
      %v1910 = vsub.s32 %v1907, %v1909
      %v1911 = vrot.slane %v1903, %v1910
      %v1913 = vunpack.c.l.s4 1983009808
      %v1914 = vunpack.c.0.s8 %v1913
      %v1915 = vlaneseq
      %v1916 = vshrl.u32 %v1915, 7
      %v1917 = vsub.s32 %v1914, %v1916
      %v1918 = vrot.slane %v1904, %v1917
      %v1919 = vcombine.low %v1911, %v1918
      %v1920 = vcombine.low %v490, %v499
      %v1921 = vcombine.low %v507, %v506
      %v1923 = vunpack.c.l.s4 1983009808
      %v1924 = vunpack.c.0.s8 %v1923
      %v1925 = vlaneseq
      %v1926 = vshrl.u32 %v1925, 7
      %v1927 = vsub.s32 %v1924, %v1926
      %v1928 = vrot.slane %v1920, %v1927
      %v1930 = vunpack.c.l.s4 1983009808
      %v1931 = vunpack.c.0.s8 %v1930
      %v1932 = vlaneseq
      %v1933 = vshrl.u32 %v1932, 7
      %v1934 = vsub.s32 %v1931, %v1933
      %v1935 = vrot.slane %v1921, %v1934
      %v1936 = vcombine.low %v1928, %v1935
      %v1937 = vcombine.low %v508, %v516
      %v1938 = vcombine.low %v524, %v523
      %v1940 = vunpack.c.l.s4 1983009808
      %v1941 = vunpack.c.0.s8 %v1940
      %v1942 = vlaneseq
      %v1943 = vshrl.u32 %v1942, 7
      %v1944 = vsub.s32 %v1941, %v1943
      %v1945 = vrot.slane %v1937, %v1944
      %v1947 = vunpack.c.l.s4 1983009808
      %v1948 = vunpack.c.0.s8 %v1947
      %v1949 = vlaneseq
      %v1950 = vshrl.u32 %v1949, 7
      %v1951 = vsub.s32 %v1948, %v1950
      %v1952 = vrot.slane %v1938, %v1951
      %v1953 = vcombine.low %v1945, %v1952
      %v1954 = vcombine.low %v532, %v540
      %v1955 = vcombine.low %v539, %v541
      %v1957 = vunpack.c.l.s4 1983009808
      %v1958 = vunpack.c.0.s8 %v1957
      %v1959 = vlaneseq
      %v1960 = vshrl.u32 %v1959, 7
      %v1961 = vsub.s32 %v1958, %v1960
      %v1962 = vrot.slane %v1954, %v1961
      %v1964 = vunpack.c.l.s4 1983009808
      %v1965 = vunpack.c.0.s8 %v1964
      %v1966 = vlaneseq
      %v1967 = vshrl.u32 %v1966, 7
      %v1968 = vsub.s32 %v1965, %v1967
      %v1969 = vrot.slane %v1955, %v1968
      %v1970 = vcombine.low %v1962, %v1969
      %v1971 = vcombine.low %v549, %v557
      %v1972 = vcombine.low %v556, %v565
      %v1974 = vunpack.c.l.s4 1983009808
      %v1975 = vunpack.c.0.s8 %v1974
      %v1976 = vlaneseq
      %v1977 = vshrl.u32 %v1976, 7
      %v1978 = vsub.s32 %v1975, %v1977
      %v1979 = vrot.slane %v1971, %v1978
      %v1981 = vunpack.c.l.s4 1983009808
      %v1982 = vunpack.c.0.s8 %v1981
      %v1983 = vlaneseq
      %v1984 = vshrl.u32 %v1983, 7
      %v1985 = vsub.s32 %v1982, %v1984
      %v1986 = vrot.slane %v1972, %v1985
      %v1987 = vcombine.low %v1979, %v1986
      %v1988 = vcombine.low %v573, %v572
      %v1989 = vcombine.low %v574, %v582
      %v1991 = vunpack.c.l.s4 1983009808
      %v1992 = vunpack.c.0.s8 %v1991
      %v1993 = vlaneseq
      %v1994 = vshrl.u32 %v1993, 7
      %v1995 = vsub.s32 %v1992, %v1994
      %v1996 = vrot.slane %v1988, %v1995
      %v1998 = vunpack.c.l.s4 1983009808
      %v1999 = vunpack.c.0.s8 %v1998
      %v2000 = vlaneseq
      %v2001 = vshrl.u32 %v2000, 7
      %v2002 = vsub.s32 %v1999, %v2001
      %v2003 = vrot.slane %v1989, %v2002
      %v2004 = vcombine.low %v1996, %v2003
      %v2005 = vcombine.low %v590, %v589
      %v2006 = vcombine.low %v598, %v606
      %v2008 = vunpack.c.l.s4 1983009808
      %v2009 = vunpack.c.0.s8 %v2008
      %v2010 = vlaneseq
      %v2011 = vshrl.u32 %v2010, 7
      %v2012 = vsub.s32 %v2009, %v2011
      %v2013 = vrot.slane %v2005, %v2012
      %v2015 = vunpack.c.l.s4 1983009808
      %v2016 = vunpack.c.0.s8 %v2015
      %v2017 = vlaneseq
      %v2018 = vshrl.u32 %v2017, 7
      %v2019 = vsub.s32 %v2016, %v2018
      %v2020 = vrot.slane %v2006, %v2019
      %v2021 = vcombine.low %v2013, %v2020
      %v2022 = vcombine.low %v605, %v607
      %v2023 = vcombine.low %v615, %v623
      %v2025 = vunpack.c.l.s4 1983009808
      %v2026 = vunpack.c.0.s8 %v2025
      %v2027 = vlaneseq
      %v2028 = vshrl.u32 %v2027, 7
      %v2029 = vsub.s32 %v2026, %v2028
      %v2030 = vrot.slane %v2022, %v2029
      %v2032 = vunpack.c.l.s4 1983009808
      %v2033 = vunpack.c.0.s8 %v2032
      %v2034 = vlaneseq
      %v2035 = vshrl.u32 %v2034, 7
      %v2036 = vsub.s32 %v2033, %v2035
      %v2037 = vrot.slane %v2023, %v2036
      %v2038 = vcombine.low %v2030, %v2037
      %v2039 = vcombine.low %v622, %v631
      %v2040 = vcombine.low %v639, %v638
      %v2042 = vunpack.c.l.s4 1983009808
      %v2043 = vunpack.c.0.s8 %v2042
      %v2044 = vlaneseq
      %v2045 = vshrl.u32 %v2044, 7
      %v2046 = vsub.s32 %v2043, %v2045
      %v2047 = vrot.slane %v2039, %v2046
      %v2049 = vunpack.c.l.s4 1983009808
      %v2050 = vunpack.c.0.s8 %v2049
      %v2051 = vlaneseq
      %v2052 = vshrl.u32 %v2051, 7
      %v2053 = vsub.s32 %v2050, %v2052
      %v2054 = vrot.slane %v2040, %v2053
      %v2055 = vcombine.low %v2047, %v2054
      %v2056 = vcombine.low %v640, %v648
      %v2057 = vcombine.low %v656, %v655
      %v2059 = vunpack.c.l.s4 1983009808
      %v2060 = vunpack.c.0.s8 %v2059
      %v2061 = vlaneseq
      %v2062 = vshrl.u32 %v2061, 7
      %v2063 = vsub.s32 %v2060, %v2062
      %v2064 = vrot.slane %v2056, %v2063
      %v2066 = vunpack.c.l.s4 1983009808
      %v2067 = vunpack.c.0.s8 %v2066
      %v2068 = vlaneseq
      %v2069 = vshrl.u32 %v2068, 7
      %v2070 = vsub.s32 %v2067, %v2069
      %v2071 = vrot.slane %v2057, %v2070
      %v2072 = vcombine.low %v2064, %v2071
      %v2073 = vcombine.low %v664, %v672
      %v2074 = vcombine.low %v671, %v673
      %v2076 = vunpack.c.l.s4 1983009808
      %v2077 = vunpack.c.0.s8 %v2076
      %v2078 = vlaneseq
      %v2079 = vshrl.u32 %v2078, 7
      %v2080 = vsub.s32 %v2077, %v2079
      %v2081 = vrot.slane %v2073, %v2080
      %v2083 = vunpack.c.l.s4 1983009808
      %v2084 = vunpack.c.0.s8 %v2083
      %v2085 = vlaneseq
      %v2086 = vshrl.u32 %v2085, 7
      %v2087 = vsub.s32 %v2084, %v2086
      %v2088 = vrot.slane %v2074, %v2087
      %v2089 = vcombine.low %v2081, %v2088
      %v2090 = vcombine.low %v681, %v689
      %v2091 = vcombine.low %v688, %v697
      %v2093 = vunpack.c.l.s4 1983009808
      %v2094 = vunpack.c.0.s8 %v2093
      %v2095 = vlaneseq
      %v2096 = vshrl.u32 %v2095, 7
      %v2097 = vsub.s32 %v2094, %v2096
      %v2098 = vrot.slane %v2090, %v2097
      %v2100 = vunpack.c.l.s4 1983009808
      %v2101 = vunpack.c.0.s8 %v2100
      %v2102 = vlaneseq
      %v2103 = vshrl.u32 %v2102, 7
      %v2104 = vsub.s32 %v2101, %v2103
      %v2105 = vrot.slane %v2091, %v2104
      %v2106 = vcombine.low %v2098, %v2105
      %v2107 = vcombine.low %v705, %v704
      %v2108 = vcombine.low %v706, %v714
      %v2110 = vunpack.c.l.s4 1983009808
      %v2111 = vunpack.c.0.s8 %v2110
      %v2112 = vlaneseq
      %v2113 = vshrl.u32 %v2112, 7
      %v2114 = vsub.s32 %v2111, %v2113
      %v2115 = vrot.slane %v2107, %v2114
      %v2117 = vunpack.c.l.s4 1983009808
      %v2118 = vunpack.c.0.s8 %v2117
      %v2119 = vlaneseq
      %v2120 = vshrl.u32 %v2119, 7
      %v2121 = vsub.s32 %v2118, %v2120
      %v2122 = vrot.slane %v2108, %v2121
      %v2123 = vcombine.low %v2115, %v2122
      %v2124 = vcombine.low %v722, %v721
      %v2126 = vunpack.c.l.s4 1983009808
      %v2127 = vunpack.c.0.s8 %v2126
      %v2128 = vlaneseq
      %v2129 = vshrl.u32 %v2128, 7
      %v2130 = vsub.s32 %v2127, %v2129
      %v2131 = vrot.slane %v2124, %v2130
      %v2132 = vsel %vm1471, %v1732, 0
      %v2134 = vsel %vm1471, %v1749, 0
      %v2136 = vsel %vm1471, %v1766, 0
      %v2138 = vsel %vm1471, %v1783, 0
      %v2140 = vsel %vm1471, %v1800, 0
      %v2142 = vsel %vm1471, %v1817, 0
      %v2144 = vsel %vm1471, %v1834, 0
      %v2146 = vsel %vm1471, %v1851, 0
      %v2148 = vsel %vm1471, %v1868, 0
      %v2150 = vsel %vm1471, %v1885, 0
      %v2152 = vsel %vm1471, %v1902, 0
      %v2154 = vsel %vm1471, %v1919, 0
      %v2156 = vsel %vm1471, %v1936, 0
      %v2158 = vsel %vm1471, %v1953, 0
      %v2160 = vsel %vm1471, %v1970, 0
      %v2162 = vsel %vm1471, %v1987, 0
      %v2164 = vsel %vm1471, %v2004, 0
      %v2166 = vsel %vm1471, %v2021, 0
      %v2168 = vsel %vm1471, %v2038, 0
      %v2170 = vsel %vm1471, %v2055, 0
      %v2172 = vsel %vm1471, %v2072, 0
      %v2174 = vsel %vm1471, %v2089, 0
      %v2176 = vsel %vm1471, %v2106, 0
      %v2178 = vsel %vm1471, %v2123, 0
      %v2180 = vsel %vm1471, %v2131, 0
      %v2183 = vsel %vm1522, %v723, 0
      %2185 = vmatprep.subr.mxu0 0.0
      %2186 = vmatpush1.msra.mxu0 %v2183
      %2187 = vmatprep.subr.mxu0 0.0
      %2188 = vmatpush1.msra.mxu0 0.0
      %2189 = vmatprep.subr.mxu0 0.0
      %2190 = vmatpush1.msra.mxu0 0.0
      %2191 = vmatprep.subr.mxu0 0.0
      %2192 = vmatpush1.msra.mxu0 0.0
      %2193 = vmatprep.subr.mxu0 0.0
      %2194 = vmatpush1.msra.mxu0 0.0
      %2195 = vmatprep.subr.mxu0 0.0
      %2196 = vmatpush1.msra.mxu0 0.0
      %2197 = vmatprep.subr.mxu0 0.0
      %2198 = vmatpush1.msra.mxu0 0.0
      %2199 = vmatprep.subr.mxu0 0.0
      %2200 = vmatpush1.msra.mxu0 0.0
      %2201 = vmatprep.subr.mxu0 0.0
      %2202 = vmatpush1.msra.mxu0 0.0
      %2203 = vmatprep.subr.mxu0 0.0
      %2204 = vmatpush1.msra.mxu0 0.0
      %2205 = vmatprep.subr.mxu0 0.0
      %2206 = vmatpush1.msra.mxu0 0.0
      %2207 = vmatprep.subr.mxu0 0.0
      %2208 = vmatpush1.msra.mxu0 0.0
      %2209 = vmatprep.subr.mxu0 0.0
      %2210 = vmatpush1.msra.mxu0 0.0
      %2211 = vmatprep.subr.mxu0 0.0
      %2212 = vmatpush1.msra.mxu0 0.0
      %2213 = vmatprep.subr.mxu0 0.0
      %2214 = vmatpush1.msra.mxu0 0.0
      %2215 = vmatprep.subr.mxu0 0.0
      %2216 = vmatpush1.msra.mxu0 0.0
      %2217 = vmatprep.subr.mxu0 0.0
      %2218 = vmatpush1.msra.mxu0 0.0
      %2219 = vmatprep.subr.mxu0 0.0
      %2220 = vmatpush1.msra.mxu0 0.0
      %2221 = vmatprep.subr.mxu0 0.0
      %2222 = vmatpush1.msra.mxu0 0.0
      %2223 = vmatprep.subr.mxu0 0.0
      %2224 = vmatpush1.msra.mxu0 0.0
      %2225 = vmatprep.subr.mxu0 0.0
      %2226 = vmatpush1.msra.mxu0 0.0
      %2227 = vmatprep.subr.mxu0 0.0
      %2228 = vmatpush1.msra.mxu0 0.0
      %2229 = vmatprep.subr.mxu0 0.0
      %2230 = vmatpush1.msra.mxu0 0.0
      %2231 = vmatprep.subr.mxu0 0.0
      %2232 = vmatpush1.msra.mxu0 0.0
      %2233 = vmatprep.subr.mxu0 0.0
      %2234 = vmatpush1.msra.mxu0 0.0
      %2235 = vmatprep.subr.mxu0 0.0
      %2236 = vmatpush1.msra.mxu0 0.0
      %2237 = vmatprep.subr.mxu0 0.0
      %2238 = vmatpush1.msra.mxu0 0.0
      %2239 = vmatprep.subr.mxu0 0.0
      %2240 = vmatpush1.msra.mxu0 0.0
      %2241 = vmatprep.subr.mxu0 0.0
      %2242 = vmatpush1.msra.mxu0 0.0
      %2243 = vmatprep.subr.mxu0 0.0
      %2244 = vmatpush1.msra.mxu0 0.0
      %2245 = vmatprep.subr.mxu0 0.0
      %2246 = vmatpush1.msra.mxu0 0.0
      %2247 = vmatprep.subr.mxu0 0.0
      %2248 = vmatpush1.msra.mxu0 0.0
      %2249 = vmatprep.mubr.f32.mxu0 0.0
      %2250 = vmatmul.mubr.f32.gmra.mrb[0].mxu0 %v2132
      %v2251 = vpop.f32.mrb[0].mxu0
      %v2252 = vadd.f32 %v1593, %v2251
      %v2253 = vpop.f32.mrb[0].mxu0
      %2254 = vmatprep.mubr.f32.mxu0 0.0
      %2255 = vmatmul.mubr.f32.gmra.mrb[0].mxu0 %v2134
      %v2256 = vpop.f32.mrb[0].mxu0
      %v2257 = vadd.f32 %v1598, %v2256
      %v2258 = vpop.f32.mrb[0].mxu0
      %2259 = vmatprep.mubr.f32.mxu0 0.0
      %2260 = vmatmul.mubr.f32.gmra.mrb[0].mxu0 %v2136
      %v2261 = vpop.f32.mrb[0].mxu0
      %v2262 = vadd.f32 %v1603, %v2261
      %v2263 = vpop.f32.mrb[0].mxu0
      %2264 = vmatprep.mubr.f32.mxu0 0.0
      %2265 = vmatmul.mubr.f32.gmra.mrb[0].mxu0 %v2138
      %v2266 = vpop.f32.mrb[0].mxu0
      %v2267 = vadd.f32 %v1608, %v2266
      %v2268 = vpop.f32.mrb[0].mxu0
      %2269 = vmatprep.mubr.f32.mxu0 0.0
      %2270 = vmatmul.mubr.f32.gmra.mrb[0].mxu0 %v2140
      %v2271 = vpop.f32.mrb[0].mxu0
      %v2272 = vadd.f32 %v1613, %v2271
      %v2273 = vpop.f32.mrb[0].mxu0
      %2274 = vmatprep.mubr.f32.mxu0 0.0
      %2275 = vmatmul.mubr.f32.gmra.mrb[0].mxu0 %v2142
      %v2276 = vpop.f32.mrb[0].mxu0
      %v2277 = vadd.f32 %v1618, %v2276
      %v2278 = vpop.f32.mrb[0].mxu0
      %2279 = vmatprep.mubr.f32.mxu0 0.0
      %2280 = vmatmul.mubr.f32.gmra.mrb[0].mxu0 %v2144
      %v2281 = vpop.f32.mrb[0].mxu0
      %v2282 = vadd.f32 %v1623, %v2281
      %v2283 = vpop.f32.mrb[0].mxu0
      %2284 = vmatprep.mubr.f32.mxu0 0.0
      %2285 = vmatmul.mubr.f32.gmra.mrb[0].mxu0 %v2146
      %v2286 = vpop.f32.mrb[0].mxu0
      %v2287 = vadd.f32 %v1628, %v2286
      %v2288 = vpop.f32.mrb[0].mxu0
      %2289 = vmatprep.mubr.f32.mxu0 0.0
      %2290 = vmatmul.mubr.f32.gmra.mrb[0].mxu0 %v2148
      %v2291 = vpop.f32.mrb[0].mxu0
      %v2292 = vadd.f32 %v1633, %v2291
      %v2293 = vpop.f32.mrb[0].mxu0
      %2294 = vmatprep.mubr.f32.mxu0 0.0
      %2295 = vmatmul.mubr.f32.gmra.mrb[0].mxu0 %v2150
      %v2296 = vpop.f32.mrb[0].mxu0
      %v2297 = vadd.f32 %v1638, %v2296
      %v2298 = vpop.f32.mrb[0].mxu0
      %2299 = vmatprep.mubr.f32.mxu0 0.0
      %2300 = vmatmul.mubr.f32.gmra.mrb[0].mxu0 %v2152
      %v2301 = vpop.f32.mrb[0].mxu0
      %v2302 = vadd.f32 %v1643, %v2301
      %v2303 = vpop.f32.mrb[0].mxu0
      %2304 = vmatprep.mubr.f32.mxu0 0.0
      %2305 = vmatmul.mubr.f32.gmra.mrb[0].mxu0 %v2154
      %v2306 = vpop.f32.mrb[0].mxu0
      %v2307 = vadd.f32 %v1648, %v2306
      %v2308 = vpop.f32.mrb[0].mxu0
      %2309 = vmatprep.mubr.f32.mxu0 0.0
      %2310 = vmatmul.mubr.f32.gmra.mrb[0].mxu0 %v2156
      %v2311 = vpop.f32.mrb[0].mxu0
      %v2312 = vadd.f32 %v1653, %v2311
      %v2313 = vpop.f32.mrb[0].mxu0
      %2314 = vmatprep.mubr.f32.mxu0 0.0
      %2315 = vmatmul.mubr.f32.gmra.mrb[0].mxu0 %v2158
      %v2316 = vpop.f32.mrb[0].mxu0
      %v2317 = vadd.f32 %v1658, %v2316
      %v2318 = vpop.f32.mrb[0].mxu0
      %2319 = vmatprep.mubr.f32.mxu0 0.0
      %2320 = vmatmul.mubr.f32.gmra.mrb[0].mxu0 %v2160
      %v2321 = vpop.f32.mrb[0].mxu0
      %v2322 = vadd.f32 %v1663, %v2321
      %v2323 = vpop.f32.mrb[0].mxu0
      %2324 = vmatprep.mubr.f32.mxu0 0.0
      %2325 = vmatmul.mubr.f32.gmra.mrb[0].mxu0 %v2162
      %v2326 = vpop.f32.mrb[0].mxu0
      %v2327 = vadd.f32 %v1668, %v2326
      %v2328 = vpop.f32.mrb[0].mxu0
      %2329 = vmatprep.mubr.f32.mxu0 0.0
      %2330 = vmatmul.mubr.f32.gmra.mrb[0].mxu0 %v2164
      %v2331 = vpop.f32.mrb[0].mxu0
      %v2332 = vadd.f32 %v1673, %v2331
      %v2333 = vpop.f32.mrb[0].mxu0
      %2334 = vmatprep.mubr.f32.mxu0 0.0
      %2335 = vmatmul.mubr.f32.gmra.mrb[0].mxu0 %v2166
      %v2336 = vpop.f32.mrb[0].mxu0
      %v2337 = vadd.f32 %v1678, %v2336
      %v2338 = vpop.f32.mrb[0].mxu0
      %2339 = vmatprep.mubr.f32.mxu0 0.0
      %2340 = vmatmul.mubr.f32.gmra.mrb[0].mxu0 %v2168
      %v2341 = vpop.f32.mrb[0].mxu0
      %v2342 = vadd.f32 %v1683, %v2341
      %v2343 = vpop.f32.mrb[0].mxu0
      %2344 = vmatprep.mubr.f32.mxu0 0.0
      %2345 = vmatmul.mubr.f32.gmra.mrb[0].mxu0 %v2170
      %v2346 = vpop.f32.mrb[0].mxu0
      %v2347 = vadd.f32 %v1688, %v2346
      %v2348 = vpop.f32.mrb[0].mxu0
      %2349 = vmatprep.mubr.f32.mxu0 0.0
      %2350 = vmatmul.mubr.f32.gmra.mrb[0].mxu0 %v2172
      %v2351 = vpop.f32.mrb[0].mxu0
      %v2352 = vadd.f32 %v1693, %v2351
      %v2353 = vpop.f32.mrb[0].mxu0
      %2354 = vmatprep.mubr.f32.mxu0 0.0
      %2355 = vmatmul.mubr.f32.gmra.mrb[0].mxu0 %v2174
      %v2356 = vpop.f32.mrb[0].mxu0
      %v2357 = vadd.f32 %v1698, %v2356
      %v2358 = vpop.f32.mrb[0].mxu0
      %2359 = vmatprep.mubr.f32.mxu0 0.0
      %2360 = vmatmul.mubr.f32.gmra.mrb[0].mxu0 %v2176
      %v2361 = vpop.f32.mrb[0].mxu0
      %v2362 = vadd.f32 %v1703, %v2361
      %v2363 = vpop.f32.mrb[0].mxu0
      %2364 = vmatprep.mubr.f32.mxu0 0.0
      %2365 = vmatmul.mubr.f32.gmra.mrb[0].mxu0 %v2178
      %v2366 = vpop.f32.mrb[0].mxu0
      %v2367 = vadd.f32 %v1708, %v2366
      %v2368 = vpop.f32.mrb[0].mxu0
      %2369 = vmatprep.mubr.f32.mxu0 0.0
      %2370 = vmatmul.mubr.f32.gmra.mrb[0].mxu0 %v2180
      %v2371 = vpop.f32.mrb[0].mxu0
      %v2372 = vadd.f32 %v1713, %v2371
      %v2373 = vpop.f32.mrb[0].mxu0
      %2374 = vdwg.mxu0
      %s2375 = scalar_lea.vmem %s186, 8
      %v2376 = vld [vmem:[%s2375] sm:$0xf]
      %v2377 = vcombine.low %v276, %v275
      %v2378 = vcombine.low %v277, %v285
      %v2380 = vunpack.c.l.s4 1983009808
      %v2381 = vunpack.c.0.s8 %v2380
      %v2382 = vlaneseq
      %v2383 = vshrl.u32 %v2382, 7
      %v2384 = vsub.s32 %v2381, %v2383
      %v2385 = vrot.slane %v2377, %v2384
      %v2387 = vunpack.c.l.s4 1983009808
      %v2388 = vunpack.c.0.s8 %v2387
      %v2389 = vlaneseq
      %v2390 = vshrl.u32 %v2389, 7
      %v2391 = vsub.s32 %v2388, %v2390
      %v2392 = vrot.slane %v2378, %v2391
      %v2393 = vcombine.low %v2385, %v2392
      %v2394 = vcombine.low %v293, %v292
      %v2395 = vcombine.low %v724, %v309
      %v2397 = vunpack.c.l.s4 1983009808
      %v2398 = vunpack.c.0.s8 %v2397
      %v2399 = vlaneseq
      %v2400 = vshrl.u32 %v2399, 7
      %v2401 = vsub.s32 %v2398, %v2400
      %v2402 = vrot.slane %v2394, %v2401
      %v2404 = vunpack.c.l.s4 1983009808
      %v2405 = vunpack.c.0.s8 %v2404
      %v2406 = vlaneseq
      %v2407 = vshrl.u32 %v2406, 7
      %v2408 = vsub.s32 %v2405, %v2407
      %v2409 = vrot.slane %v2395, %v2408
      %v2410 = vcombine.low %v2402, %v2409
      %v2411 = vcombine.low %v308, %v310
      %v2412 = vcombine.low %v318, %v326
      %v2414 = vunpack.c.l.s4 1983009808
      %v2415 = vunpack.c.0.s8 %v2414
      %v2416 = vlaneseq
      %v2417 = vshrl.u32 %v2416, 7
      %v2418 = vsub.s32 %v2415, %v2417
      %v2419 = vrot.slane %v2411, %v2418
      %v2421 = vunpack.c.l.s4 1983009808
      %v2422 = vunpack.c.0.s8 %v2421
      %v2423 = vlaneseq
      %v2424 = vshrl.u32 %v2423, 7
      %v2425 = vsub.s32 %v2422, %v2424
      %v2426 = vrot.slane %v2412, %v2425
      %v2427 = vcombine.low %v2419, %v2426
      %v2428 = vcombine.low %v325, %v725
      %v2429 = vcombine.low %v342, %v341
      %v2431 = vunpack.c.l.s4 1983009808
      %v2432 = vunpack.c.0.s8 %v2431
      %v2433 = vlaneseq
      %v2434 = vshrl.u32 %v2433, 7
      %v2435 = vsub.s32 %v2432, %v2434
      %v2436 = vrot.slane %v2428, %v2435
      %v2438 = vunpack.c.l.s4 1983009808
      %v2439 = vunpack.c.0.s8 %v2438
      %v2440 = vlaneseq
      %v2441 = vshrl.u32 %v2440, 7
      %v2442 = vsub.s32 %v2439, %v2441
      %v2443 = vrot.slane %v2429, %v2442
      %v2444 = vcombine.low %v2436, %v2443
      %v2445 = vcombine.low %v343, %v351
      %v2446 = vcombine.low %v359, %v358
      %v2448 = vunpack.c.l.s4 1983009808
      %v2449 = vunpack.c.0.s8 %v2448
      %v2450 = vlaneseq
      %v2451 = vshrl.u32 %v2450, 7
      %v2452 = vsub.s32 %v2449, %v2451
      %v2453 = vrot.slane %v2445, %v2452
      %v2455 = vunpack.c.l.s4 1983009808
      %v2456 = vunpack.c.0.s8 %v2455
      %v2457 = vlaneseq
      %v2458 = vshrl.u32 %v2457, 7
      %v2459 = vsub.s32 %v2456, %v2458
      %v2460 = vrot.slane %v2446, %v2459
      %v2461 = vcombine.low %v2453, %v2460
      %v2462 = vcombine.low %v726, %v375
      %v2463 = vcombine.low %v374, %v376
      %v2465 = vunpack.c.l.s4 1983009808
      %v2466 = vunpack.c.0.s8 %v2465
      %v2467 = vlaneseq
      %v2468 = vshrl.u32 %v2467, 7
      %v2469 = vsub.s32 %v2466, %v2468
      %v2470 = vrot.slane %v2462, %v2469
      %v2472 = vunpack.c.l.s4 1983009808
      %v2473 = vunpack.c.0.s8 %v2472
      %v2474 = vlaneseq
      %v2475 = vshrl.u32 %v2474, 7
      %v2476 = vsub.s32 %v2473, %v2475
      %v2477 = vrot.slane %v2463, %v2476
      %v2478 = vcombine.low %v2470, %v2477
      %v2479 = vcombine.low %v384, %v392
      %v2480 = vcombine.low %v391, %v727
      %v2482 = vunpack.c.l.s4 1983009808
      %v2483 = vunpack.c.0.s8 %v2482
      %v2484 = vlaneseq
      %v2485 = vshrl.u32 %v2484, 7
      %v2486 = vsub.s32 %v2483, %v2485
      %v2487 = vrot.slane %v2479, %v2486
      %v2489 = vunpack.c.l.s4 1983009808
      %v2490 = vunpack.c.0.s8 %v2489
      %v2491 = vlaneseq
      %v2492 = vshrl.u32 %v2491, 7
      %v2493 = vsub.s32 %v2490, %v2492
      %v2494 = vrot.slane %v2480, %v2493
      %v2495 = vcombine.low %v2487, %v2494
      %v2496 = vcombine.low %v408, %v407
      %v2497 = vcombine.low %v409, %v417
      %v2499 = vunpack.c.l.s4 1983009808
      %v2500 = vunpack.c.0.s8 %v2499
      %v2501 = vlaneseq
      %v2502 = vshrl.u32 %v2501, 7
      %v2503 = vsub.s32 %v2500, %v2502
      %v2504 = vrot.slane %v2496, %v2503
      %v2506 = vunpack.c.l.s4 1983009808
      %v2507 = vunpack.c.0.s8 %v2506
      %v2508 = vlaneseq
      %v2509 = vshrl.u32 %v2508, 7
      %v2510 = vsub.s32 %v2507, %v2509
      %v2511 = vrot.slane %v2497, %v2510
      %v2512 = vcombine.low %v2504, %v2511
      %v2513 = vcombine.low %v425, %v424
      %v2514 = vcombine.low %v728, %v441
      %v2516 = vunpack.c.l.s4 1983009808
      %v2517 = vunpack.c.0.s8 %v2516
      %v2518 = vlaneseq
      %v2519 = vshrl.u32 %v2518, 7
      %v2520 = vsub.s32 %v2517, %v2519
      %v2521 = vrot.slane %v2513, %v2520
      %v2523 = vunpack.c.l.s4 1983009808
      %v2524 = vunpack.c.0.s8 %v2523
      %v2525 = vlaneseq
      %v2526 = vshrl.u32 %v2525, 7
      %v2527 = vsub.s32 %v2524, %v2526
      %v2528 = vrot.slane %v2514, %v2527
      %v2529 = vcombine.low %v2521, %v2528
      %v2530 = vcombine.low %v440, %v442
      %v2531 = vcombine.low %v450, %v458
      %v2533 = vunpack.c.l.s4 1983009808
      %v2534 = vunpack.c.0.s8 %v2533
      %v2535 = vlaneseq
      %v2536 = vshrl.u32 %v2535, 7
      %v2537 = vsub.s32 %v2534, %v2536
      %v2538 = vrot.slane %v2530, %v2537
      %v2540 = vunpack.c.l.s4 1983009808
      %v2541 = vunpack.c.0.s8 %v2540
      %v2542 = vlaneseq
      %v2543 = vshrl.u32 %v2542, 7
      %v2544 = vsub.s32 %v2541, %v2543
      %v2545 = vrot.slane %v2531, %v2544
      %v2546 = vcombine.low %v2538, %v2545
      %v2547 = vcombine.low %v457, %v729
      %v2548 = vcombine.low %v474, %v473
      %v2550 = vunpack.c.l.s4 1983009808
      %v2551 = vunpack.c.0.s8 %v2550
      %v2552 = vlaneseq
      %v2553 = vshrl.u32 %v2552, 7
      %v2554 = vsub.s32 %v2551, %v2553
      %v2555 = vrot.slane %v2547, %v2554
      %v2557 = vunpack.c.l.s4 1983009808
      %v2558 = vunpack.c.0.s8 %v2557
      %v2559 = vlaneseq
      %v2560 = vshrl.u32 %v2559, 7
      %v2561 = vsub.s32 %v2558, %v2560
      %v2562 = vrot.slane %v2548, %v2561
      %v2563 = vcombine.low %v2555, %v2562
      %v2564 = vcombine.low %v475, %v483
      %v2565 = vcombine.low %v491, %v490
      %v2567 = vunpack.c.l.s4 1983009808
      %v2568 = vunpack.c.0.s8 %v2567
      %v2569 = vlaneseq
      %v2570 = vshrl.u32 %v2569, 7
      %v2571 = vsub.s32 %v2568, %v2570
      %v2572 = vrot.slane %v2564, %v2571
      %v2574 = vunpack.c.l.s4 1983009808
      %v2575 = vunpack.c.0.s8 %v2574
      %v2576 = vlaneseq
      %v2577 = vshrl.u32 %v2576, 7
      %v2578 = vsub.s32 %v2575, %v2577
      %v2579 = vrot.slane %v2565, %v2578
      %v2580 = vcombine.low %v2572, %v2579
      %v2581 = vcombine.low %v730, %v507
      %v2582 = vcombine.low %v506, %v508
      %v2584 = vunpack.c.l.s4 1983009808
      %v2585 = vunpack.c.0.s8 %v2584
      %v2586 = vlaneseq
      %v2587 = vshrl.u32 %v2586, 7
      %v2588 = vsub.s32 %v2585, %v2587
      %v2589 = vrot.slane %v2581, %v2588
      %v2591 = vunpack.c.l.s4 1983009808
      %v2592 = vunpack.c.0.s8 %v2591
      %v2593 = vlaneseq
      %v2594 = vshrl.u32 %v2593, 7
      %v2595 = vsub.s32 %v2592, %v2594
      %v2596 = vrot.slane %v2582, %v2595
      %v2597 = vcombine.low %v2589, %v2596
      %v2598 = vcombine.low %v516, %v524
      %v2599 = vcombine.low %v523, %v731
      %v2601 = vunpack.c.l.s4 1983009808
      %v2602 = vunpack.c.0.s8 %v2601
      %v2603 = vlaneseq
      %v2604 = vshrl.u32 %v2603, 7
      %v2605 = vsub.s32 %v2602, %v2604
      %v2606 = vrot.slane %v2598, %v2605
      %v2608 = vunpack.c.l.s4 1983009808
      %v2609 = vunpack.c.0.s8 %v2608
      %v2610 = vlaneseq
      %v2611 = vshrl.u32 %v2610, 7
      %v2612 = vsub.s32 %v2609, %v2611
      %v2613 = vrot.slane %v2599, %v2612
      %v2614 = vcombine.low %v2606, %v2613
      %v2615 = vcombine.low %v540, %v539
      %v2616 = vcombine.low %v541, %v549
      %v2618 = vunpack.c.l.s4 1983009808
      %v2619 = vunpack.c.0.s8 %v2618
      %v2620 = vlaneseq
      %v2621 = vshrl.u32 %v2620, 7
      %v2622 = vsub.s32 %v2619, %v2621
      %v2623 = vrot.slane %v2615, %v2622
      %v2625 = vunpack.c.l.s4 1983009808
      %v2626 = vunpack.c.0.s8 %v2625
      %v2627 = vlaneseq
      %v2628 = vshrl.u32 %v2627, 7
      %v2629 = vsub.s32 %v2626, %v2628
      %v2630 = vrot.slane %v2616, %v2629
      %v2631 = vcombine.low %v2623, %v2630
      %v2632 = vcombine.low %v557, %v556
      %v2633 = vcombine.low %v732, %v573
      %v2635 = vunpack.c.l.s4 1983009808
      %v2636 = vunpack.c.0.s8 %v2635
      %v2637 = vlaneseq
      %v2638 = vshrl.u32 %v2637, 7
      %v2639 = vsub.s32 %v2636, %v2638
      %v2640 = vrot.slane %v2632, %v2639
      %v2642 = vunpack.c.l.s4 1983009808
      %v2643 = vunpack.c.0.s8 %v2642
      %v2644 = vlaneseq
      %v2645 = vshrl.u32 %v2644, 7
      %v2646 = vsub.s32 %v2643, %v2645
      %v2647 = vrot.slane %v2633, %v2646
      %v2648 = vcombine.low %v2640, %v2647
      %v2649 = vcombine.low %v572, %v574
      %v2650 = vcombine.low %v582, %v590
      %v2652 = vunpack.c.l.s4 1983009808
      %v2653 = vunpack.c.0.s8 %v2652
      %v2654 = vlaneseq
      %v2655 = vshrl.u32 %v2654, 7
      %v2656 = vsub.s32 %v2653, %v2655
      %v2657 = vrot.slane %v2649, %v2656
      %v2659 = vunpack.c.l.s4 1983009808
      %v2660 = vunpack.c.0.s8 %v2659
      %v2661 = vlaneseq
      %v2662 = vshrl.u32 %v2661, 7
      %v2663 = vsub.s32 %v2660, %v2662
      %v2664 = vrot.slane %v2650, %v2663
      %v2665 = vcombine.low %v2657, %v2664
      %v2666 = vcombine.low %v589, %v733
      %v2667 = vcombine.low %v606, %v605
      %v2669 = vunpack.c.l.s4 1983009808
      %v2670 = vunpack.c.0.s8 %v2669
      %v2671 = vlaneseq
      %v2672 = vshrl.u32 %v2671, 7
      %v2673 = vsub.s32 %v2670, %v2672
      %v2674 = vrot.slane %v2666, %v2673
      %v2676 = vunpack.c.l.s4 1983009808
      %v2677 = vunpack.c.0.s8 %v2676
      %v2678 = vlaneseq
      %v2679 = vshrl.u32 %v2678, 7
      %v2680 = vsub.s32 %v2677, %v2679
      %v2681 = vrot.slane %v2667, %v2680
      %v2682 = vcombine.low %v2674, %v2681
      %v2683 = vcombine.low %v607, %v615
      %v2684 = vcombine.low %v623, %v622
      %v2686 = vunpack.c.l.s4 1983009808
      %v2687 = vunpack.c.0.s8 %v2686
      %v2688 = vlaneseq
      %v2689 = vshrl.u32 %v2688, 7
      %v2690 = vsub.s32 %v2687, %v2689
      %v2691 = vrot.slane %v2683, %v2690
      %v2693 = vunpack.c.l.s4 1983009808
      %v2694 = vunpack.c.0.s8 %v2693
      %v2695 = vlaneseq
      %v2696 = vshrl.u32 %v2695, 7
      %v2697 = vsub.s32 %v2694, %v2696
      %v2698 = vrot.slane %v2684, %v2697
      %v2699 = vcombine.low %v2691, %v2698
      %v2700 = vcombine.low %v734, %v639
      %v2701 = vcombine.low %v638, %v640
      %v2703 = vunpack.c.l.s4 1983009808
      %v2704 = vunpack.c.0.s8 %v2703
      %v2705 = vlaneseq
      %v2706 = vshrl.u32 %v2705, 7
      %v2707 = vsub.s32 %v2704, %v2706
      %v2708 = vrot.slane %v2700, %v2707
      %v2710 = vunpack.c.l.s4 1983009808
      %v2711 = vunpack.c.0.s8 %v2710
      %v2712 = vlaneseq
      %v2713 = vshrl.u32 %v2712, 7
      %v2714 = vsub.s32 %v2711, %v2713
      %v2715 = vrot.slane %v2701, %v2714
      %v2716 = vcombine.low %v2708, %v2715
      %v2717 = vcombine.low %v648, %v656
      %v2718 = vcombine.low %v655, %v735
      %v2720 = vunpack.c.l.s4 1983009808
      %v2721 = vunpack.c.0.s8 %v2720
      %v2722 = vlaneseq
      %v2723 = vshrl.u32 %v2722, 7
      %v2724 = vsub.s32 %v2721, %v2723
      %v2725 = vrot.slane %v2717, %v2724
      %v2727 = vunpack.c.l.s4 1983009808
      %v2728 = vunpack.c.0.s8 %v2727
      %v2729 = vlaneseq
      %v2730 = vshrl.u32 %v2729, 7
      %v2731 = vsub.s32 %v2728, %v2730
      %v2732 = vrot.slane %v2718, %v2731
      %v2733 = vcombine.low %v2725, %v2732
      %v2734 = vcombine.low %v672, %v671
      %v2735 = vcombine.low %v673, %v681
      %v2737 = vunpack.c.l.s4 1983009808
      %v2738 = vunpack.c.0.s8 %v2737
      %v2739 = vlaneseq
      %v2740 = vshrl.u32 %v2739, 7
      %v2741 = vsub.s32 %v2738, %v2740
      %v2742 = vrot.slane %v2734, %v2741
      %v2744 = vunpack.c.l.s4 1983009808
      %v2745 = vunpack.c.0.s8 %v2744
      %v2746 = vlaneseq
      %v2747 = vshrl.u32 %v2746, 7
      %v2748 = vsub.s32 %v2745, %v2747
      %v2749 = vrot.slane %v2735, %v2748
      %v2750 = vcombine.low %v2742, %v2749
      %v2751 = vcombine.low %v689, %v688
      %v2752 = vcombine.low %v736, %v705
      %v2754 = vunpack.c.l.s4 1983009808
      %v2755 = vunpack.c.0.s8 %v2754
      %v2756 = vlaneseq
      %v2757 = vshrl.u32 %v2756, 7
      %v2758 = vsub.s32 %v2755, %v2757
      %v2759 = vrot.slane %v2751, %v2758
      %v2761 = vunpack.c.l.s4 1983009808
      %v2762 = vunpack.c.0.s8 %v2761
      %v2763 = vlaneseq
      %v2764 = vshrl.u32 %v2763, 7
      %v2765 = vsub.s32 %v2762, %v2764
      %v2766 = vrot.slane %v2752, %v2765
      %v2767 = vcombine.low %v2759, %v2766
      %v2768 = vcombine.low %v704, %v706
      %v2769 = vcombine.low %v714, %v722
      %v2771 = vunpack.c.l.s4 1983009808
      %v2772 = vunpack.c.0.s8 %v2771
      %v2773 = vlaneseq
      %v2774 = vshrl.u32 %v2773, 7
      %v2775 = vsub.s32 %v2772, %v2774
      %v2776 = vrot.slane %v2768, %v2775
      %v2778 = vunpack.c.l.s4 1983009808
      %v2779 = vunpack.c.0.s8 %v2778
      %v2780 = vlaneseq
      %v2781 = vshrl.u32 %v2780, 7
      %v2782 = vsub.s32 %v2779, %v2781
      %v2783 = vrot.slane %v2769, %v2782
      %v2784 = vcombine.low %v2776, %v2783
      %v2785 = vcombine.low %v721, %v737
      %v2787 = vunpack.c.l.s4 1983009808
      %v2788 = vunpack.c.0.s8 %v2787
      %v2789 = vlaneseq
      %v2790 = vshrl.u32 %v2789, 7
      %v2791 = vsub.s32 %v2788, %v2790
      %v2792 = vrot.slane %v2785, %v2791
      %v2793 = vsel %vm1471, %v2393, 0
      %v2795 = vsel %vm1471, %v2410, 0
      %v2797 = vsel %vm1471, %v2427, 0
      %v2799 = vsel %vm1471, %v2444, 0
      %v2801 = vsel %vm1471, %v2461, 0
      %v2803 = vsel %vm1471, %v2478, 0
      %v2805 = vsel %vm1471, %v2495, 0
      %v2807 = vsel %vm1471, %v2512, 0
      %v2809 = vsel %vm1471, %v2529, 0
      %v2811 = vsel %vm1471, %v2546, 0
      %v2813 = vsel %vm1471, %v2563, 0
      %v2815 = vsel %vm1471, %v2580, 0
      %v2817 = vsel %vm1471, %v2597, 0
      %v2819 = vsel %vm1471, %v2614, 0
      %v2821 = vsel %vm1471, %v2631, 0
      %v2823 = vsel %vm1471, %v2648, 0
      %v2825 = vsel %vm1471, %v2665, 0
      %v2827 = vsel %vm1471, %v2682, 0
      %v2829 = vsel %vm1471, %v2699, 0
      %v2831 = vsel %vm1471, %v2716, 0
      %v2833 = vsel %vm1471, %v2733, 0
      %v2835 = vsel %vm1471, %v2750, 0
      %v2837 = vsel %vm1471, %v2767, 0
      %v2839 = vsel %vm1471, %v2784, 0
      %v2841 = vsel %vm1471, %v2792, 0
      %v2844 = vsel %vm1522, %v2376, 0
      %2846 = vmatprep.subr.mxu0 0.0
      %2847 = vmatpush1.msra.mxu0 %v2844
      %2848 = vmatprep.subr.mxu0 0.0
      %2849 = vmatpush1.msra.mxu0 0.0
      %2850 = vmatprep.subr.mxu0 0.0
      %2851 = vmatpush1.msra.mxu0 0.0
      %2852 = vmatprep.subr.mxu0 0.0
      %2853 = vmatpush1.msra.mxu0 0.0
      %2854 = vmatprep.subr.mxu0 0.0
      %2855 = vmatpush1.msra.mxu0 0.0
      %2856 = vmatprep.subr.mxu0 0.0
      %2857 = vmatpush1.msra.mxu0 0.0
      %2858 = vmatprep.subr.mxu0 0.0
      %2859 = vmatpush1.msra.mxu0 0.0
      %2860 = vmatprep.subr.mxu0 0.0
      %2861 = vmatpush1.msra.mxu0 0.0
      %2862 = vmatprep.subr.mxu0 0.0
      %2863 = vmatpush1.msra.mxu0 0.0
      %2864 = vmatprep.subr.mxu0 0.0
      %2865 = vmatpush1.msra.mxu0 0.0
      %2866 = vmatprep.subr.mxu0 0.0
      %2867 = vmatpush1.msra.mxu0 0.0
      %2868 = vmatprep.subr.mxu0 0.0
      %2869 = vmatpush1.msra.mxu0 0.0
      %2870 = vmatprep.subr.mxu0 0.0
      %2871 = vmatpush1.msra.mxu0 0.0
      %2872 = vmatprep.subr.mxu0 0.0
      %2873 = vmatpush1.msra.mxu0 0.0
      %2874 = vmatprep.subr.mxu0 0.0
      %2875 = vmatpush1.msra.mxu0 0.0
      %2876 = vmatprep.subr.mxu0 0.0
      %2877 = vmatpush1.msra.mxu0 0.0
      %2878 = vmatprep.subr.mxu0 0.0
      %2879 = vmatpush1.msra.mxu0 0.0
      %2880 = vmatprep.subr.mxu0 0.0
      %2881 = vmatpush1.msra.mxu0 0.0
      %2882 = vmatprep.subr.mxu0 0.0
      %2883 = vmatpush1.msra.mxu0 0.0
      %2884 = vmatprep.subr.mxu0 0.0
      %2885 = vmatpush1.msra.mxu0 0.0
      %2886 = vmatprep.subr.mxu0 0.0
      %2887 = vmatpush1.msra.mxu0 0.0
      %2888 = vmatprep.subr.mxu0 0.0
      %2889 = vmatpush1.msra.mxu0 0.0
      %2890 = vmatprep.subr.mxu0 0.0
      %2891 = vmatpush1.msra.mxu0 0.0
      %2892 = vmatprep.subr.mxu0 0.0
      %2893 = vmatpush1.msra.mxu0 0.0
      %2894 = vmatprep.subr.mxu0 0.0
      %2895 = vmatpush1.msra.mxu0 0.0
      %2896 = vmatprep.subr.mxu0 0.0
      %2897 = vmatpush1.msra.mxu0 0.0
      %2898 = vmatprep.subr.mxu0 0.0
      %2899 = vmatpush1.msra.mxu0 0.0
      %2900 = vmatprep.subr.mxu0 0.0
      %2901 = vmatpush1.msra.mxu0 0.0
      %2902 = vmatprep.subr.mxu0 0.0
      %2903 = vmatpush1.msra.mxu0 0.0
      %2904 = vmatprep.subr.mxu0 0.0
      %2905 = vmatpush1.msra.mxu0 0.0
      %2906 = vmatprep.subr.mxu0 0.0
      %2907 = vmatpush1.msra.mxu0 0.0
      %2908 = vmatprep.subr.mxu0 0.0
      %2909 = vmatpush1.msra.mxu0 0.0
      %2910 = vmatprep.mubr.f32.mxu0 0.0
      %2911 = vmatmul.mubr.f32.gmra.mrb[0].mxu0 %v2793
      %v2912 = vpop.f32.mrb[0].mxu0
      %v2913 = vadd.f32 0.0, %v2912
      %v2914 = vpop.f32.mrb[0].mxu0
      %2915 = vmatprep.mubr.f32.mxu0 0.0
      %2916 = vmatmul.mubr.f32.gmra.mrb[0].mxu0 %v2795
      %v2917 = vpop.f32.mrb[0].mxu0
      %v2918 = vadd.f32 0.0, %v2917
      %v2919 = vpop.f32.mrb[0].mxu0
      %2920 = vmatprep.mubr.f32.mxu0 0.0
      %2921 = vmatmul.mubr.f32.gmra.mrb[0].mxu0 %v2797
      %v2922 = vpop.f32.mrb[0].mxu0
      %v2923 = vadd.f32 0.0, %v2922
      %v2924 = vpop.f32.mrb[0].mxu0
      %2925 = vmatprep.mubr.f32.mxu0 0.0
      %2926 = vmatmul.mubr.f32.gmra.mrb[0].mxu0 %v2799
      %v2927 = vpop.f32.mrb[0].mxu0
      %v2928 = vadd.f32 0.0, %v2927
      %v2929 = vpop.f32.mrb[0].mxu0
      %2930 = vmatprep.mubr.f32.mxu0 0.0
      %2931 = vmatmul.mubr.f32.gmra.mrb[0].mxu0 %v2801
      %v2932 = vpop.f32.mrb[0].mxu0
      %v2933 = vadd.f32 0.0, %v2932
      %v2934 = vpop.f32.mrb[0].mxu0
      %2935 = vmatprep.mubr.f32.mxu0 0.0
      %2936 = vmatmul.mubr.f32.gmra.mrb[0].mxu0 %v2803
      %v2937 = vpop.f32.mrb[0].mxu0
      %v2938 = vadd.f32 0.0, %v2937
      %v2939 = vpop.f32.mrb[0].mxu0
      %2940 = vmatprep.mubr.f32.mxu0 0.0
      %2941 = vmatmul.mubr.f32.gmra.mrb[0].mxu0 %v2805
      %v2942 = vpop.f32.mrb[0].mxu0
      %v2943 = vadd.f32 0.0, %v2942
      %v2944 = vpop.f32.mrb[0].mxu0
      %2945 = vmatprep.mubr.f32.mxu0 0.0
      %2946 = vmatmul.mubr.f32.gmra.mrb[0].mxu0 %v2807
      %v2947 = vpop.f32.mrb[0].mxu0
      %v2948 = vadd.f32 0.0, %v2947
      %v2949 = vpop.f32.mrb[0].mxu0
      %2950 = vmatprep.mubr.f32.mxu0 0.0
      %2951 = vmatmul.mubr.f32.gmra.mrb[0].mxu0 %v2809
      %v2952 = vpop.f32.mrb[0].mxu0
      %v2953 = vadd.f32 0.0, %v2952
      %v2954 = vpop.f32.mrb[0].mxu0
      %2955 = vmatprep.mubr.f32.mxu0 0.0
      %2956 = vmatmul.mubr.f32.gmra.mrb[0].mxu0 %v2811
      %v2957 = vpop.f32.mrb[0].mxu0
      %v2958 = vadd.f32 0.0, %v2957
      %v2959 = vpop.f32.mrb[0].mxu0
      %2960 = vmatprep.mubr.f32.mxu0 0.0
      %2961 = vmatmul.mubr.f32.gmra.mrb[0].mxu0 %v2813
      %v2962 = vpop.f32.mrb[0].mxu0
      %v2963 = vadd.f32 0.0, %v2962
      %v2964 = vpop.f32.mrb[0].mxu0
      %2965 = vmatprep.mubr.f32.mxu0 0.0
      %2966 = vmatmul.mubr.f32.gmra.mrb[0].mxu0 %v2815
      %v2967 = vpop.f32.mrb[0].mxu0
      %v2968 = vadd.f32 0.0, %v2967
      %v2969 = vpop.f32.mrb[0].mxu0
      %2970 = vmatprep.mubr.f32.mxu0 0.0
      %2971 = vmatmul.mubr.f32.gmra.mrb[0].mxu0 %v2817
      %v2972 = vpop.f32.mrb[0].mxu0
      %v2973 = vadd.f32 0.0, %v2972
      %v2974 = vpop.f32.mrb[0].mxu0
      %2975 = vmatprep.mubr.f32.mxu0 0.0
      %2976 = vmatmul.mubr.f32.gmra.mrb[0].mxu0 %v2819
      %v2977 = vpop.f32.mrb[0].mxu0
      %v2978 = vadd.f32 0.0, %v2977
      %v2979 = vpop.f32.mrb[0].mxu0
      %2980 = vmatprep.mubr.f32.mxu0 0.0
      %2981 = vmatmul.mubr.f32.gmra.mrb[0].mxu0 %v2821
      %v2982 = vpop.f32.mrb[0].mxu0
      %v2983 = vadd.f32 0.0, %v2982
      %v2984 = vpop.f32.mrb[0].mxu0
      %2985 = vmatprep.mubr.f32.mxu0 0.0
      %2986 = vmatmul.mubr.f32.gmra.mrb[0].mxu0 %v2823
      %v2987 = vpop.f32.mrb[0].mxu0
      %v2988 = vadd.f32 0.0, %v2987
      %v2989 = vpop.f32.mrb[0].mxu0
      %2990 = vmatprep.mubr.f32.mxu0 0.0
      %2991 = vmatmul.mubr.f32.gmra.mrb[0].mxu0 %v2825
      %v2992 = vpop.f32.mrb[0].mxu0
      %v2993 = vadd.f32 0.0, %v2992
      %v2994 = vpop.f32.mrb[0].mxu0
      %2995 = vmatprep.mubr.f32.mxu0 0.0
      %2996 = vmatmul.mubr.f32.gmra.mrb[0].mxu0 %v2827
      %v2997 = vpop.f32.mrb[0].mxu0
      %v2998 = vadd.f32 0.0, %v2997
      %v2999 = vpop.f32.mrb[0].mxu0
      %3000 = vmatprep.mubr.f32.mxu0 0.0
      %3001 = vmatmul.mubr.f32.gmra.mrb[0].mxu0 %v2829
      %v3002 = vpop.f32.mrb[0].mxu0
      %v3003 = vadd.f32 0.0, %v3002
      %v3004 = vpop.f32.mrb[0].mxu0
      %3005 = vmatprep.mubr.f32.mxu0 0.0
      %3006 = vmatmul.mubr.f32.gmra.mrb[0].mxu0 %v2831
      %v3007 = vpop.f32.mrb[0].mxu0
      %v3008 = vadd.f32 0.0, %v3007
      %v3009 = vpop.f32.mrb[0].mxu0
      %3010 = vmatprep.mubr.f32.mxu0 0.0
      %3011 = vmatmul.mubr.f32.gmra.mrb[0].mxu0 %v2833
      %v3012 = vpop.f32.mrb[0].mxu0
      %v3013 = vadd.f32 0.0, %v3012
      %v3014 = vpop.f32.mrb[0].mxu0
      %3015 = vmatprep.mubr.f32.mxu0 0.0
      %3016 = vmatmul.mubr.f32.gmra.mrb[0].mxu0 %v2835
      %v3017 = vpop.f32.mrb[0].mxu0
      %v3018 = vadd.f32 0.0, %v3017
      %v3019 = vpop.f32.mrb[0].mxu0
      %3020 = vmatprep.mubr.f32.mxu0 0.0
      %3021 = vmatmul.mubr.f32.gmra.mrb[0].mxu0 %v2837
      %v3022 = vpop.f32.mrb[0].mxu0
      %v3023 = vadd.f32 0.0, %v3022
      %v3024 = vpop.f32.mrb[0].mxu0
      %3025 = vmatprep.mubr.f32.mxu0 0.0
      %3026 = vmatmul.mubr.f32.gmra.mrb[0].mxu0 %v2839
      %v3027 = vpop.f32.mrb[0].mxu0
      %v3028 = vadd.f32 0.0, %v3027
      %v3029 = vpop.f32.mrb[0].mxu0
      %3030 = vmatprep.mubr.f32.mxu0 0.0
      %3031 = vmatmul.mubr.f32.gmra.mrb[0].mxu0 %v2841
      %v3032 = vpop.f32.mrb[0].mxu0
      %v3033 = vadd.f32 0.0, %v3032
      %v3034 = vpop.f32.mrb[0].mxu0
      %3035 = vdwg.mxu0
      %v3036 = vadd.f32 %v2252, %v2913
      %v3037 = vadd.f32 %v2257, %v2918
      %v3038 = vadd.f32 %v2262, %v2923
      %v3039 = vadd.f32 %v2267, %v2928
      %v3040 = vadd.f32 %v2272, %v2933
      %v3041 = vadd.f32 %v2277, %v2938
      %v3042 = vadd.f32 %v2282, %v2943
      %v3043 = vadd.f32 %v2287, %v2948
      %v3044 = vadd.f32 %v2292, %v2953
      %v3045 = vadd.f32 %v2297, %v2958
      %v3046 = vadd.f32 %v2302, %v2963
      %v3047 = vadd.f32 %v2307, %v2968
      %v3048 = vadd.f32 %v2312, %v2973
      %v3049 = vadd.f32 %v2317, %v2978
      %v3050 = vadd.f32 %v2322, %v2983
      %v3051 = vadd.f32 %v2327, %v2988
      %v3052 = vadd.f32 %v2332, %v2993
      %v3053 = vadd.f32 %v2337, %v2998
      %v3054 = vadd.f32 %v2342, %v3003
      %v3055 = vadd.f32 %v2347, %v3008
      %v3056 = vadd.f32 %v2352, %v3013
      %v3057 = vadd.f32 %v2357, %v3018
      %v3058 = vadd.f32 %v2362, %v3023
      %v3059 = vadd.f32 %v2367, %v3028
      %v3060 = vadd.f32 %v2372, %v3033
      %v3063 = vcombine.high %v229, %v229
      %v3065 = vunpack.c.l.s4 1983009808
      %v3066 = vunpack.c.0.s8 %v3065
      %v3067 = vlaneseq
      %v3068 = vshrl.u32 %v3067, 7
      %v3069 = vsub.s32 %v3066, %v3068
      %v3070 = vrot.slane %v229, %v3069
      %v3072 = vunpack.c.l.s4 1983009808
      %v3073 = vunpack.c.0.s8 %v3072
      %v3074 = vlaneseq
      %v3075 = vshrl.u32 %v3074, 7
      %v3076 = vsub.s32 %v3073, %v3075
      %v3077 = vrot.slane %v3063, %v3076
      %v3078 = vcombine.high %v3070, %v3070
      %v3079 = vcombine.high %v3077, %v3077
      %v3080 = vcombine.high %v230, %v230
      %v3082 = vunpack.c.l.s4 1983009808
      %v3083 = vunpack.c.0.s8 %v3082
      %v3084 = vlaneseq
      %v3085 = vshrl.u32 %v3084, 7
      %v3086 = vsub.s32 %v3083, %v3085
      %v3087 = vrot.slane %v230, %v3086
      %v3089 = vunpack.c.l.s4 1983009808
      %v3090 = vunpack.c.0.s8 %v3089
      %v3091 = vlaneseq
      %v3092 = vshrl.u32 %v3091, 7
      %v3093 = vsub.s32 %v3090, %v3092
      %v3094 = vrot.slane %v3080, %v3093
      %v3095 = vcombine.high %v3087, %v3087
      %s3096 = scalar_lea.vmem %s186, 12
      %v3097 = vld [vmem:[%s3096] sm:$0xf]
      %v3098 = vcombine.low %v301, %v309
      %v3100 = vunpack.c.l.s4 1983009808
      %v3101 = vunpack.c.0.s8 %v3100
      %v3102 = vlaneseq
      %v3103 = vshrl.u32 %v3102, 7
      %v3104 = vsub.s32 %v3101, %v3103
      %v3105 = vrot.slane %v3098, %v3104
      %v3106 = vcombine.low %v3105, %v2419
      %v3107 = vcombine.low %v325, %v334
      %v3109 = vunpack.c.l.s4 1983009808
      %v3110 = vunpack.c.0.s8 %v3109
      %v3111 = vlaneseq
      %v3112 = vshrl.u32 %v3111, 7
      %v3113 = vsub.s32 %v3110, %v3112
      %v3114 = vrot.slane %v3107, %v3113
      %v3115 = vcombine.low %v2426, %v3114
      %v3116 = vcombine.low %v2443, %v2453
      %v3117 = vcombine.low %v367, %v375
      %v3119 = vunpack.c.l.s4 1983009808
      %v3120 = vunpack.c.0.s8 %v3119
      %v3121 = vlaneseq
      %v3122 = vshrl.u32 %v3121, 7
      %v3123 = vsub.s32 %v3120, %v3122
      %v3124 = vrot.slane %v3117, %v3123
      %v3125 = vcombine.low %v2460, %v3124
      %v3126 = vcombine.low %v2477, %v2487
      %v3127 = vcombine.low %v391, %v400
      %v3129 = vunpack.c.l.s4 1983009808
      %v3130 = vunpack.c.0.s8 %v3129
      %v3131 = vlaneseq
      %v3132 = vshrl.u32 %v3131, 7
      %v3133 = vsub.s32 %v3130, %v3132
      %v3134 = vrot.slane %v3127, %v3133
      %v3135 = vcombine.low %v3134, %v2504
      %v3136 = vcombine.low %v2511, %v2521
      %v3137 = vcombine.low %v433, %v441
      %v3139 = vunpack.c.l.s4 1983009808
      %v3140 = vunpack.c.0.s8 %v3139
      %v3141 = vlaneseq
      %v3142 = vshrl.u32 %v3141, 7
      %v3143 = vsub.s32 %v3140, %v3142
      %v3144 = vrot.slane %v3137, %v3143
      %v3145 = vcombine.low %v3144, %v2538
      %v3146 = vcombine.low %v457, %v466
      %v3148 = vunpack.c.l.s4 1983009808
      %v3149 = vunpack.c.0.s8 %v3148
      %v3150 = vlaneseq
      %v3151 = vshrl.u32 %v3150, 7
      %v3152 = vsub.s32 %v3149, %v3151
      %v3153 = vrot.slane %v3146, %v3152
      %v3154 = vcombine.low %v2545, %v3153
      %v3155 = vcombine.low %v2562, %v2572
      %v3156 = vcombine.low %v499, %v507
      %v3158 = vunpack.c.l.s4 1983009808
      %v3159 = vunpack.c.0.s8 %v3158
      %v3160 = vlaneseq
      %v3161 = vshrl.u32 %v3160, 7
      %v3162 = vsub.s32 %v3159, %v3161
      %v3163 = vrot.slane %v3156, %v3162
      %v3164 = vcombine.low %v2579, %v3163
      %v3165 = vcombine.low %v2596, %v2606
      %v3166 = vcombine.low %v523, %v532
      %v3168 = vunpack.c.l.s4 1983009808
      %v3169 = vunpack.c.0.s8 %v3168
      %v3170 = vlaneseq
      %v3171 = vshrl.u32 %v3170, 7
      %v3172 = vsub.s32 %v3169, %v3171
      %v3173 = vrot.slane %v3166, %v3172
      %v3174 = vcombine.low %v3173, %v2623
      %v3175 = vcombine.low %v2630, %v2640
      %v3176 = vcombine.low %v565, %v573
      %v3178 = vunpack.c.l.s4 1983009808
      %v3179 = vunpack.c.0.s8 %v3178
      %v3180 = vlaneseq
      %v3181 = vshrl.u32 %v3180, 7
      %v3182 = vsub.s32 %v3179, %v3181
      %v3183 = vrot.slane %v3176, %v3182
      %v3184 = vcombine.low %v3183, %v2657
      %v3185 = vcombine.low %v589, %v598
      %v3187 = vunpack.c.l.s4 1983009808
      %v3188 = vunpack.c.0.s8 %v3187
      %v3189 = vlaneseq
      %v3190 = vshrl.u32 %v3189, 7
      %v3191 = vsub.s32 %v3188, %v3190
      %v3192 = vrot.slane %v3185, %v3191
      %v3193 = vcombine.low %v2664, %v3192
      %v3194 = vcombine.low %v2681, %v2691
      %v3195 = vcombine.low %v631, %v639
      %v3197 = vunpack.c.l.s4 1983009808
      %v3198 = vunpack.c.0.s8 %v3197
      %v3199 = vlaneseq
      %v3200 = vshrl.u32 %v3199, 7
      %v3201 = vsub.s32 %v3198, %v3200
      %v3202 = vrot.slane %v3195, %v3201
      %v3203 = vcombine.low %v2698, %v3202
      %v3204 = vcombine.low %v2715, %v2725
      %v3205 = vcombine.low %v655, %v664
      %v3207 = vunpack.c.l.s4 1983009808
      %v3208 = vunpack.c.0.s8 %v3207
      %v3209 = vlaneseq
      %v3210 = vshrl.u32 %v3209, 7
      %v3211 = vsub.s32 %v3208, %v3210
      %v3212 = vrot.slane %v3205, %v3211
      %v3213 = vcombine.low %v3212, %v2742
      %v3214 = vcombine.low %v2749, %v2759
      %v3215 = vcombine.low %v697, %v705
      %v3217 = vunpack.c.l.s4 1983009808
      %v3218 = vunpack.c.0.s8 %v3217
      %v3219 = vlaneseq
      %v3220 = vshrl.u32 %v3219, 7
      %v3221 = vsub.s32 %v3218, %v3220
      %v3222 = vrot.slane %v3215, %v3221
      %v3223 = vcombine.low %v3222, %v2776
      %v3224 = vcombine.low %v721, %v3070
      %v3226 = vunpack.c.l.s4 1983009808
      %v3227 = vunpack.c.0.s8 %v3226
      %v3228 = vlaneseq
      %v3229 = vshrl.u32 %v3228, 7
      %v3230 = vsub.s32 %v3227, %v3229
      %v3231 = vrot.slane %v3224, %v3230
      %v3232 = vcombine.low %v2783, %v3231
      %v3233 = vcombine.low %v3078, %v3077
      %v3234 = vcombine.low %v3079, %v3087
      %v3236 = vunpack.c.l.s4 1983009808
      %v3237 = vunpack.c.0.s8 %v3236
      %v3238 = vlaneseq
      %v3239 = vshrl.u32 %v3238, 7
      %v3240 = vsub.s32 %v3237, %v3239
      %v3241 = vrot.slane %v3233, %v3240
      %v3243 = vunpack.c.l.s4 1983009808
      %v3244 = vunpack.c.0.s8 %v3243
      %v3245 = vlaneseq
      %v3246 = vshrl.u32 %v3245, 7
      %v3247 = vsub.s32 %v3244, %v3246
      %v3248 = vrot.slane %v3234, %v3247
      %v3249 = vcombine.low %v3241, %v3248
      %v3250 = vcombine.low %v3095, %v3094
      %v3252 = vunpack.c.l.s4 1983009808
      %v3253 = vunpack.c.0.s8 %v3252
      %v3254 = vlaneseq
      %v3255 = vshrl.u32 %v3254, 7
      %v3256 = vsub.s32 %v3253, %v3255
      %v3257 = vrot.slane %v3250, %v3256
      %v3258 = vsel %vm1471, %v3106, 0
      %v3260 = vsel %vm1471, %v3115, 0
      %v3262 = vsel %vm1471, %v3116, 0
      %v3264 = vsel %vm1471, %v3125, 0
      %v3266 = vsel %vm1471, %v3126, 0
      %v3268 = vsel %vm1471, %v3135, 0
      %v3270 = vsel %vm1471, %v3136, 0
      %v3272 = vsel %vm1471, %v3145, 0
      %v3274 = vsel %vm1471, %v3154, 0
      %v3276 = vsel %vm1471, %v3155, 0
      %v3278 = vsel %vm1471, %v3164, 0
      %v3280 = vsel %vm1471, %v3165, 0
      %v3282 = vsel %vm1471, %v3174, 0
      %v3284 = vsel %vm1471, %v3175, 0
      %v3286 = vsel %vm1471, %v3184, 0
      %v3288 = vsel %vm1471, %v3193, 0
      %v3290 = vsel %vm1471, %v3194, 0
      %v3292 = vsel %vm1471, %v3203, 0
      %v3294 = vsel %vm1471, %v3204, 0
      %v3296 = vsel %vm1471, %v3213, 0
      %v3298 = vsel %vm1471, %v3214, 0
      %v3300 = vsel %vm1471, %v3223, 0
      %v3302 = vsel %vm1471, %v3232, 0
      %v3304 = vsel %vm1471, %v3249, 0
      %v3306 = vsel %vm1471, %v3257, 0
      %v3309 = vsel %vm1522, %v3097, 0
      %3311 = vmatprep.subr.mxu0 0.0
      %3312 = vmatpush1.msra.mxu0 %v3309
      %3313 = vmatprep.subr.mxu0 0.0
      %3314 = vmatpush1.msra.mxu0 0.0
      %3315 = vmatprep.subr.mxu0 0.0
      %3316 = vmatpush1.msra.mxu0 0.0
      %3317 = vmatprep.subr.mxu0 0.0
      %3318 = vmatpush1.msra.mxu0 0.0
      %3319 = vmatprep.subr.mxu0 0.0
      %3320 = vmatpush1.msra.mxu0 0.0
      %3321 = vmatprep.subr.mxu0 0.0
      %3322 = vmatpush1.msra.mxu0 0.0
      %3323 = vmatprep.subr.mxu0 0.0
      %3324 = vmatpush1.msra.mxu0 0.0
      %3325 = vmatprep.subr.mxu0 0.0
      %3326 = vmatpush1.msra.mxu0 0.0
      %3327 = vmatprep.subr.mxu0 0.0
      %3328 = vmatpush1.msra.mxu0 0.0
      %3329 = vmatprep.subr.mxu0 0.0
      %3330 = vmatpush1.msra.mxu0 0.0
      %3331 = vmatprep.subr.mxu0 0.0
      %3332 = vmatpush1.msra.mxu0 0.0
      %3333 = vmatprep.subr.mxu0 0.0
      %3334 = vmatpush1.msra.mxu0 0.0
      %3335 = vmatprep.subr.mxu0 0.0
      %3336 = vmatpush1.msra.mxu0 0.0
      %3337 = vmatprep.subr.mxu0 0.0
      %3338 = vmatpush1.msra.mxu0 0.0
      %3339 = vmatprep.subr.mxu0 0.0
      %3340 = vmatpush1.msra.mxu0 0.0
      %3341 = vmatprep.subr.mxu0 0.0
      %3342 = vmatpush1.msra.mxu0 0.0
      %3343 = vmatprep.subr.mxu0 0.0
      %3344 = vmatpush1.msra.mxu0 0.0
      %3345 = vmatprep.subr.mxu0 0.0
      %3346 = vmatpush1.msra.mxu0 0.0
      %3347 = vmatprep.subr.mxu0 0.0
      %3348 = vmatpush1.msra.mxu0 0.0
      %3349 = vmatprep.subr.mxu0 0.0
      %3350 = vmatpush1.msra.mxu0 0.0
      %3351 = vmatprep.subr.mxu0 0.0
      %3352 = vmatpush1.msra.mxu0 0.0
      %3353 = vmatprep.subr.mxu0 0.0
      %3354 = vmatpush1.msra.mxu0 0.0
      %3355 = vmatprep.subr.mxu0 0.0
      %3356 = vmatpush1.msra.mxu0 0.0
      %3357 = vmatprep.subr.mxu0 0.0
      %3358 = vmatpush1.msra.mxu0 0.0
      %3359 = vmatprep.subr.mxu0 0.0
      %3360 = vmatpush1.msra.mxu0 0.0
      %3361 = vmatprep.subr.mxu0 0.0
      %3362 = vmatpush1.msra.mxu0 0.0
      %3363 = vmatprep.subr.mxu0 0.0
      %3364 = vmatpush1.msra.mxu0 0.0
      %3365 = vmatprep.subr.mxu0 0.0
      %3366 = vmatpush1.msra.mxu0 0.0
      %3367 = vmatprep.subr.mxu0 0.0
      %3368 = vmatpush1.msra.mxu0 0.0
      %3369 = vmatprep.subr.mxu0 0.0
      %3370 = vmatpush1.msra.mxu0 0.0
      %3371 = vmatprep.subr.mxu0 0.0
      %3372 = vmatpush1.msra.mxu0 0.0
      %3373 = vmatprep.subr.mxu0 0.0
      %3374 = vmatpush1.msra.mxu0 0.0
      %3375 = vmatprep.mubr.f32.mxu0 0.0
      %3376 = vmatmul.mubr.f32.gmra.mrb[0].mxu0 %v3258
      %v3377 = vpop.f32.mrb[0].mxu0
      %v3378 = vadd.f32 0.0, %v3377
      %v3379 = vpop.f32.mrb[0].mxu0
      %3380 = vmatprep.mubr.f32.mxu0 0.0
      %3381 = vmatmul.mubr.f32.gmra.mrb[0].mxu0 %v3260
      %v3382 = vpop.f32.mrb[0].mxu0
      %v3383 = vadd.f32 0.0, %v3382
      %v3384 = vpop.f32.mrb[0].mxu0
      %3385 = vmatprep.mubr.f32.mxu0 0.0
      %3386 = vmatmul.mubr.f32.gmra.mrb[0].mxu0 %v3262
      %v3387 = vpop.f32.mrb[0].mxu0
      %v3388 = vadd.f32 0.0, %v3387
      %v3389 = vpop.f32.mrb[0].mxu0
      %3390 = vmatprep.mubr.f32.mxu0 0.0
      %3391 = vmatmul.mubr.f32.gmra.mrb[0].mxu0 %v3264
      %v3392 = vpop.f32.mrb[0].mxu0
      %v3393 = vadd.f32 0.0, %v3392
      %v3394 = vpop.f32.mrb[0].mxu0
      %3395 = vmatprep.mubr.f32.mxu0 0.0
      %3396 = vmatmul.mubr.f32.gmra.mrb[0].mxu0 %v3266
      %v3397 = vpop.f32.mrb[0].mxu0
      %v3398 = vadd.f32 0.0, %v3397
      %v3399 = vpop.f32.mrb[0].mxu0
      %3400 = vmatprep.mubr.f32.mxu0 0.0
      %3401 = vmatmul.mubr.f32.gmra.mrb[0].mxu0 %v3268
      %v3402 = vpop.f32.mrb[0].mxu0
      %v3403 = vadd.f32 0.0, %v3402
      %v3404 = vpop.f32.mrb[0].mxu0
      %3405 = vmatprep.mubr.f32.mxu0 0.0
      %3406 = vmatmul.mubr.f32.gmra.mrb[0].mxu0 %v3270
      %v3407 = vpop.f32.mrb[0].mxu0
      %v3408 = vadd.f32 0.0, %v3407
      %v3409 = vpop.f32.mrb[0].mxu0
      %3410 = vmatprep.mubr.f32.mxu0 0.0
      %3411 = vmatmul.mubr.f32.gmra.mrb[0].mxu0 %v3272
      %v3412 = vpop.f32.mrb[0].mxu0
      %v3413 = vadd.f32 0.0, %v3412
      %v3414 = vpop.f32.mrb[0].mxu0
      %3415 = vmatprep.mubr.f32.mxu0 0.0
      %3416 = vmatmul.mubr.f32.gmra.mrb[0].mxu0 %v3274
      %v3417 = vpop.f32.mrb[0].mxu0
      %v3418 = vadd.f32 0.0, %v3417
      %v3419 = vpop.f32.mrb[0].mxu0
      %3420 = vmatprep.mubr.f32.mxu0 0.0
      %3421 = vmatmul.mubr.f32.gmra.mrb[0].mxu0 %v3276
      %v3422 = vpop.f32.mrb[0].mxu0
      %v3423 = vadd.f32 0.0, %v3422
      %v3424 = vpop.f32.mrb[0].mxu0
      %3425 = vmatprep.mubr.f32.mxu0 0.0
      %3426 = vmatmul.mubr.f32.gmra.mrb[0].mxu0 %v3278
      %v3427 = vpop.f32.mrb[0].mxu0
      %v3428 = vadd.f32 0.0, %v3427
      %v3429 = vpop.f32.mrb[0].mxu0
      %3430 = vmatprep.mubr.f32.mxu0 0.0
      %3431 = vmatmul.mubr.f32.gmra.mrb[0].mxu0 %v3280
      %v3432 = vpop.f32.mrb[0].mxu0
      %v3433 = vadd.f32 0.0, %v3432
      %v3434 = vpop.f32.mrb[0].mxu0
      %3435 = vmatprep.mubr.f32.mxu0 0.0
      %3436 = vmatmul.mubr.f32.gmra.mrb[0].mxu0 %v3282
      %v3437 = vpop.f32.mrb[0].mxu0
      %v3438 = vadd.f32 0.0, %v3437
      %v3439 = vpop.f32.mrb[0].mxu0
      %3440 = vmatprep.mubr.f32.mxu0 0.0
      %3441 = vmatmul.mubr.f32.gmra.mrb[0].mxu0 %v3284
      %v3442 = vpop.f32.mrb[0].mxu0
      %v3443 = vadd.f32 0.0, %v3442
      %v3444 = vpop.f32.mrb[0].mxu0
      %3445 = vmatprep.mubr.f32.mxu0 0.0
      %3446 = vmatmul.mubr.f32.gmra.mrb[0].mxu0 %v3286
      %v3447 = vpop.f32.mrb[0].mxu0
      %v3448 = vadd.f32 0.0, %v3447
      %v3449 = vpop.f32.mrb[0].mxu0
      %3450 = vmatprep.mubr.f32.mxu0 0.0
      %3451 = vmatmul.mubr.f32.gmra.mrb[0].mxu0 %v3288
      %v3452 = vpop.f32.mrb[0].mxu0
      %v3453 = vadd.f32 0.0, %v3452
      %v3454 = vpop.f32.mrb[0].mxu0
      %3455 = vmatprep.mubr.f32.mxu0 0.0
      %3456 = vmatmul.mubr.f32.gmra.mrb[0].mxu0 %v3290
      %v3457 = vpop.f32.mrb[0].mxu0
      %v3458 = vadd.f32 0.0, %v3457
      %v3459 = vpop.f32.mrb[0].mxu0
      %3460 = vmatprep.mubr.f32.mxu0 0.0
      %3461 = vmatmul.mubr.f32.gmra.mrb[0].mxu0 %v3292
      %v3462 = vpop.f32.mrb[0].mxu0
      %v3463 = vadd.f32 0.0, %v3462
      %v3464 = vpop.f32.mrb[0].mxu0
      %3465 = vmatprep.mubr.f32.mxu0 0.0
      %3466 = vmatmul.mubr.f32.gmra.mrb[0].mxu0 %v3294
      %v3467 = vpop.f32.mrb[0].mxu0
      %v3468 = vadd.f32 0.0, %v3467
      %v3469 = vpop.f32.mrb[0].mxu0
      %3470 = vmatprep.mubr.f32.mxu0 0.0
      %3471 = vmatmul.mubr.f32.gmra.mrb[0].mxu0 %v3296
      %v3472 = vpop.f32.mrb[0].mxu0
      %v3473 = vadd.f32 0.0, %v3472
      %v3474 = vpop.f32.mrb[0].mxu0
      %3475 = vmatprep.mubr.f32.mxu0 0.0
      %3476 = vmatmul.mubr.f32.gmra.mrb[0].mxu0 %v3298
      %v3477 = vpop.f32.mrb[0].mxu0
      %v3478 = vadd.f32 0.0, %v3477
      %v3479 = vpop.f32.mrb[0].mxu0
      %3480 = vmatprep.mubr.f32.mxu0 0.0
      %3481 = vmatmul.mubr.f32.gmra.mrb[0].mxu0 %v3300
      %v3482 = vpop.f32.mrb[0].mxu0
      %v3483 = vadd.f32 0.0, %v3482
      %v3484 = vpop.f32.mrb[0].mxu0
      %3485 = vmatprep.mubr.f32.mxu0 0.0
      %3486 = vmatmul.mubr.f32.gmra.mrb[0].mxu0 %v3302
      %v3487 = vpop.f32.mrb[0].mxu0
      %v3488 = vadd.f32 0.0, %v3487
      %v3489 = vpop.f32.mrb[0].mxu0
      %3490 = vmatprep.mubr.f32.mxu0 0.0
      %3491 = vmatmul.mubr.f32.gmra.mrb[0].mxu0 %v3304
      %v3492 = vpop.f32.mrb[0].mxu0
      %v3493 = vadd.f32 0.0, %v3492
      %v3494 = vpop.f32.mrb[0].mxu0
      %3495 = vmatprep.mubr.f32.mxu0 0.0
      %3496 = vmatmul.mubr.f32.gmra.mrb[0].mxu0 %v3306
      %v3497 = vpop.f32.mrb[0].mxu0
      %v3498 = vadd.f32 0.0, %v3497
      %v3499 = vpop.f32.mrb[0].mxu0
      %3500 = vdwg.mxu0
      %v3501 = vadd.f32 %v3036, %v3378
      %v3502 = vadd.f32 %v3037, %v3383
      %v3503 = vadd.f32 %v3038, %v3388
      %v3504 = vadd.f32 %v3039, %v3393
      %v3505 = vadd.f32 %v3040, %v3398
      %v3506 = vadd.f32 %v3041, %v3403
      %v3507 = vadd.f32 %v3042, %v3408
      %v3508 = vadd.f32 %v3043, %v3413
      %v3509 = vadd.f32 %v3044, %v3418
      %v3510 = vadd.f32 %v3045, %v3423
      %v3511 = vadd.f32 %v3046, %v3428
      %v3512 = vadd.f32 %v3047, %v3433
      %v3513 = vadd.f32 %v3048, %v3438
      %v3514 = vadd.f32 %v3049, %v3443
      %v3515 = vadd.f32 %v3050, %v3448
      %v3516 = vadd.f32 %v3051, %v3453
      %v3517 = vadd.f32 %v3052, %v3458
      %v3518 = vadd.f32 %v3053, %v3463
      %v3519 = vadd.f32 %v3054, %v3468
      %v3520 = vadd.f32 %v3055, %v3473
      %v3521 = vadd.f32 %v3056, %v3478
      %v3522 = vadd.f32 %v3057, %v3483
      %v3523 = vadd.f32 %v3058, %v3488
      %v3524 = vadd.f32 %v3059, %v3493
      %v3525 = vadd.f32 %v3060, %v3498
      %v3526 = vcombine.high %v3094, %v3094
      %v3527 = vrot.slane %v3070, 7
      %v3528 = vrot.slane %v3527, 2
      %v3529 = vrot.slane %v3078, 7
      %v3530 = vsel %vm744, %v3528, %v3529
      %v3531 = vrot.slane %v3529, 2
      %v3532 = vrot.slane %v3077, 7
      %v3533 = vsel %vm744, %v3531, %v3532
      %v3534 = vrot.slane %v3532, 2
      %v3535 = vrot.slane %v3079, 7
      %v3536 = vsel %vm744, %v3534, %v3535
      %v3537 = vrot.slane %v3535, 2
      %v3538 = vrot.slane %v3087, 7
      %v3539 = vsel %vm744, %v3537, %v3538
      %v3540 = vrot.slane %v3538, 2
      %v3541 = vrot.slane %v3095, 7
      %v3542 = vsel %vm744, %v3540, %v3541
      %v3543 = vrot.slane %v3541, 2
      %v3544 = vrot.slane %v3094, 7
      %v3545 = vsel %vm744, %v3543, %v3544
      %v3546 = vrot.slane %v3544, 2
      %v3547 = vrot.slane %v3526, 7
      %v3548 = vsel %vm744, %v3546, %v3547
      %s3549 = scalar_lea.vmem %s186, 16
      %v3550 = vld [vmem:[%s3549] sm:$0xf]
      %v3551 = vcombine.low %v770, %v773
      %v3552 = vcombine.low %v776, %v779
      %v3554 = vunpack.c.l.s4 1983009808
      %v3555 = vunpack.c.0.s8 %v3554
      %v3556 = vlaneseq
      %v3557 = vshrl.u32 %v3556, 7
      %v3558 = vsub.s32 %v3555, %v3557
      %v3559 = vrot.slane %v3551, %v3558
      %v3561 = vunpack.c.l.s4 1983009808
      %v3562 = vunpack.c.0.s8 %v3561
      %v3563 = vlaneseq
      %v3564 = vshrl.u32 %v3563, 7
      %v3565 = vsub.s32 %v3562, %v3564
      %v3566 = vrot.slane %v3552, %v3565
      %v3567 = vcombine.low %v3559, %v3566
      %v3568 = vcombine.low %v782, %v785
      %v3569 = vcombine.low %v788, %v792
      %v3571 = vunpack.c.l.s4 1983009808
      %v3572 = vunpack.c.0.s8 %v3571
      %v3573 = vlaneseq
      %v3574 = vshrl.u32 %v3573, 7
      %v3575 = vsub.s32 %v3572, %v3574
      %v3576 = vrot.slane %v3568, %v3575
      %v3578 = vunpack.c.l.s4 1983009808
      %v3579 = vunpack.c.0.s8 %v3578
      %v3580 = vlaneseq
      %v3581 = vshrl.u32 %v3580, 7
      %v3582 = vsub.s32 %v3579, %v3581
      %v3583 = vrot.slane %v3569, %v3582
      %v3584 = vcombine.low %v3576, %v3583
      %v3585 = vcombine.low %v795, %v798
      %v3586 = vcombine.low %v801, %v804
      %v3588 = vunpack.c.l.s4 1983009808
      %v3589 = vunpack.c.0.s8 %v3588
      %v3590 = vlaneseq
      %v3591 = vshrl.u32 %v3590, 7
      %v3592 = vsub.s32 %v3589, %v3591
      %v3593 = vrot.slane %v3585, %v3592
      %v3595 = vunpack.c.l.s4 1983009808
      %v3596 = vunpack.c.0.s8 %v3595
      %v3597 = vlaneseq
      %v3598 = vshrl.u32 %v3597, 7
      %v3599 = vsub.s32 %v3596, %v3598
      %v3600 = vrot.slane %v3586, %v3599
      %v3601 = vcombine.low %v3593, %v3600
      %v3602 = vcombine.low %v807, %v810
      %v3603 = vcombine.low %v814, %v817
      %v3605 = vunpack.c.l.s4 1983009808
      %v3606 = vunpack.c.0.s8 %v3605
      %v3607 = vlaneseq
      %v3608 = vshrl.u32 %v3607, 7
      %v3609 = vsub.s32 %v3606, %v3608
      %v3610 = vrot.slane %v3602, %v3609
      %v3612 = vunpack.c.l.s4 1983009808
      %v3613 = vunpack.c.0.s8 %v3612
      %v3614 = vlaneseq
      %v3615 = vshrl.u32 %v3614, 7
      %v3616 = vsub.s32 %v3613, %v3615
      %v3617 = vrot.slane %v3603, %v3616
      %v3618 = vcombine.low %v3610, %v3617
      %v3619 = vcombine.low %v820, %v823
      %v3620 = vcombine.low %v826, %v829
      %v3622 = vunpack.c.l.s4 1983009808
      %v3623 = vunpack.c.0.s8 %v3622
      %v3624 = vlaneseq
      %v3625 = vshrl.u32 %v3624, 7
      %v3626 = vsub.s32 %v3623, %v3625
      %v3627 = vrot.slane %v3619, %v3626
      %v3629 = vunpack.c.l.s4 1983009808
      %v3630 = vunpack.c.0.s8 %v3629
      %v3631 = vlaneseq
      %v3632 = vshrl.u32 %v3631, 7
      %v3633 = vsub.s32 %v3630, %v3632
      %v3634 = vrot.slane %v3620, %v3633
      %v3635 = vcombine.low %v3627, %v3634
      %v3636 = vcombine.low %v832, %v836
      %v3637 = vcombine.low %v839, %v842
      %v3639 = vunpack.c.l.s4 1983009808
      %v3640 = vunpack.c.0.s8 %v3639
      %v3641 = vlaneseq
      %v3642 = vshrl.u32 %v3641, 7
      %v3643 = vsub.s32 %v3640, %v3642
      %v3644 = vrot.slane %v3636, %v3643
      %v3646 = vunpack.c.l.s4 1983009808
      %v3647 = vunpack.c.0.s8 %v3646
      %v3648 = vlaneseq
      %v3649 = vshrl.u32 %v3648, 7
      %v3650 = vsub.s32 %v3647, %v3649
      %v3651 = vrot.slane %v3637, %v3650
      %v3652 = vcombine.low %v3644, %v3651
      %v3653 = vcombine.low %v845, %v848
      %v3654 = vcombine.low %v851, %v854
      %v3656 = vunpack.c.l.s4 1983009808
      %v3657 = vunpack.c.0.s8 %v3656
      %v3658 = vlaneseq
      %v3659 = vshrl.u32 %v3658, 7
      %v3660 = vsub.s32 %v3657, %v3659
      %v3661 = vrot.slane %v3653, %v3660
      %v3663 = vunpack.c.l.s4 1983009808
      %v3664 = vunpack.c.0.s8 %v3663
      %v3665 = vlaneseq
      %v3666 = vshrl.u32 %v3665, 7
      %v3667 = vsub.s32 %v3664, %v3666
      %v3668 = vrot.slane %v3654, %v3667
      %v3669 = vcombine.low %v3661, %v3668
      %v3670 = vcombine.low %v858, %v861
      %v3671 = vcombine.low %v864, %v867
      %v3673 = vunpack.c.l.s4 1983009808
      %v3674 = vunpack.c.0.s8 %v3673
      %v3675 = vlaneseq
      %v3676 = vshrl.u32 %v3675, 7
      %v3677 = vsub.s32 %v3674, %v3676
      %v3678 = vrot.slane %v3670, %v3677
      %v3680 = vunpack.c.l.s4 1983009808
      %v3681 = vunpack.c.0.s8 %v3680
      %v3682 = vlaneseq
      %v3683 = vshrl.u32 %v3682, 7
      %v3684 = vsub.s32 %v3681, %v3683
      %v3685 = vrot.slane %v3671, %v3684
      %v3686 = vcombine.low %v3678, %v3685
      %v3687 = vcombine.low %v870, %v873
      %v3688 = vcombine.low %v876, %v880
      %v3690 = vunpack.c.l.s4 1983009808
      %v3691 = vunpack.c.0.s8 %v3690
      %v3692 = vlaneseq
      %v3693 = vshrl.u32 %v3692, 7
      %v3694 = vsub.s32 %v3691, %v3693
      %v3695 = vrot.slane %v3687, %v3694
      %v3697 = vunpack.c.l.s4 1983009808
      %v3698 = vunpack.c.0.s8 %v3697
      %v3699 = vlaneseq
      %v3700 = vshrl.u32 %v3699, 7
      %v3701 = vsub.s32 %v3698, %v3700
      %v3702 = vrot.slane %v3688, %v3701
      %v3703 = vcombine.low %v3695, %v3702
      %v3704 = vcombine.low %v883, %v886
      %v3705 = vcombine.low %v889, %v892
      %v3707 = vunpack.c.l.s4 1983009808
      %v3708 = vunpack.c.0.s8 %v3707
      %v3709 = vlaneseq
      %v3710 = vshrl.u32 %v3709, 7
      %v3711 = vsub.s32 %v3708, %v3710
      %v3712 = vrot.slane %v3704, %v3711
      %v3714 = vunpack.c.l.s4 1983009808
      %v3715 = vunpack.c.0.s8 %v3714
      %v3716 = vlaneseq
      %v3717 = vshrl.u32 %v3716, 7
      %v3718 = vsub.s32 %v3715, %v3717
      %v3719 = vrot.slane %v3705, %v3718
      %v3720 = vcombine.low %v3712, %v3719
      %v3721 = vcombine.low %v895, %v898
      %v3722 = vcombine.low %v902, %v905
      %v3724 = vunpack.c.l.s4 1983009808
      %v3725 = vunpack.c.0.s8 %v3724
      %v3726 = vlaneseq
      %v3727 = vshrl.u32 %v3726, 7
      %v3728 = vsub.s32 %v3725, %v3727
      %v3729 = vrot.slane %v3721, %v3728
      %v3731 = vunpack.c.l.s4 1983009808
      %v3732 = vunpack.c.0.s8 %v3731
      %v3733 = vlaneseq
      %v3734 = vshrl.u32 %v3733, 7
      %v3735 = vsub.s32 %v3732, %v3734
      %v3736 = vrot.slane %v3722, %v3735
      %v3737 = vcombine.low %v3729, %v3736
      %v3738 = vcombine.low %v908, %v911
      %v3739 = vcombine.low %v914, %v917
      %v3741 = vunpack.c.l.s4 1983009808
      %v3742 = vunpack.c.0.s8 %v3741
      %v3743 = vlaneseq
      %v3744 = vshrl.u32 %v3743, 7
      %v3745 = vsub.s32 %v3742, %v3744
      %v3746 = vrot.slane %v3738, %v3745
      %v3748 = vunpack.c.l.s4 1983009808
      %v3749 = vunpack.c.0.s8 %v3748
      %v3750 = vlaneseq
      %v3751 = vshrl.u32 %v3750, 7
      %v3752 = vsub.s32 %v3749, %v3751
      %v3753 = vrot.slane %v3739, %v3752
      %v3754 = vcombine.low %v3746, %v3753
      %v3755 = vcombine.low %v920, %v924
      %v3756 = vcombine.low %v927, %v930
      %v3758 = vunpack.c.l.s4 1983009808
      %v3759 = vunpack.c.0.s8 %v3758
      %v3760 = vlaneseq
      %v3761 = vshrl.u32 %v3760, 7
      %v3762 = vsub.s32 %v3759, %v3761
      %v3763 = vrot.slane %v3755, %v3762
      %v3765 = vunpack.c.l.s4 1983009808
      %v3766 = vunpack.c.0.s8 %v3765
      %v3767 = vlaneseq
      %v3768 = vshrl.u32 %v3767, 7
      %v3769 = vsub.s32 %v3766, %v3768
      %v3770 = vrot.slane %v3756, %v3769
      %v3771 = vcombine.low %v3763, %v3770
      %v3772 = vcombine.low %v933, %v936
      %v3773 = vcombine.low %v939, %v942
      %v3775 = vunpack.c.l.s4 1983009808
      %v3776 = vunpack.c.0.s8 %v3775
      %v3777 = vlaneseq
      %v3778 = vshrl.u32 %v3777, 7
      %v3779 = vsub.s32 %v3776, %v3778
      %v3780 = vrot.slane %v3772, %v3779
      %v3782 = vunpack.c.l.s4 1983009808
      %v3783 = vunpack.c.0.s8 %v3782
      %v3784 = vlaneseq
      %v3785 = vshrl.u32 %v3784, 7
      %v3786 = vsub.s32 %v3783, %v3785
      %v3787 = vrot.slane %v3773, %v3786
      %v3788 = vcombine.low %v3780, %v3787
      %v3789 = vcombine.low %v946, %v949
      %v3790 = vcombine.low %v952, %v955
      %v3792 = vunpack.c.l.s4 1983009808
      %v3793 = vunpack.c.0.s8 %v3792
      %v3794 = vlaneseq
      %v3795 = vshrl.u32 %v3794, 7
      %v3796 = vsub.s32 %v3793, %v3795
      %v3797 = vrot.slane %v3789, %v3796
      %v3799 = vunpack.c.l.s4 1983009808
      %v3800 = vunpack.c.0.s8 %v3799
      %v3801 = vlaneseq
      %v3802 = vshrl.u32 %v3801, 7
      %v3803 = vsub.s32 %v3800, %v3802
      %v3804 = vrot.slane %v3790, %v3803
      %v3805 = vcombine.low %v3797, %v3804
      %v3806 = vcombine.low %v958, %v961
      %v3807 = vcombine.low %v964, %v968
      %v3809 = vunpack.c.l.s4 1983009808
      %v3810 = vunpack.c.0.s8 %v3809
      %v3811 = vlaneseq
      %v3812 = vshrl.u32 %v3811, 7
      %v3813 = vsub.s32 %v3810, %v3812
      %v3814 = vrot.slane %v3806, %v3813
      %v3816 = vunpack.c.l.s4 1983009808
      %v3817 = vunpack.c.0.s8 %v3816
      %v3818 = vlaneseq
      %v3819 = vshrl.u32 %v3818, 7
      %v3820 = vsub.s32 %v3817, %v3819
      %v3821 = vrot.slane %v3807, %v3820
      %v3822 = vcombine.low %v3814, %v3821
      %v3823 = vcombine.low %v971, %v974
      %v3824 = vcombine.low %v977, %v980
      %v3826 = vunpack.c.l.s4 1983009808
      %v3827 = vunpack.c.0.s8 %v3826
      %v3828 = vlaneseq
      %v3829 = vshrl.u32 %v3828, 7
      %v3830 = vsub.s32 %v3827, %v3829
      %v3831 = vrot.slane %v3823, %v3830
      %v3833 = vunpack.c.l.s4 1983009808
      %v3834 = vunpack.c.0.s8 %v3833
      %v3835 = vlaneseq
      %v3836 = vshrl.u32 %v3835, 7
      %v3837 = vsub.s32 %v3834, %v3836
      %v3838 = vrot.slane %v3824, %v3837
      %v3839 = vcombine.low %v3831, %v3838
      %v3840 = vcombine.low %v983, %v986
      %v3841 = vcombine.low %v990, %v993
      %v3843 = vunpack.c.l.s4 1983009808
      %v3844 = vunpack.c.0.s8 %v3843
      %v3845 = vlaneseq
      %v3846 = vshrl.u32 %v3845, 7
      %v3847 = vsub.s32 %v3844, %v3846
      %v3848 = vrot.slane %v3840, %v3847
      %v3850 = vunpack.c.l.s4 1983009808
      %v3851 = vunpack.c.0.s8 %v3850
      %v3852 = vlaneseq
      %v3853 = vshrl.u32 %v3852, 7
      %v3854 = vsub.s32 %v3851, %v3853
      %v3855 = vrot.slane %v3841, %v3854
      %v3856 = vcombine.low %v3848, %v3855
      %v3857 = vcombine.low %v996, %v999
      %v3858 = vcombine.low %v1002, %v1005
      %v3860 = vunpack.c.l.s4 1983009808
      %v3861 = vunpack.c.0.s8 %v3860
      %v3862 = vlaneseq
      %v3863 = vshrl.u32 %v3862, 7
      %v3864 = vsub.s32 %v3861, %v3863
      %v3865 = vrot.slane %v3857, %v3864
      %v3867 = vunpack.c.l.s4 1983009808
      %v3868 = vunpack.c.0.s8 %v3867
      %v3869 = vlaneseq
      %v3870 = vshrl.u32 %v3869, 7
      %v3871 = vsub.s32 %v3868, %v3870
      %v3872 = vrot.slane %v3858, %v3871
      %v3873 = vcombine.low %v3865, %v3872
      %v3874 = vcombine.low %v1008, %v1012
      %v3875 = vcombine.low %v1015, %v1018
      %v3877 = vunpack.c.l.s4 1983009808
      %v3878 = vunpack.c.0.s8 %v3877
      %v3879 = vlaneseq
      %v3880 = vshrl.u32 %v3879, 7
      %v3881 = vsub.s32 %v3878, %v3880
      %v3882 = vrot.slane %v3874, %v3881
      %v3884 = vunpack.c.l.s4 1983009808
      %v3885 = vunpack.c.0.s8 %v3884
      %v3886 = vlaneseq
      %v3887 = vshrl.u32 %v3886, 7
      %v3888 = vsub.s32 %v3885, %v3887
      %v3889 = vrot.slane %v3875, %v3888
      %v3890 = vcombine.low %v3882, %v3889
      %v3891 = vcombine.low %v1021, %v1024
      %v3892 = vcombine.low %v1027, %v1030
      %v3894 = vunpack.c.l.s4 1983009808
      %v3895 = vunpack.c.0.s8 %v3894
      %v3896 = vlaneseq
      %v3897 = vshrl.u32 %v3896, 7
      %v3898 = vsub.s32 %v3895, %v3897
      %v3899 = vrot.slane %v3891, %v3898
      %v3901 = vunpack.c.l.s4 1983009808
      %v3902 = vunpack.c.0.s8 %v3901
      %v3903 = vlaneseq
      %v3904 = vshrl.u32 %v3903, 7
      %v3905 = vsub.s32 %v3902, %v3904
      %v3906 = vrot.slane %v3892, %v3905
      %v3907 = vcombine.low %v3899, %v3906
      %v3908 = vcombine.low %v1034, %v1037
      %v3909 = vcombine.low %v1040, %v1043
      %v3911 = vunpack.c.l.s4 1983009808
      %v3912 = vunpack.c.0.s8 %v3911
      %v3913 = vlaneseq
      %v3914 = vshrl.u32 %v3913, 7
      %v3915 = vsub.s32 %v3912, %v3914
      %v3916 = vrot.slane %v3908, %v3915
      %v3918 = vunpack.c.l.s4 1983009808
      %v3919 = vunpack.c.0.s8 %v3918
      %v3920 = vlaneseq
      %v3921 = vshrl.u32 %v3920, 7
      %v3922 = vsub.s32 %v3919, %v3921
      %v3923 = vrot.slane %v3909, %v3922
      %v3924 = vcombine.low %v3916, %v3923
      %v3925 = vcombine.low %v1046, %v1049
      %v3926 = vcombine.low %v1052, %v3530
      %v3928 = vunpack.c.l.s4 1983009808
      %v3929 = vunpack.c.0.s8 %v3928
      %v3930 = vlaneseq
      %v3931 = vshrl.u32 %v3930, 7
      %v3932 = vsub.s32 %v3929, %v3931
      %v3933 = vrot.slane %v3925, %v3932
      %v3935 = vunpack.c.l.s4 1983009808
      %v3936 = vunpack.c.0.s8 %v3935
      %v3937 = vlaneseq
      %v3938 = vshrl.u32 %v3937, 7
      %v3939 = vsub.s32 %v3936, %v3938
      %v3940 = vrot.slane %v3926, %v3939
      %v3941 = vcombine.low %v3933, %v3940
      %v3942 = vcombine.low %v3533, %v3536
      %v3943 = vcombine.low %v3539, %v3542
      %v3945 = vunpack.c.l.s4 1983009808
      %v3946 = vunpack.c.0.s8 %v3945
      %v3947 = vlaneseq
      %v3948 = vshrl.u32 %v3947, 7
      %v3949 = vsub.s32 %v3946, %v3948
      %v3950 = vrot.slane %v3942, %v3949
      %v3952 = vunpack.c.l.s4 1983009808
      %v3953 = vunpack.c.0.s8 %v3952
      %v3954 = vlaneseq
      %v3955 = vshrl.u32 %v3954, 7
      %v3956 = vsub.s32 %v3953, %v3955
      %v3957 = vrot.slane %v3943, %v3956
      %v3958 = vcombine.low %v3950, %v3957
      %v3959 = vcombine.low %v3545, %v3548
      %v3961 = vunpack.c.l.s4 1983009808
      %v3962 = vunpack.c.0.s8 %v3961
      %v3963 = vlaneseq
      %v3964 = vshrl.u32 %v3963, 7
      %v3965 = vsub.s32 %v3962, %v3964
      %v3966 = vrot.slane %v3959, %v3965
      %v3967 = vsel %vm1471, %v3567, 0
      %v3969 = vsel %vm1471, %v3584, 0
      %v3971 = vsel %vm1471, %v3601, 0
      %v3973 = vsel %vm1471, %v3618, 0
      %v3975 = vsel %vm1471, %v3635, 0
      %v3977 = vsel %vm1471, %v3652, 0
      %v3979 = vsel %vm1471, %v3669, 0
      %v3981 = vsel %vm1471, %v3686, 0
      %v3983 = vsel %vm1471, %v3703, 0
      %v3985 = vsel %vm1471, %v3720, 0
      %v3987 = vsel %vm1471, %v3737, 0
      %v3989 = vsel %vm1471, %v3754, 0
      %v3991 = vsel %vm1471, %v3771, 0
      %v3993 = vsel %vm1471, %v3788, 0
      %v3995 = vsel %vm1471, %v3805, 0
      %v3997 = vsel %vm1471, %v3822, 0
      %v3999 = vsel %vm1471, %v3839, 0
      %v4001 = vsel %vm1471, %v3856, 0
      %v4003 = vsel %vm1471, %v3873, 0
      %v4005 = vsel %vm1471, %v3890, 0
      %v4007 = vsel %vm1471, %v3907, 0
      %v4009 = vsel %vm1471, %v3924, 0
      %v4011 = vsel %vm1471, %v3941, 0
      %v4013 = vsel %vm1471, %v3958, 0
      %v4015 = vsel %vm1471, %v3966, 0
      %v4018 = vsel %vm1522, %v3550, 0
      %4020 = vmatprep.subr.mxu0 0.0
      %4021 = vmatpush1.msra.mxu0 %v4018
      %4022 = vmatprep.subr.mxu0 0.0
      %4023 = vmatpush1.msra.mxu0 0.0
      %4024 = vmatprep.subr.mxu0 0.0
      %4025 = vmatpush1.msra.mxu0 0.0
      %4026 = vmatprep.subr.mxu0 0.0
      %4027 = vmatpush1.msra.mxu0 0.0
      %4028 = vmatprep.subr.mxu0 0.0
      %4029 = vmatpush1.msra.mxu0 0.0
      %4030 = vmatprep.subr.mxu0 0.0
      %4031 = vmatpush1.msra.mxu0 0.0
      %4032 = vmatprep.subr.mxu0 0.0
      %4033 = vmatpush1.msra.mxu0 0.0
      %4034 = vmatprep.subr.mxu0 0.0
      %4035 = vmatpush1.msra.mxu0 0.0
      %4036 = vmatprep.subr.mxu0 0.0
      %4037 = vmatpush1.msra.mxu0 0.0
      %4038 = vmatprep.subr.mxu0 0.0
      %4039 = vmatpush1.msra.mxu0 0.0
      %4040 = vmatprep.subr.mxu0 0.0
      %4041 = vmatpush1.msra.mxu0 0.0
      %4042 = vmatprep.subr.mxu0 0.0
      %4043 = vmatpush1.msra.mxu0 0.0
      %4044 = vmatprep.subr.mxu0 0.0
      %4045 = vmatpush1.msra.mxu0 0.0
      %4046 = vmatprep.subr.mxu0 0.0
      %4047 = vmatpush1.msra.mxu0 0.0
      %4048 = vmatprep.subr.mxu0 0.0
      %4049 = vmatpush1.msra.mxu0 0.0
      %4050 = vmatprep.subr.mxu0 0.0
      %4051 = vmatpush1.msra.mxu0 0.0
      %4052 = vmatprep.subr.mxu0 0.0
      %4053 = vmatpush1.msra.mxu0 0.0
      %4054 = vmatprep.subr.mxu0 0.0
      %4055 = vmatpush1.msra.mxu0 0.0
      %4056 = vmatprep.subr.mxu0 0.0
      %4057 = vmatpush1.msra.mxu0 0.0
      %4058 = vmatprep.subr.mxu0 0.0
      %4059 = vmatpush1.msra.mxu0 0.0
      %4060 = vmatprep.subr.mxu0 0.0
      %4061 = vmatpush1.msra.mxu0 0.0
      %4062 = vmatprep.subr.mxu0 0.0
      %4063 = vmatpush1.msra.mxu0 0.0
      %4064 = vmatprep.subr.mxu0 0.0
      %4065 = vmatpush1.msra.mxu0 0.0
      %4066 = vmatprep.subr.mxu0 0.0
      %4067 = vmatpush1.msra.mxu0 0.0
      %4068 = vmatprep.subr.mxu0 0.0
      %4069 = vmatpush1.msra.mxu0 0.0
      %4070 = vmatprep.subr.mxu0 0.0
      %4071 = vmatpush1.msra.mxu0 0.0
      %4072 = vmatprep.subr.mxu0 0.0
      %4073 = vmatpush1.msra.mxu0 0.0
      %4074 = vmatprep.subr.mxu0 0.0
      %4075 = vmatpush1.msra.mxu0 0.0
      %4076 = vmatprep.subr.mxu0 0.0
      %4077 = vmatpush1.msra.mxu0 0.0
      %4078 = vmatprep.subr.mxu0 0.0
      %4079 = vmatpush1.msra.mxu0 0.0
      %4080 = vmatprep.subr.mxu0 0.0
      %4081 = vmatpush1.msra.mxu0 0.0
      %4082 = vmatprep.subr.mxu0 0.0
      %4083 = vmatpush1.msra.mxu0 0.0
      %4084 = vmatprep.mubr.f32.mxu0 0.0
      %4085 = vmatmul.mubr.f32.gmra.mrb[0].mxu0 %v3967
      %v4086 = vpop.f32.mrb[0].mxu0
      %v4087 = vadd.f32 0.0, %v4086
      %v4088 = vpop.f32.mrb[0].mxu0
      %4089 = vmatprep.mubr.f32.mxu0 0.0
      %4090 = vmatmul.mubr.f32.gmra.mrb[0].mxu0 %v3969
      %v4091 = vpop.f32.mrb[0].mxu0
      %v4092 = vadd.f32 0.0, %v4091
      %v4093 = vpop.f32.mrb[0].mxu0
      %4094 = vmatprep.mubr.f32.mxu0 0.0
      %4095 = vmatmul.mubr.f32.gmra.mrb[0].mxu0 %v3971
      %v4096 = vpop.f32.mrb[0].mxu0
      %v4097 = vadd.f32 0.0, %v4096
      %v4098 = vpop.f32.mrb[0].mxu0
      %4099 = vmatprep.mubr.f32.mxu0 0.0
      %4100 = vmatmul.mubr.f32.gmra.mrb[0].mxu0 %v3973
      %v4101 = vpop.f32.mrb[0].mxu0
      %v4102 = vadd.f32 0.0, %v4101
      %v4103 = vpop.f32.mrb[0].mxu0
      %4104 = vmatprep.mubr.f32.mxu0 0.0
      %4105 = vmatmul.mubr.f32.gmra.mrb[0].mxu0 %v3975
      %v4106 = vpop.f32.mrb[0].mxu0
      %v4107 = vadd.f32 0.0, %v4106
      %v4108 = vpop.f32.mrb[0].mxu0
      %4109 = vmatprep.mubr.f32.mxu0 0.0
      %4110 = vmatmul.mubr.f32.gmra.mrb[0].mxu0 %v3977
      %v4111 = vpop.f32.mrb[0].mxu0
      %v4112 = vadd.f32 0.0, %v4111
      %v4113 = vpop.f32.mrb[0].mxu0
      %4114 = vmatprep.mubr.f32.mxu0 0.0
      %4115 = vmatmul.mubr.f32.gmra.mrb[0].mxu0 %v3979
      %v4116 = vpop.f32.mrb[0].mxu0
      %v4117 = vadd.f32 0.0, %v4116
      %v4118 = vpop.f32.mrb[0].mxu0
      %4119 = vmatprep.mubr.f32.mxu0 0.0
      %4120 = vmatmul.mubr.f32.gmra.mrb[0].mxu0 %v3981
      %v4121 = vpop.f32.mrb[0].mxu0
      %v4122 = vadd.f32 0.0, %v4121
      %v4123 = vpop.f32.mrb[0].mxu0
      %4124 = vmatprep.mubr.f32.mxu0 0.0
      %4125 = vmatmul.mubr.f32.gmra.mrb[0].mxu0 %v3983
      %v4126 = vpop.f32.mrb[0].mxu0
      %v4127 = vadd.f32 0.0, %v4126
      %v4128 = vpop.f32.mrb[0].mxu0
      %4129 = vmatprep.mubr.f32.mxu0 0.0
      %4130 = vmatmul.mubr.f32.gmra.mrb[0].mxu0 %v3985
      %v4131 = vpop.f32.mrb[0].mxu0
      %v4132 = vadd.f32 0.0, %v4131
      %v4133 = vpop.f32.mrb[0].mxu0
      %4134 = vmatprep.mubr.f32.mxu0 0.0
      %4135 = vmatmul.mubr.f32.gmra.mrb[0].mxu0 %v3987
      %v4136 = vpop.f32.mrb[0].mxu0
      %v4137 = vadd.f32 0.0, %v4136
      %v4138 = vpop.f32.mrb[0].mxu0
      %4139 = vmatprep.mubr.f32.mxu0 0.0
      %4140 = vmatmul.mubr.f32.gmra.mrb[0].mxu0 %v3989
      %v4141 = vpop.f32.mrb[0].mxu0
      %v4142 = vadd.f32 0.0, %v4141
      %v4143 = vpop.f32.mrb[0].mxu0
      %4144 = vmatprep.mubr.f32.mxu0 0.0
      %4145 = vmatmul.mubr.f32.gmra.mrb[0].mxu0 %v3991
      %v4146 = vpop.f32.mrb[0].mxu0
      %v4147 = vadd.f32 0.0, %v4146
      %v4148 = vpop.f32.mrb[0].mxu0
      %4149 = vmatprep.mubr.f32.mxu0 0.0
      %4150 = vmatmul.mubr.f32.gmra.mrb[0].mxu0 %v3993
      %v4151 = vpop.f32.mrb[0].mxu0
      %v4152 = vadd.f32 0.0, %v4151
      %v4153 = vpop.f32.mrb[0].mxu0
      %4154 = vmatprep.mubr.f32.mxu0 0.0
      %4155 = vmatmul.mubr.f32.gmra.mrb[0].mxu0 %v3995
      %v4156 = vpop.f32.mrb[0].mxu0
      %v4157 = vadd.f32 0.0, %v4156
      %v4158 = vpop.f32.mrb[0].mxu0
      %4159 = vmatprep.mubr.f32.mxu0 0.0
      %4160 = vmatmul.mubr.f32.gmra.mrb[0].mxu0 %v3997
      %v4161 = vpop.f32.mrb[0].mxu0
      %v4162 = vadd.f32 0.0, %v4161
      %v4163 = vpop.f32.mrb[0].mxu0
      %4164 = vmatprep.mubr.f32.mxu0 0.0
      %4165 = vmatmul.mubr.f32.gmra.mrb[0].mxu0 %v3999
      %v4166 = vpop.f32.mrb[0].mxu0
      %v4167 = vadd.f32 0.0, %v4166
      %v4168 = vpop.f32.mrb[0].mxu0
      %4169 = vmatprep.mubr.f32.mxu0 0.0
      %4170 = vmatmul.mubr.f32.gmra.mrb[0].mxu0 %v4001
      %v4171 = vpop.f32.mrb[0].mxu0
      %v4172 = vadd.f32 0.0, %v4171
      %v4173 = vpop.f32.mrb[0].mxu0
      %4174 = vmatprep.mubr.f32.mxu0 0.0
      %4175 = vmatmul.mubr.f32.gmra.mrb[0].mxu0 %v4003
      %v4176 = vpop.f32.mrb[0].mxu0
      %v4177 = vadd.f32 0.0, %v4176
      %v4178 = vpop.f32.mrb[0].mxu0
      %4179 = vmatprep.mubr.f32.mxu0 0.0
      %4180 = vmatmul.mubr.f32.gmra.mrb[0].mxu0 %v4005
      %v4181 = vpop.f32.mrb[0].mxu0
      %v4182 = vadd.f32 0.0, %v4181
      %v4183 = vpop.f32.mrb[0].mxu0
      %4184 = vmatprep.mubr.f32.mxu0 0.0
      %4185 = vmatmul.mubr.f32.gmra.mrb[0].mxu0 %v4007
      %v4186 = vpop.f32.mrb[0].mxu0
      %v4187 = vadd.f32 0.0, %v4186
      %v4188 = vpop.f32.mrb[0].mxu0
      %4189 = vmatprep.mubr.f32.mxu0 0.0
      %4190 = vmatmul.mubr.f32.gmra.mrb[0].mxu0 %v4009
      %v4191 = vpop.f32.mrb[0].mxu0
      %v4192 = vadd.f32 0.0, %v4191
      %v4193 = vpop.f32.mrb[0].mxu0
      %4194 = vmatprep.mubr.f32.mxu0 0.0
      %4195 = vmatmul.mubr.f32.gmra.mrb[0].mxu0 %v4011
      %v4196 = vpop.f32.mrb[0].mxu0
      %v4197 = vadd.f32 0.0, %v4196
      %v4198 = vpop.f32.mrb[0].mxu0
      %4199 = vmatprep.mubr.f32.mxu0 0.0
      %4200 = vmatmul.mubr.f32.gmra.mrb[0].mxu0 %v4013
      %v4201 = vpop.f32.mrb[0].mxu0
      %v4202 = vadd.f32 0.0, %v4201
      %v4203 = vpop.f32.mrb[0].mxu0
      %4204 = vmatprep.mubr.f32.mxu0 0.0
      %4205 = vmatmul.mubr.f32.gmra.mrb[0].mxu0 %v4015
      %v4206 = vpop.f32.mrb[0].mxu0
      %v4207 = vadd.f32 0.0, %v4206
      %v4208 = vpop.f32.mrb[0].mxu0
      %4209 = vdwg.mxu0
      %v4210 = vadd.f32 %v3501, %v4087
      %v4211 = vadd.f32 %v3502, %v4092
      %v4212 = vadd.f32 %v3503, %v4097
      %v4213 = vadd.f32 %v3504, %v4102
      %v4214 = vadd.f32 %v3505, %v4107
      %v4215 = vadd.f32 %v3506, %v4112
      %v4216 = vadd.f32 %v3507, %v4117
      %v4217 = vadd.f32 %v3508, %v4122
      %v4218 = vadd.f32 %v3509, %v4127
      %v4219 = vadd.f32 %v3510, %v4132
      %v4220 = vadd.f32 %v3511, %v4137
      %v4221 = vadd.f32 %v3512, %v4142
      %v4222 = vadd.f32 %v3513, %v4147
      %v4223 = vadd.f32 %v3514, %v4152
      %v4224 = vadd.f32 %v3515, %v4157
      %v4225 = vadd.f32 %v3516, %v4162
      %v4226 = vadd.f32 %v3517, %v4167
      %v4227 = vadd.f32 %v3518, %v4172
      %v4228 = vadd.f32 %v3519, %v4177
      %v4229 = vadd.f32 %v3520, %v4182
      %v4230 = vadd.f32 %v3521, %v4187
      %v4231 = vadd.f32 %v3522, %v4192
      %v4232 = vadd.f32 %v3523, %v4197
      %v4233 = vadd.f32 %v3524, %v4202
      %v4234 = vadd.f32 %v3525, %v4207
      %s4235 = scalar_lea.vmem %s186, 20
      %v4236 = vld [vmem:[%s4235] sm:$0xf]
      %v4237 = vcombine.low %v725, %v342
      %v4239 = vunpack.c.l.s4 1983009808
      %v4240 = vunpack.c.0.s8 %v4239
      %v4241 = vlaneseq
      %v4242 = vshrl.u32 %v4241, 7
      %v4243 = vsub.s32 %v4240, %v4242
      %v4244 = vrot.slane %v4237, %v4243
      %v4245 = vcombine.low %v1775, %v4244
      %v4246 = vcombine.low %v358, %v726
      %v4248 = vunpack.c.l.s4 1983009808
      %v4249 = vunpack.c.0.s8 %v4248
      %v4250 = vlaneseq
      %v4251 = vshrl.u32 %v4250, 7
      %v4252 = vsub.s32 %v4249, %v4251
      %v4253 = vrot.slane %v4246, %v4252
      %v4254 = vcombine.low %v4253, %v1816
      %v4255 = vcombine.low %v727, %v408
      %v4257 = vunpack.c.l.s4 1983009808
      %v4258 = vunpack.c.0.s8 %v4257
      %v4259 = vlaneseq
      %v4260 = vshrl.u32 %v4259, 7
      %v4261 = vsub.s32 %v4258, %v4260
      %v4262 = vrot.slane %v4255, %v4261
      %v4263 = vcombine.low %v4262, %v1850
      %v4264 = vcombine.low %v424, %v728
      %v4266 = vunpack.c.l.s4 1983009808
      %v4267 = vunpack.c.0.s8 %v4266
      %v4268 = vlaneseq
      %v4269 = vshrl.u32 %v4268, 7
      %v4270 = vsub.s32 %v4267, %v4269
      %v4271 = vrot.slane %v4264, %v4270
      %v4272 = vcombine.low %v1860, %v4271
      %v4273 = vcombine.low %v729, %v474
      %v4275 = vunpack.c.l.s4 1983009808
      %v4276 = vunpack.c.0.s8 %v4275
      %v4277 = vlaneseq
      %v4278 = vshrl.u32 %v4277, 7
      %v4279 = vsub.s32 %v4276, %v4278
      %v4280 = vrot.slane %v4273, %v4279
      %v4281 = vcombine.low %v1894, %v4280
      %v4282 = vcombine.low %v490, %v730
      %v4284 = vunpack.c.l.s4 1983009808
      %v4285 = vunpack.c.0.s8 %v4284
      %v4286 = vlaneseq
      %v4287 = vshrl.u32 %v4286, 7
      %v4288 = vsub.s32 %v4285, %v4287
      %v4289 = vrot.slane %v4282, %v4288
      %v4290 = vcombine.low %v4289, %v1935
      %v4291 = vcombine.low %v731, %v540
      %v4293 = vunpack.c.l.s4 1983009808
      %v4294 = vunpack.c.0.s8 %v4293
      %v4295 = vlaneseq
      %v4296 = vshrl.u32 %v4295, 7
      %v4297 = vsub.s32 %v4294, %v4296
      %v4298 = vrot.slane %v4291, %v4297
      %v4299 = vcombine.low %v4298, %v1969
      %v4300 = vcombine.low %v556, %v732
      %v4302 = vunpack.c.l.s4 1983009808
      %v4303 = vunpack.c.0.s8 %v4302
      %v4304 = vlaneseq
      %v4305 = vshrl.u32 %v4304, 7
      %v4306 = vsub.s32 %v4303, %v4305
      %v4307 = vrot.slane %v4300, %v4306
      %v4308 = vcombine.low %v1979, %v4307
      %v4309 = vcombine.low %v733, %v606
      %v4311 = vunpack.c.l.s4 1983009808
      %v4312 = vunpack.c.0.s8 %v4311
      %v4313 = vlaneseq
      %v4314 = vshrl.u32 %v4313, 7
      %v4315 = vsub.s32 %v4312, %v4314
      %v4316 = vrot.slane %v4309, %v4315
      %v4317 = vcombine.low %v2013, %v4316
      %v4318 = vcombine.low %v622, %v734
      %v4320 = vunpack.c.l.s4 1983009808
      %v4321 = vunpack.c.0.s8 %v4320
      %v4322 = vlaneseq
      %v4323 = vshrl.u32 %v4322, 7
      %v4324 = vsub.s32 %v4321, %v4323
      %v4325 = vrot.slane %v4318, %v4324
      %v4326 = vcombine.low %v4325, %v2054
      %v4327 = vcombine.low %v735, %v672
      %v4329 = vunpack.c.l.s4 1983009808
      %v4330 = vunpack.c.0.s8 %v4329
      %v4331 = vlaneseq
      %v4332 = vshrl.u32 %v4331, 7
      %v4333 = vsub.s32 %v4330, %v4332
      %v4334 = vrot.slane %v4327, %v4333
      %v4335 = vcombine.low %v4334, %v2088
      %v4336 = vcombine.low %v688, %v736
      %v4338 = vunpack.c.l.s4 1983009808
      %v4339 = vunpack.c.0.s8 %v4338
      %v4340 = vlaneseq
      %v4341 = vshrl.u32 %v4340, 7
      %v4342 = vsub.s32 %v4339, %v4341
      %v4343 = vrot.slane %v4336, %v4342
      %v4344 = vcombine.low %v2098, %v4343
      %v4345 = vcombine.low %v737, %v3078
      %v4347 = vunpack.c.l.s4 1983009808
      %v4348 = vunpack.c.0.s8 %v4347
      %v4349 = vlaneseq
      %v4350 = vshrl.u32 %v4349, 7
      %v4351 = vsub.s32 %v4348, %v4350
      %v4352 = vrot.slane %v4345, %v4351
      %v4353 = vcombine.low %v2131, %v4352
      %v4354 = vcombine.low %v3077, %v3079
      %v4355 = vcombine.low %v3087, %v3095
      %v4357 = vunpack.c.l.s4 1983009808
      %v4358 = vunpack.c.0.s8 %v4357
      %v4359 = vlaneseq
      %v4360 = vshrl.u32 %v4359, 7
      %v4361 = vsub.s32 %v4358, %v4360
      %v4362 = vrot.slane %v4354, %v4361
      %v4364 = vunpack.c.l.s4 1983009808
      %v4365 = vunpack.c.0.s8 %v4364
      %v4366 = vlaneseq
      %v4367 = vshrl.u32 %v4366, 7
      %v4368 = vsub.s32 %v4365, %v4367
      %v4369 = vrot.slane %v4355, %v4368
      %v4370 = vcombine.low %v4362, %v4369
      %v4371 = vcombine.low %v3094, %v3526
      %v4373 = vunpack.c.l.s4 1983009808
      %v4374 = vunpack.c.0.s8 %v4373
      %v4375 = vlaneseq
      %v4376 = vshrl.u32 %v4375, 7
      %v4377 = vsub.s32 %v4374, %v4376
      %v4378 = vrot.slane %v4371, %v4377
      %v4379 = vsel %vm1471, %v4245, 0
      %v4381 = vsel %vm1471, %v4254, 0
      %v4383 = vsel %vm1471, %v4263, 0
      %v4385 = vsel %vm1471, %v4272, 0
      %v4387 = vsel %vm1471, %v4281, 0
      %v4389 = vsel %vm1471, %v4290, 0
      %v4391 = vsel %vm1471, %v4299, 0
      %v4393 = vsel %vm1471, %v4308, 0
      %v4395 = vsel %vm1471, %v4317, 0
      %v4397 = vsel %vm1471, %v4326, 0
      %v4399 = vsel %vm1471, %v4335, 0
      %v4401 = vsel %vm1471, %v4344, 0
      %v4403 = vsel %vm1471, %v4353, 0
      %v4405 = vsel %vm1471, %v4370, 0
      %v4407 = vsel %vm1471, %v4378, 0
      %v4410 = vsel %vm1522, %v4236, 0
      %4412 = vmatprep.subr.mxu0 0.0
      %4413 = vmatpush1.msra.mxu0 %v4410
      %4414 = vmatprep.subr.mxu0 0.0
      %4415 = vmatpush1.msra.mxu0 0.0
      %4416 = vmatprep.subr.mxu0 0.0
      %4417 = vmatpush1.msra.mxu0 0.0
      %4418 = vmatprep.subr.mxu0 0.0
      %4419 = vmatpush1.msra.mxu0 0.0
      %4420 = vmatprep.subr.mxu0 0.0
      %4421 = vmatpush1.msra.mxu0 0.0
      %4422 = vmatprep.subr.mxu0 0.0
      %4423 = vmatpush1.msra.mxu0 0.0
      %4424 = vmatprep.subr.mxu0 0.0
      %4425 = vmatpush1.msra.mxu0 0.0
      %4426 = vmatprep.subr.mxu0 0.0
      %4427 = vmatpush1.msra.mxu0 0.0
      %4428 = vmatprep.subr.mxu0 0.0
      %4429 = vmatpush1.msra.mxu0 0.0
      %4430 = vmatprep.subr.mxu0 0.0
      %4431 = vmatpush1.msra.mxu0 0.0
      %4432 = vmatprep.subr.mxu0 0.0
      %4433 = vmatpush1.msra.mxu0 0.0
      %4434 = vmatprep.subr.mxu0 0.0
      %4435 = vmatpush1.msra.mxu0 0.0
      %4436 = vmatprep.subr.mxu0 0.0
      %4437 = vmatpush1.msra.mxu0 0.0
      %4438 = vmatprep.subr.mxu0 0.0
      %4439 = vmatpush1.msra.mxu0 0.0
      %4440 = vmatprep.subr.mxu0 0.0
      %4441 = vmatpush1.msra.mxu0 0.0
      %4442 = vmatprep.subr.mxu0 0.0
      %4443 = vmatpush1.msra.mxu0 0.0
      %4444 = vmatprep.subr.mxu0 0.0
      %4445 = vmatpush1.msra.mxu0 0.0
      %4446 = vmatprep.subr.mxu0 0.0
      %4447 = vmatpush1.msra.mxu0 0.0
      %4448 = vmatprep.subr.mxu0 0.0
      %4449 = vmatpush1.msra.mxu0 0.0
      %4450 = vmatprep.subr.mxu0 0.0
      %4451 = vmatpush1.msra.mxu0 0.0
      %4452 = vmatprep.subr.mxu0 0.0
      %4453 = vmatpush1.msra.mxu0 0.0
      %4454 = vmatprep.subr.mxu0 0.0
      %4455 = vmatpush1.msra.mxu0 0.0
      %4456 = vmatprep.subr.mxu0 0.0
      %4457 = vmatpush1.msra.mxu0 0.0
      %4458 = vmatprep.subr.mxu0 0.0
      %4459 = vmatpush1.msra.mxu0 0.0
      %4460 = vmatprep.subr.mxu0 0.0
      %4461 = vmatpush1.msra.mxu0 0.0
      %4462 = vmatprep.subr.mxu0 0.0
      %4463 = vmatpush1.msra.mxu0 0.0
      %4464 = vmatprep.subr.mxu0 0.0
      %4465 = vmatpush1.msra.mxu0 0.0
      %4466 = vmatprep.subr.mxu0 0.0
      %4467 = vmatpush1.msra.mxu0 0.0
      %4468 = vmatprep.subr.mxu0 0.0
      %4469 = vmatpush1.msra.mxu0 0.0
      %4470 = vmatprep.subr.mxu0 0.0
      %4471 = vmatpush1.msra.mxu0 0.0
      %4472 = vmatprep.subr.mxu0 0.0
      %4473 = vmatpush1.msra.mxu0 0.0
      %4474 = vmatprep.subr.mxu0 0.0
      %4475 = vmatpush1.msra.mxu0 0.0
      %4476 = vmatprep.mubr.f32.mxu0 0.0
      %4477 = vmatmul.mubr.f32.gmra.mrb[0].mxu0 %v2136
      %v4478 = vpop.f32.mrb[0].mxu0
      %v4479 = vadd.f32 0.0, %v4478
      %v4480 = vpop.f32.mrb[0].mxu0
      %4481 = vmatprep.mubr.f32.mxu0 0.0
      %4482 = vmatmul.mubr.f32.gmra.mrb[0].mxu0 %v4379
      %v4483 = vpop.f32.mrb[0].mxu0
      %v4484 = vadd.f32 0.0, %v4483
      %v4485 = vpop.f32.mrb[0].mxu0
      %4486 = vmatprep.mubr.f32.mxu0 0.0
      %4487 = vmatmul.mubr.f32.gmra.mrb[0].mxu0 %v2140
      %v4488 = vpop.f32.mrb[0].mxu0
      %v4489 = vadd.f32 0.0, %v4488
      %v4490 = vpop.f32.mrb[0].mxu0
      %4491 = vmatprep.mubr.f32.mxu0 0.0
      %4492 = vmatmul.mubr.f32.gmra.mrb[0].mxu0 %v4381
      %v4493 = vpop.f32.mrb[0].mxu0
      %v4494 = vadd.f32 0.0, %v4493
      %v4495 = vpop.f32.mrb[0].mxu0
      %4496 = vmatprep.mubr.f32.mxu0 0.0
      %4497 = vmatmul.mubr.f32.gmra.mrb[0].mxu0 %v2144
      %v4498 = vpop.f32.mrb[0].mxu0
      %v4499 = vadd.f32 0.0, %v4498
      %v4500 = vpop.f32.mrb[0].mxu0
      %4501 = vmatprep.mubr.f32.mxu0 0.0
      %4502 = vmatmul.mubr.f32.gmra.mrb[0].mxu0 %v4383
      %v4503 = vpop.f32.mrb[0].mxu0
      %v4504 = vadd.f32 0.0, %v4503
      %v4505 = vpop.f32.mrb[0].mxu0
      %4506 = vmatprep.mubr.f32.mxu0 0.0
      %4507 = vmatmul.mubr.f32.gmra.mrb[0].mxu0 %v4385
      %v4508 = vpop.f32.mrb[0].mxu0
      %v4509 = vadd.f32 0.0, %v4508
      %v4510 = vpop.f32.mrb[0].mxu0
      %4511 = vmatprep.mubr.f32.mxu0 0.0
      %4512 = vmatmul.mubr.f32.gmra.mrb[0].mxu0 %v2150
      %v4513 = vpop.f32.mrb[0].mxu0
      %v4514 = vadd.f32 0.0, %v4513
      %v4515 = vpop.f32.mrb[0].mxu0
      %4516 = vmatprep.mubr.f32.mxu0 0.0
      %4517 = vmatmul.mubr.f32.gmra.mrb[0].mxu0 %v4387
      %v4518 = vpop.f32.mrb[0].mxu0
      %v4519 = vadd.f32 0.0, %v4518
      %v4520 = vpop.f32.mrb[0].mxu0
      %4521 = vmatprep.mubr.f32.mxu0 0.0
      %4522 = vmatmul.mubr.f32.gmra.mrb[0].mxu0 %v2154
      %v4523 = vpop.f32.mrb[0].mxu0
      %v4524 = vadd.f32 0.0, %v4523
      %v4525 = vpop.f32.mrb[0].mxu0
      %4526 = vmatprep.mubr.f32.mxu0 0.0
      %4527 = vmatmul.mubr.f32.gmra.mrb[0].mxu0 %v4389
      %v4528 = vpop.f32.mrb[0].mxu0
      %v4529 = vadd.f32 0.0, %v4528
      %v4530 = vpop.f32.mrb[0].mxu0
      %4531 = vmatprep.mubr.f32.mxu0 0.0
      %4532 = vmatmul.mubr.f32.gmra.mrb[0].mxu0 %v2158
      %v4533 = vpop.f32.mrb[0].mxu0
      %v4534 = vadd.f32 0.0, %v4533
      %v4535 = vpop.f32.mrb[0].mxu0
      %4536 = vmatprep.mubr.f32.mxu0 0.0
      %4537 = vmatmul.mubr.f32.gmra.mrb[0].mxu0 %v4391
      %v4538 = vpop.f32.mrb[0].mxu0
      %v4539 = vadd.f32 0.0, %v4538
      %v4540 = vpop.f32.mrb[0].mxu0
      %4541 = vmatprep.mubr.f32.mxu0 0.0
      %4542 = vmatmul.mubr.f32.gmra.mrb[0].mxu0 %v4393
      %v4543 = vpop.f32.mrb[0].mxu0
      %v4544 = vadd.f32 0.0, %v4543
      %v4545 = vpop.f32.mrb[0].mxu0
      %4546 = vmatprep.mubr.f32.mxu0 0.0
      %4547 = vmatmul.mubr.f32.gmra.mrb[0].mxu0 %v2164
      %v4548 = vpop.f32.mrb[0].mxu0
      %v4549 = vadd.f32 0.0, %v4548
      %v4550 = vpop.f32.mrb[0].mxu0
      %4551 = vmatprep.mubr.f32.mxu0 0.0
      %4552 = vmatmul.mubr.f32.gmra.mrb[0].mxu0 %v4395
      %v4553 = vpop.f32.mrb[0].mxu0
      %v4554 = vadd.f32 0.0, %v4553
      %v4555 = vpop.f32.mrb[0].mxu0
      %4556 = vmatprep.mubr.f32.mxu0 0.0
      %4557 = vmatmul.mubr.f32.gmra.mrb[0].mxu0 %v2168
      %v4558 = vpop.f32.mrb[0].mxu0
      %v4559 = vadd.f32 0.0, %v4558
      %v4560 = vpop.f32.mrb[0].mxu0
      %4561 = vmatprep.mubr.f32.mxu0 0.0
      %4562 = vmatmul.mubr.f32.gmra.mrb[0].mxu0 %v4397
      %v4563 = vpop.f32.mrb[0].mxu0
      %v4564 = vadd.f32 0.0, %v4563
      %v4565 = vpop.f32.mrb[0].mxu0
      %4566 = vmatprep.mubr.f32.mxu0 0.0
      %4567 = vmatmul.mubr.f32.gmra.mrb[0].mxu0 %v2172
      %v4568 = vpop.f32.mrb[0].mxu0
      %v4569 = vadd.f32 0.0, %v4568
      %v4570 = vpop.f32.mrb[0].mxu0
      %4571 = vmatprep.mubr.f32.mxu0 0.0
      %4572 = vmatmul.mubr.f32.gmra.mrb[0].mxu0 %v4399
      %v4573 = vpop.f32.mrb[0].mxu0
      %v4574 = vadd.f32 0.0, %v4573
      %v4575 = vpop.f32.mrb[0].mxu0
      %4576 = vmatprep.mubr.f32.mxu0 0.0
      %4577 = vmatmul.mubr.f32.gmra.mrb[0].mxu0 %v4401
      %v4578 = vpop.f32.mrb[0].mxu0
      %v4579 = vadd.f32 0.0, %v4578
      %v4580 = vpop.f32.mrb[0].mxu0
      %4581 = vmatprep.mubr.f32.mxu0 0.0
      %4582 = vmatmul.mubr.f32.gmra.mrb[0].mxu0 %v2178
      %v4583 = vpop.f32.mrb[0].mxu0
      %v4584 = vadd.f32 0.0, %v4583
      %v4585 = vpop.f32.mrb[0].mxu0
      %4586 = vmatprep.mubr.f32.mxu0 0.0
      %4587 = vmatmul.mubr.f32.gmra.mrb[0].mxu0 %v4403
      %v4588 = vpop.f32.mrb[0].mxu0
      %v4589 = vadd.f32 0.0, %v4588
      %v4590 = vpop.f32.mrb[0].mxu0
      %4591 = vmatprep.mubr.f32.mxu0 0.0
      %4592 = vmatmul.mubr.f32.gmra.mrb[0].mxu0 %v4405
      %v4593 = vpop.f32.mrb[0].mxu0
      %v4594 = vadd.f32 0.0, %v4593
      %v4595 = vpop.f32.mrb[0].mxu0
      %4596 = vmatprep.mubr.f32.mxu0 0.0
      %4597 = vmatmul.mubr.f32.gmra.mrb[0].mxu0 %v4407
      %v4598 = vpop.f32.mrb[0].mxu0
      %v4599 = vadd.f32 0.0, %v4598
      %v4600 = vpop.f32.mrb[0].mxu0
      %4601 = vdwg.mxu0
      %v4602 = vadd.f32 %v4210, %v4479
      %v4603 = vadd.f32 %v4211, %v4484
      %v4604 = vadd.f32 %v4212, %v4489
      %v4605 = vadd.f32 %v4213, %v4494
      %v4606 = vadd.f32 %v4214, %v4499
      %v4607 = vadd.f32 %v4215, %v4504
      %v4608 = vadd.f32 %v4216, %v4509
      %v4609 = vadd.f32 %v4217, %v4514
      %v4610 = vadd.f32 %v4218, %v4519
      %v4611 = vadd.f32 %v4219, %v4524
      %v4612 = vadd.f32 %v4220, %v4529
      %v4613 = vadd.f32 %v4221, %v4534
      %v4614 = vadd.f32 %v4222, %v4539
      %v4615 = vadd.f32 %v4223, %v4544
      %v4616 = vadd.f32 %v4224, %v4549
      %v4617 = vadd.f32 %v4225, %v4554
      %v4618 = vadd.f32 %v4226, %v4559
      %v4619 = vadd.f32 %v4227, %v4564
      %v4620 = vadd.f32 %v4228, %v4569
      %v4621 = vadd.f32 %v4229, %v4574
      %v4622 = vadd.f32 %v4230, %v4579
      %v4623 = vadd.f32 %v4231, %v4584
      %v4624 = vadd.f32 %v4232, %v4589
      %v4625 = vadd.f32 %v4233, %v4594
      %v4626 = vadd.f32 %v4234, %v4599
      %v4629 = vcombine.high %v231, %v231
      %v4631 = vunpack.c.l.s4 1983009808
      %v4632 = vunpack.c.0.s8 %v4631
      %v4633 = vlaneseq
      %v4634 = vshrl.u32 %v4633, 7
      %v4635 = vsub.s32 %v4632, %v4634
      %v4636 = vrot.slane %v231, %v4635
      %v4638 = vunpack.c.l.s4 1983009808
      %v4639 = vunpack.c.0.s8 %v4638
      %v4640 = vlaneseq
      %v4641 = vshrl.u32 %v4640, 7
      %v4642 = vsub.s32 %v4639, %v4641
      %v4643 = vrot.slane %v4629, %v4642
      %v4644 = vcombine.high %v4636, %v4636
      %v4645 = vcombine.high %v4643, %v4643
      %v4646 = vcombine.high %v232, %v232
      %v4648 = vunpack.c.l.s4 1983009808
      %v4649 = vunpack.c.0.s8 %v4648
      %v4650 = vlaneseq
      %v4651 = vshrl.u32 %v4650, 7
      %v4652 = vsub.s32 %v4649, %v4651
      %v4653 = vrot.slane %v232, %v4652
      %v4655 = vunpack.c.l.s4 1983009808
      %v4656 = vunpack.c.0.s8 %v4655
      %v4657 = vlaneseq
      %v4658 = vshrl.u32 %v4657, 7
      %v4659 = vsub.s32 %v4656, %v4658
      %v4660 = vrot.slane %v4646, %v4659
      %v4661 = vcombine.high %v4653, %v4653
      %s4662 = scalar_lea.vmem %s186, 24
      %v4663 = vld [vmem:[%s4662] sm:$0xf]
      %v4664 = vcombine.low %v1782, %v1792
      %v4665 = vcombine.low %v1799, %v1809
      %v4666 = vcombine.low %v1816, %v1826
      %v4667 = vcombine.low %v1833, %v1843
      %v4668 = vcombine.low %v1850, %v1860
      %v4669 = vcombine.low %v1867, %v1877
      %v4670 = vcombine.low %v1884, %v1894
      %v4671 = vcombine.low %v1901, %v1911
      %v4672 = vcombine.low %v1918, %v1928
      %v4673 = vcombine.low %v1935, %v1945
      %v4674 = vcombine.low %v1952, %v1962
      %v4675 = vcombine.low %v1969, %v1979
      %v4676 = vcombine.low %v1986, %v1996
      %v4677 = vcombine.low %v2003, %v2013
      %v4678 = vcombine.low %v2020, %v2030
      %v4679 = vcombine.low %v2037, %v2047
      %v4680 = vcombine.low %v2054, %v2064
      %v4681 = vcombine.low %v2071, %v2081
      %v4682 = vcombine.low %v2088, %v2098
      %v4683 = vcombine.low %v2105, %v2115
      %v4684 = vcombine.low %v2122, %v2131
      %v4685 = vcombine.low %v3070, %v3078
      %v4687 = vunpack.c.l.s4 1983009808
      %v4688 = vunpack.c.0.s8 %v4687
      %v4689 = vlaneseq
      %v4690 = vshrl.u32 %v4689, 7
      %v4691 = vsub.s32 %v4688, %v4690
      %v4692 = vrot.slane %v4685, %v4691
      %v4693 = vcombine.low %v4692, %v4362
      %v4694 = vcombine.low %v3094, %v4636
      %v4696 = vunpack.c.l.s4 1983009808
      %v4697 = vunpack.c.0.s8 %v4696
      %v4698 = vlaneseq
      %v4699 = vshrl.u32 %v4698, 7
      %v4700 = vsub.s32 %v4697, %v4699
      %v4701 = vrot.slane %v4694, %v4700
      %v4702 = vcombine.low %v4369, %v4701
      %v4703 = vcombine.low %v4644, %v4643
      %v4704 = vcombine.low %v4645, %v4653
      %v4706 = vunpack.c.l.s4 1983009808
      %v4707 = vunpack.c.0.s8 %v4706
      %v4708 = vlaneseq
      %v4709 = vshrl.u32 %v4708, 7
      %v4710 = vsub.s32 %v4707, %v4709
      %v4711 = vrot.slane %v4703, %v4710
      %v4713 = vunpack.c.l.s4 1983009808
      %v4714 = vunpack.c.0.s8 %v4713
      %v4715 = vlaneseq
      %v4716 = vshrl.u32 %v4715, 7
      %v4717 = vsub.s32 %v4714, %v4716
      %v4718 = vrot.slane %v4704, %v4717
      %v4719 = vcombine.low %v4711, %v4718
      %v4720 = vcombine.low %v4661, %v4660
      %v4722 = vunpack.c.l.s4 1983009808
      %v4723 = vunpack.c.0.s8 %v4722
      %v4724 = vlaneseq
      %v4725 = vshrl.u32 %v4724, 7
      %v4726 = vsub.s32 %v4723, %v4725
      %v4727 = vrot.slane %v4720, %v4726
      %v4728 = vsel %vm1471, %v4664, 0
      %v4730 = vsel %vm1471, %v4665, 0
      %v4732 = vsel %vm1471, %v4666, 0
      %v4734 = vsel %vm1471, %v4667, 0
      %v4736 = vsel %vm1471, %v4668, 0
      %v4738 = vsel %vm1471, %v4669, 0
      %v4740 = vsel %vm1471, %v4670, 0
      %v4742 = vsel %vm1471, %v4671, 0
      %v4744 = vsel %vm1471, %v4672, 0
      %v4746 = vsel %vm1471, %v4673, 0
      %v4748 = vsel %vm1471, %v4674, 0
      %v4750 = vsel %vm1471, %v4675, 0
      %v4752 = vsel %vm1471, %v4676, 0
      %v4754 = vsel %vm1471, %v4677, 0
      %v4756 = vsel %vm1471, %v4678, 0
      %v4758 = vsel %vm1471, %v4679, 0
      %v4760 = vsel %vm1471, %v4680, 0
      %v4762 = vsel %vm1471, %v4681, 0
      %v4764 = vsel %vm1471, %v4682, 0
      %v4766 = vsel %vm1471, %v4683, 0
      %v4768 = vsel %vm1471, %v4684, 0
      %v4770 = vsel %vm1471, %v4693, 0
      %v4772 = vsel %vm1471, %v4702, 0
      %v4774 = vsel %vm1471, %v4719, 0
      %v4776 = vsel %vm1471, %v4727, 0
      %v4779 = vsel %vm1522, %v4663, 0
      %4781 = vmatprep.subr.mxu0 0.0
      %4782 = vmatpush1.msra.mxu0 %v4779
      %4783 = vmatprep.subr.mxu0 0.0
      %4784 = vmatpush1.msra.mxu0 0.0
      %4785 = vmatprep.subr.mxu0 0.0
      %4786 = vmatpush1.msra.mxu0 0.0
      %4787 = vmatprep.subr.mxu0 0.0
      %4788 = vmatpush1.msra.mxu0 0.0
      %4789 = vmatprep.subr.mxu0 0.0
      %4790 = vmatpush1.msra.mxu0 0.0
      %4791 = vmatprep.subr.mxu0 0.0
      %4792 = vmatpush1.msra.mxu0 0.0
      %4793 = vmatprep.subr.mxu0 0.0
      %4794 = vmatpush1.msra.mxu0 0.0
      %4795 = vmatprep.subr.mxu0 0.0
      %4796 = vmatpush1.msra.mxu0 0.0
      %4797 = vmatprep.subr.mxu0 0.0
      %4798 = vmatpush1.msra.mxu0 0.0
      %4799 = vmatprep.subr.mxu0 0.0
      %4800 = vmatpush1.msra.mxu0 0.0
      %4801 = vmatprep.subr.mxu0 0.0
      %4802 = vmatpush1.msra.mxu0 0.0
      %4803 = vmatprep.subr.mxu0 0.0
      %4804 = vmatpush1.msra.mxu0 0.0
      %4805 = vmatprep.subr.mxu0 0.0
      %4806 = vmatpush1.msra.mxu0 0.0
      %4807 = vmatprep.subr.mxu0 0.0
      %4808 = vmatpush1.msra.mxu0 0.0
      %4809 = vmatprep.subr.mxu0 0.0
      %4810 = vmatpush1.msra.mxu0 0.0
      %4811 = vmatprep.subr.mxu0 0.0
      %4812 = vmatpush1.msra.mxu0 0.0
      %4813 = vmatprep.subr.mxu0 0.0
      %4814 = vmatpush1.msra.mxu0 0.0
      %4815 = vmatprep.subr.mxu0 0.0
      %4816 = vmatpush1.msra.mxu0 0.0
      %4817 = vmatprep.subr.mxu0 0.0
      %4818 = vmatpush1.msra.mxu0 0.0
      %4819 = vmatprep.subr.mxu0 0.0
      %4820 = vmatpush1.msra.mxu0 0.0
      %4821 = vmatprep.subr.mxu0 0.0
      %4822 = vmatpush1.msra.mxu0 0.0
      %4823 = vmatprep.subr.mxu0 0.0
      %4824 = vmatpush1.msra.mxu0 0.0
      %4825 = vmatprep.subr.mxu0 0.0
      %4826 = vmatpush1.msra.mxu0 0.0
      %4827 = vmatprep.subr.mxu0 0.0
      %4828 = vmatpush1.msra.mxu0 0.0
      %4829 = vmatprep.subr.mxu0 0.0
      %4830 = vmatpush1.msra.mxu0 0.0
      %4831 = vmatprep.subr.mxu0 0.0
      %4832 = vmatpush1.msra.mxu0 0.0
      %4833 = vmatprep.subr.mxu0 0.0
      %4834 = vmatpush1.msra.mxu0 0.0
      %4835 = vmatprep.subr.mxu0 0.0
      %4836 = vmatpush1.msra.mxu0 0.0
      %4837 = vmatprep.subr.mxu0 0.0
      %4838 = vmatpush1.msra.mxu0 0.0
      %4839 = vmatprep.subr.mxu0 0.0
      %4840 = vmatpush1.msra.mxu0 0.0
      %4841 = vmatprep.subr.mxu0 0.0
      %4842 = vmatpush1.msra.mxu0 0.0
      %4843 = vmatprep.subr.mxu0 0.0
      %4844 = vmatpush1.msra.mxu0 0.0
      %4845 = vmatprep.mubr.f32.mxu0 0.0
      %4846 = vmatmul.mubr.f32.gmra.mrb[0].mxu0 %v4728
      %v4847 = vpop.f32.mrb[0].mxu0
      %v4848 = vadd.f32 0.0, %v4847
      %v4849 = vpop.f32.mrb[0].mxu0
      %4850 = vmatprep.mubr.f32.mxu0 0.0
      %4851 = vmatmul.mubr.f32.gmra.mrb[0].mxu0 %v4730
      %v4852 = vpop.f32.mrb[0].mxu0
      %v4853 = vadd.f32 0.0, %v4852
      %v4854 = vpop.f32.mrb[0].mxu0
      %4855 = vmatprep.mubr.f32.mxu0 0.0
      %4856 = vmatmul.mubr.f32.gmra.mrb[0].mxu0 %v4732
      %v4857 = vpop.f32.mrb[0].mxu0
      %v4858 = vadd.f32 0.0, %v4857
      %v4859 = vpop.f32.mrb[0].mxu0
      %4860 = vmatprep.mubr.f32.mxu0 0.0
      %4861 = vmatmul.mubr.f32.gmra.mrb[0].mxu0 %v4734
      %v4862 = vpop.f32.mrb[0].mxu0
      %v4863 = vadd.f32 0.0, %v4862
      %v4864 = vpop.f32.mrb[0].mxu0
      %4865 = vmatprep.mubr.f32.mxu0 0.0
      %4866 = vmatmul.mubr.f32.gmra.mrb[0].mxu0 %v4736
      %v4867 = vpop.f32.mrb[0].mxu0
      %v4868 = vadd.f32 0.0, %v4867
      %v4869 = vpop.f32.mrb[0].mxu0
      %4870 = vmatprep.mubr.f32.mxu0 0.0
      %4871 = vmatmul.mubr.f32.gmra.mrb[0].mxu0 %v4738
      %v4872 = vpop.f32.mrb[0].mxu0
      %v4873 = vadd.f32 0.0, %v4872
      %v4874 = vpop.f32.mrb[0].mxu0
      %4875 = vmatprep.mubr.f32.mxu0 0.0
      %4876 = vmatmul.mubr.f32.gmra.mrb[0].mxu0 %v4740
      %v4877 = vpop.f32.mrb[0].mxu0
      %v4878 = vadd.f32 0.0, %v4877
      %v4879 = vpop.f32.mrb[0].mxu0
      %4880 = vmatprep.mubr.f32.mxu0 0.0
      %4881 = vmatmul.mubr.f32.gmra.mrb[0].mxu0 %v4742
      %v4882 = vpop.f32.mrb[0].mxu0
      %v4883 = vadd.f32 0.0, %v4882
      %v4884 = vpop.f32.mrb[0].mxu0
      %4885 = vmatprep.mubr.f32.mxu0 0.0
      %4886 = vmatmul.mubr.f32.gmra.mrb[0].mxu0 %v4744
      %v4887 = vpop.f32.mrb[0].mxu0
      %v4888 = vadd.f32 0.0, %v4887
      %v4889 = vpop.f32.mrb[0].mxu0
      %4890 = vmatprep.mubr.f32.mxu0 0.0
      %4891 = vmatmul.mubr.f32.gmra.mrb[0].mxu0 %v4746
      %v4892 = vpop.f32.mrb[0].mxu0
      %v4893 = vadd.f32 0.0, %v4892
      %v4894 = vpop.f32.mrb[0].mxu0
      %4895 = vmatprep.mubr.f32.mxu0 0.0
      %4896 = vmatmul.mubr.f32.gmra.mrb[0].mxu0 %v4748
      %v4897 = vpop.f32.mrb[0].mxu0
      %v4898 = vadd.f32 0.0, %v4897
      %v4899 = vpop.f32.mrb[0].mxu0
      %4900 = vmatprep.mubr.f32.mxu0 0.0
      %4901 = vmatmul.mubr.f32.gmra.mrb[0].mxu0 %v4750
      %v4902 = vpop.f32.mrb[0].mxu0
      %v4903 = vadd.f32 0.0, %v4902
      %v4904 = vpop.f32.mrb[0].mxu0
      %4905 = vmatprep.mubr.f32.mxu0 0.0
      %4906 = vmatmul.mubr.f32.gmra.mrb[0].mxu0 %v4752
      %v4907 = vpop.f32.mrb[0].mxu0
      %v4908 = vadd.f32 0.0, %v4907
      %v4909 = vpop.f32.mrb[0].mxu0
      %4910 = vmatprep.mubr.f32.mxu0 0.0
      %4911 = vmatmul.mubr.f32.gmra.mrb[0].mxu0 %v4754
      %v4912 = vpop.f32.mrb[0].mxu0
      %v4913 = vadd.f32 0.0, %v4912
      %v4914 = vpop.f32.mrb[0].mxu0
      %4915 = vmatprep.mubr.f32.mxu0 0.0
      %4916 = vmatmul.mubr.f32.gmra.mrb[0].mxu0 %v4756
      %v4917 = vpop.f32.mrb[0].mxu0
      %v4918 = vadd.f32 0.0, %v4917
      %v4919 = vpop.f32.mrb[0].mxu0
      %4920 = vmatprep.mubr.f32.mxu0 0.0
      %4921 = vmatmul.mubr.f32.gmra.mrb[0].mxu0 %v4758
      %v4922 = vpop.f32.mrb[0].mxu0
      %v4923 = vadd.f32 0.0, %v4922
      %v4924 = vpop.f32.mrb[0].mxu0
      %4925 = vmatprep.mubr.f32.mxu0 0.0
      %4926 = vmatmul.mubr.f32.gmra.mrb[0].mxu0 %v4760
      %v4927 = vpop.f32.mrb[0].mxu0
      %v4928 = vadd.f32 0.0, %v4927
      %v4929 = vpop.f32.mrb[0].mxu0
      %4930 = vmatprep.mubr.f32.mxu0 0.0
      %4931 = vmatmul.mubr.f32.gmra.mrb[0].mxu0 %v4762
      %v4932 = vpop.f32.mrb[0].mxu0
      %v4933 = vadd.f32 0.0, %v4932
      %v4934 = vpop.f32.mrb[0].mxu0
      %4935 = vmatprep.mubr.f32.mxu0 0.0
      %4936 = vmatmul.mubr.f32.gmra.mrb[0].mxu0 %v4764
      %v4937 = vpop.f32.mrb[0].mxu0
      %v4938 = vadd.f32 0.0, %v4937
      %v4939 = vpop.f32.mrb[0].mxu0
      %4940 = vmatprep.mubr.f32.mxu0 0.0
      %4941 = vmatmul.mubr.f32.gmra.mrb[0].mxu0 %v4766
      %v4942 = vpop.f32.mrb[0].mxu0
      %v4943 = vadd.f32 0.0, %v4942
      %v4944 = vpop.f32.mrb[0].mxu0
      %4945 = vmatprep.mubr.f32.mxu0 0.0
      %4946 = vmatmul.mubr.f32.gmra.mrb[0].mxu0 %v4768
      %v4947 = vpop.f32.mrb[0].mxu0
      %v4948 = vadd.f32 0.0, %v4947
      %v4949 = vpop.f32.mrb[0].mxu0
      %4950 = vmatprep.mubr.f32.mxu0 0.0
      %4951 = vmatmul.mubr.f32.gmra.mrb[0].mxu0 %v4770
      %v4952 = vpop.f32.mrb[0].mxu0
      %v4953 = vadd.f32 0.0, %v4952
      %v4954 = vpop.f32.mrb[0].mxu0
      %4955 = vmatprep.mubr.f32.mxu0 0.0
      %4956 = vmatmul.mubr.f32.gmra.mrb[0].mxu0 %v4772
      %v4957 = vpop.f32.mrb[0].mxu0
      %v4958 = vadd.f32 0.0, %v4957
      %v4959 = vpop.f32.mrb[0].mxu0
      %4960 = vmatprep.mubr.f32.mxu0 0.0
      %4961 = vmatmul.mubr.f32.gmra.mrb[0].mxu0 %v4774
      %v4962 = vpop.f32.mrb[0].mxu0
      %v4963 = vadd.f32 0.0, %v4962
      %v4964 = vpop.f32.mrb[0].mxu0
      %4965 = vmatprep.mubr.f32.mxu0 0.0
      %4966 = vmatmul.mubr.f32.gmra.mrb[0].mxu0 %v4776
      %v4967 = vpop.f32.mrb[0].mxu0
      %v4968 = vadd.f32 0.0, %v4967
      %v4969 = vpop.f32.mrb[0].mxu0
      %4970 = vdwg.mxu0
      %v4971 = vadd.f32 %v4602, %v4848
      %v4972 = vadd.f32 %v4603, %v4853
      %v4973 = vadd.f32 %v4604, %v4858
      %v4974 = vadd.f32 %v4605, %v4863
      %v4975 = vadd.f32 %v4606, %v4868
      %v4976 = vadd.f32 %v4607, %v4873
      %v4977 = vadd.f32 %v4608, %v4878
      %v4978 = vadd.f32 %v4609, %v4883
      %v4979 = vadd.f32 %v4610, %v4888
      %v4980 = vadd.f32 %v4611, %v4893
      %v4981 = vadd.f32 %v4612, %v4898
      %v4982 = vadd.f32 %v4613, %v4903
      %v4983 = vadd.f32 %v4614, %v4908
      %v4984 = vadd.f32 %v4615, %v4913
      %v4985 = vadd.f32 %v4616, %v4918
      %v4986 = vadd.f32 %v4617, %v4923
      %v4987 = vadd.f32 %v4618, %v4928
      %v4988 = vadd.f32 %v4619, %v4933
      %v4989 = vadd.f32 %v4620, %v4938
      %v4990 = vadd.f32 %v4621, %v4943
      %v4991 = vadd.f32 %v4622, %v4948
      %v4992 = vadd.f32 %v4623, %v4953
      %v4993 = vadd.f32 %v4624, %v4958
      %v4994 = vadd.f32 %v4625, %v4963
      %v4995 = vadd.f32 %v4626, %v4968
      %v4996 = vcombine.high %v4660, %v4660
      %v4997 = vrot.slane %v4636, 7
      %v4998 = vrot.slane %v4997, 2
      %v4999 = vrot.slane %v4644, 7
      %v5000 = vsel %vm744, %v4998, %v4999
      %v5001 = vrot.slane %v4999, 2
      %v5002 = vrot.slane %v4643, 7
      %v5003 = vsel %vm744, %v5001, %v5002
      %v5004 = vrot.slane %v5002, 2
      %v5005 = vrot.slane %v4645, 7
      %v5006 = vsel %vm744, %v5004, %v5005
      %v5007 = vrot.slane %v5005, 2
      %v5008 = vrot.slane %v4653, 7
      %v5009 = vsel %vm744, %v5007, %v5008
      %v5010 = vrot.slane %v5008, 2
      %v5011 = vrot.slane %v4661, 7
      %v5012 = vsel %vm744, %v5010, %v5011
      %v5013 = vrot.slane %v5011, 2
      %v5014 = vrot.slane %v4660, 7
      %v5015 = vsel %vm744, %v5013, %v5014
      %v5016 = vrot.slane %v5014, 2
      %v5017 = vrot.slane %v4996, 7
      %v5018 = vsel %vm744, %v5016, %v5017
      %s5019 = scalar_lea.vmem %s186, 28
      %v5020 = vld [vmem:[%s5019] sm:$0xf]
      %v5021 = vcombine.low %v1121, %v1131
      %v5022 = vcombine.low %v1138, %v1148
      %v5023 = vcombine.low %v1155, %v1165
      %v5024 = vcombine.low %v1172, %v1182
      %v5025 = vcombine.low %v1189, %v1199
      %v5026 = vcombine.low %v1206, %v1216
      %v5027 = vcombine.low %v1223, %v1233
      %v5028 = vcombine.low %v1240, %v1250
      %v5029 = vcombine.low %v1257, %v1267
      %v5030 = vcombine.low %v1274, %v1284
      %v5031 = vcombine.low %v1291, %v1301
      %v5032 = vcombine.low %v1308, %v1318
      %v5033 = vcombine.low %v1325, %v1335
      %v5034 = vcombine.low %v1342, %v1352
      %v5035 = vcombine.low %v1359, %v1369
      %v5036 = vcombine.low %v1376, %v1386
      %v5037 = vcombine.low %v1393, %v1403
      %v5038 = vcombine.low %v1410, %v1420
      %v5039 = vcombine.low %v1427, %v1437
      %v5040 = vcombine.low %v1444, %v1454
      %v5041 = vcombine.low %v1461, %v1470
      %v5042 = vcombine.low %v3530, %v3533
      %v5043 = vcombine.low %v3536, %v3539
      %v5045 = vunpack.c.l.s4 1983009808
      %v5046 = vunpack.c.0.s8 %v5045
      %v5047 = vlaneseq
      %v5048 = vshrl.u32 %v5047, 7
      %v5049 = vsub.s32 %v5046, %v5048
      %v5050 = vrot.slane %v5042, %v5049
      %v5052 = vunpack.c.l.s4 1983009808
      %v5053 = vunpack.c.0.s8 %v5052
      %v5054 = vlaneseq
      %v5055 = vshrl.u32 %v5054, 7
      %v5056 = vsub.s32 %v5053, %v5055
      %v5057 = vrot.slane %v5043, %v5056
      %v5058 = vcombine.low %v5050, %v5057
      %v5059 = vcombine.low %v3542, %v3545
      %v5060 = vcombine.low %v3548, %v5000
      %v5062 = vunpack.c.l.s4 1983009808
      %v5063 = vunpack.c.0.s8 %v5062
      %v5064 = vlaneseq
      %v5065 = vshrl.u32 %v5064, 7
      %v5066 = vsub.s32 %v5063, %v5065
      %v5067 = vrot.slane %v5059, %v5066
      %v5069 = vunpack.c.l.s4 1983009808
      %v5070 = vunpack.c.0.s8 %v5069
      %v5071 = vlaneseq
      %v5072 = vshrl.u32 %v5071, 7
      %v5073 = vsub.s32 %v5070, %v5072
      %v5074 = vrot.slane %v5060, %v5073
      %v5075 = vcombine.low %v5067, %v5074
      %v5076 = vcombine.low %v5003, %v5006
      %v5077 = vcombine.low %v5009, %v5012
      %v5079 = vunpack.c.l.s4 1983009808
      %v5080 = vunpack.c.0.s8 %v5079
      %v5081 = vlaneseq
      %v5082 = vshrl.u32 %v5081, 7
      %v5083 = vsub.s32 %v5080, %v5082
      %v5084 = vrot.slane %v5076, %v5083
      %v5086 = vunpack.c.l.s4 1983009808
      %v5087 = vunpack.c.0.s8 %v5086
      %v5088 = vlaneseq
      %v5089 = vshrl.u32 %v5088, 7
      %v5090 = vsub.s32 %v5087, %v5089
      %v5091 = vrot.slane %v5077, %v5090
      %v5092 = vcombine.low %v5084, %v5091
      %v5093 = vcombine.low %v5015, %v5018
      %v5095 = vunpack.c.l.s4 1983009808
      %v5096 = vunpack.c.0.s8 %v5095
      %v5097 = vlaneseq
      %v5098 = vshrl.u32 %v5097, 7
      %v5099 = vsub.s32 %v5096, %v5098
      %v5100 = vrot.slane %v5093, %v5099
      %v5101 = vsel %vm1471, %v5021, 0
      %v5103 = vsel %vm1471, %v5022, 0
      %v5105 = vsel %vm1471, %v5023, 0
      %v5107 = vsel %vm1471, %v5024, 0
      %v5109 = vsel %vm1471, %v5025, 0
      %v5111 = vsel %vm1471, %v5026, 0
      %v5113 = vsel %vm1471, %v5027, 0
      %v5115 = vsel %vm1471, %v5028, 0
      %v5117 = vsel %vm1471, %v5029, 0
      %v5119 = vsel %vm1471, %v5030, 0
      %v5121 = vsel %vm1471, %v5031, 0
      %v5123 = vsel %vm1471, %v5032, 0
      %v5125 = vsel %vm1471, %v5033, 0
      %v5127 = vsel %vm1471, %v5034, 0
      %v5129 = vsel %vm1471, %v5035, 0
      %v5131 = vsel %vm1471, %v5036, 0
      %v5133 = vsel %vm1471, %v5037, 0
      %v5135 = vsel %vm1471, %v5038, 0
      %v5137 = vsel %vm1471, %v5039, 0
      %v5139 = vsel %vm1471, %v5040, 0
      %v5141 = vsel %vm1471, %v5041, 0
      %v5143 = vsel %vm1471, %v5058, 0
      %v5145 = vsel %vm1471, %v5075, 0
      %v5147 = vsel %vm1471, %v5092, 0
      %v5149 = vsel %vm1471, %v5100, 0
      %v5152 = vsel %vm1522, %v5020, 0
      %5154 = vmatprep.subr.mxu0 0.0
      %5155 = vmatpush1.msra.mxu0 %v5152
      %5156 = vmatprep.subr.mxu0 0.0
      %5157 = vmatpush1.msra.mxu0 0.0
      %5158 = vmatprep.subr.mxu0 0.0
      %5159 = vmatpush1.msra.mxu0 0.0
      %5160 = vmatprep.subr.mxu0 0.0
      %5161 = vmatpush1.msra.mxu0 0.0
      %5162 = vmatprep.subr.mxu0 0.0
      %5163 = vmatpush1.msra.mxu0 0.0
      %5164 = vmatprep.subr.mxu0 0.0
      %5165 = vmatpush1.msra.mxu0 0.0
      %5166 = vmatprep.subr.mxu0 0.0
      %5167 = vmatpush1.msra.mxu0 0.0
      %5168 = vmatprep.subr.mxu0 0.0
      %5169 = vmatpush1.msra.mxu0 0.0
      %5170 = vmatprep.subr.mxu0 0.0
      %5171 = vmatpush1.msra.mxu0 0.0
      %5172 = vmatprep.subr.mxu0 0.0
      %5173 = vmatpush1.msra.mxu0 0.0
      %5174 = vmatprep.subr.mxu0 0.0
      %5175 = vmatpush1.msra.mxu0 0.0
      %5176 = vmatprep.subr.mxu0 0.0
      %5177 = vmatpush1.msra.mxu0 0.0
      %5178 = vmatprep.subr.mxu0 0.0
      %5179 = vmatpush1.msra.mxu0 0.0
      %5180 = vmatprep.subr.mxu0 0.0
      %5181 = vmatpush1.msra.mxu0 0.0
      %5182 = vmatprep.subr.mxu0 0.0
      %5183 = vmatpush1.msra.mxu0 0.0
      %5184 = vmatprep.subr.mxu0 0.0
      %5185 = vmatpush1.msra.mxu0 0.0
      %5186 = vmatprep.subr.mxu0 0.0
      %5187 = vmatpush1.msra.mxu0 0.0
      %5188 = vmatprep.subr.mxu0 0.0
      %5189 = vmatpush1.msra.mxu0 0.0
      %5190 = vmatprep.subr.mxu0 0.0
      %5191 = vmatpush1.msra.mxu0 0.0
      %5192 = vmatprep.subr.mxu0 0.0
      %5193 = vmatpush1.msra.mxu0 0.0
      %5194 = vmatprep.subr.mxu0 0.0
      %5195 = vmatpush1.msra.mxu0 0.0
      %5196 = vmatprep.subr.mxu0 0.0
      %5197 = vmatpush1.msra.mxu0 0.0
      %5198 = vmatprep.subr.mxu0 0.0
      %5199 = vmatpush1.msra.mxu0 0.0
      %5200 = vmatprep.subr.mxu0 0.0
      %5201 = vmatpush1.msra.mxu0 0.0
      %5202 = vmatprep.subr.mxu0 0.0
      %5203 = vmatpush1.msra.mxu0 0.0
      %5204 = vmatprep.subr.mxu0 0.0
      %5205 = vmatpush1.msra.mxu0 0.0
      %5206 = vmatprep.subr.mxu0 0.0
      %5207 = vmatpush1.msra.mxu0 0.0
      %5208 = vmatprep.subr.mxu0 0.0
      %5209 = vmatpush1.msra.mxu0 0.0
      %5210 = vmatprep.subr.mxu0 0.0
      %5211 = vmatpush1.msra.mxu0 0.0
      %5212 = vmatprep.subr.mxu0 0.0
      %5213 = vmatpush1.msra.mxu0 0.0
      %5214 = vmatprep.subr.mxu0 0.0
      %5215 = vmatpush1.msra.mxu0 0.0
      %5216 = vmatprep.subr.mxu0 0.0
      %5217 = vmatpush1.msra.mxu0 0.0
      %5218 = vmatprep.mubr.f32.mxu0 0.0
      %5219 = vmatmul.mubr.f32.gmra.mrb[0].mxu0 %v5101
      %v5220 = vpop.f32.mrb[0].mxu0
      %v5221 = vadd.f32 0.0, %v5220
      %v5222 = vpop.f32.mrb[0].mxu0
      %5223 = vmatprep.mubr.f32.mxu0 0.0
      %5224 = vmatmul.mubr.f32.gmra.mrb[0].mxu0 %v5103
      %v5225 = vpop.f32.mrb[0].mxu0
      %v5226 = vadd.f32 0.0, %v5225
      %v5227 = vpop.f32.mrb[0].mxu0
      %5228 = vmatprep.mubr.f32.mxu0 0.0
      %5229 = vmatmul.mubr.f32.gmra.mrb[0].mxu0 %v5105
      %v5230 = vpop.f32.mrb[0].mxu0
      %v5231 = vadd.f32 0.0, %v5230
      %v5232 = vpop.f32.mrb[0].mxu0
      %5233 = vmatprep.mubr.f32.mxu0 0.0
      %5234 = vmatmul.mubr.f32.gmra.mrb[0].mxu0 %v5107
      %v5235 = vpop.f32.mrb[0].mxu0
      %v5236 = vadd.f32 0.0, %v5235
      %v5237 = vpop.f32.mrb[0].mxu0
      %5238 = vmatprep.mubr.f32.mxu0 0.0
      %5239 = vmatmul.mubr.f32.gmra.mrb[0].mxu0 %v5109
      %v5240 = vpop.f32.mrb[0].mxu0
      %v5241 = vadd.f32 0.0, %v5240
      %v5242 = vpop.f32.mrb[0].mxu0
      %5243 = vmatprep.mubr.f32.mxu0 0.0
      %5244 = vmatmul.mubr.f32.gmra.mrb[0].mxu0 %v5111
      %v5245 = vpop.f32.mrb[0].mxu0
      %v5246 = vadd.f32 0.0, %v5245
      %v5247 = vpop.f32.mrb[0].mxu0
      %5248 = vmatprep.mubr.f32.mxu0 0.0
      %5249 = vmatmul.mubr.f32.gmra.mrb[0].mxu0 %v5113
      %v5250 = vpop.f32.mrb[0].mxu0
      %v5251 = vadd.f32 0.0, %v5250
      %v5252 = vpop.f32.mrb[0].mxu0
      %5253 = vmatprep.mubr.f32.mxu0 0.0
      %5254 = vmatmul.mubr.f32.gmra.mrb[0].mxu0 %v5115
      %v5255 = vpop.f32.mrb[0].mxu0
      %v5256 = vadd.f32 0.0, %v5255
      %v5257 = vpop.f32.mrb[0].mxu0
      %5258 = vmatprep.mubr.f32.mxu0 0.0
      %5259 = vmatmul.mubr.f32.gmra.mrb[0].mxu0 %v5117
      %v5260 = vpop.f32.mrb[0].mxu0
      %v5261 = vadd.f32 0.0, %v5260
      %v5262 = vpop.f32.mrb[0].mxu0
      %5263 = vmatprep.mubr.f32.mxu0 0.0
      %5264 = vmatmul.mubr.f32.gmra.mrb[0].mxu0 %v5119
      %v5265 = vpop.f32.mrb[0].mxu0
      %v5266 = vadd.f32 0.0, %v5265
      %v5267 = vpop.f32.mrb[0].mxu0
      %5268 = vmatprep.mubr.f32.mxu0 0.0
      %5269 = vmatmul.mubr.f32.gmra.mrb[0].mxu0 %v5121
      %v5270 = vpop.f32.mrb[0].mxu0
      %v5271 = vadd.f32 0.0, %v5270
      %v5272 = vpop.f32.mrb[0].mxu0
      %5273 = vmatprep.mubr.f32.mxu0 0.0
      %5274 = vmatmul.mubr.f32.gmra.mrb[0].mxu0 %v5123
      %v5275 = vpop.f32.mrb[0].mxu0
      %v5276 = vadd.f32 0.0, %v5275
      %v5277 = vpop.f32.mrb[0].mxu0
      %5278 = vmatprep.mubr.f32.mxu0 0.0
      %5279 = vmatmul.mubr.f32.gmra.mrb[0].mxu0 %v5125
      %v5280 = vpop.f32.mrb[0].mxu0
      %v5281 = vadd.f32 0.0, %v5280
      %v5282 = vpop.f32.mrb[0].mxu0
      %5283 = vmatprep.mubr.f32.mxu0 0.0
      %5284 = vmatmul.mubr.f32.gmra.mrb[0].mxu0 %v5127
      %v5285 = vpop.f32.mrb[0].mxu0
      %v5286 = vadd.f32 0.0, %v5285
      %v5287 = vpop.f32.mrb[0].mxu0
      %5288 = vmatprep.mubr.f32.mxu0 0.0
      %5289 = vmatmul.mubr.f32.gmra.mrb[0].mxu0 %v5129
      %v5290 = vpop.f32.mrb[0].mxu0
      %v5291 = vadd.f32 0.0, %v5290
      %v5292 = vpop.f32.mrb[0].mxu0
      %5293 = vmatprep.mubr.f32.mxu0 0.0
      %5294 = vmatmul.mubr.f32.gmra.mrb[0].mxu0 %v5131
      %v5295 = vpop.f32.mrb[0].mxu0
      %v5296 = vadd.f32 0.0, %v5295
      %v5297 = vpop.f32.mrb[0].mxu0
      %5298 = vmatprep.mubr.f32.mxu0 0.0
      %5299 = vmatmul.mubr.f32.gmra.mrb[0].mxu0 %v5133
      %v5300 = vpop.f32.mrb[0].mxu0
      %v5301 = vadd.f32 0.0, %v5300
      %v5302 = vpop.f32.mrb[0].mxu0
      %5303 = vmatprep.mubr.f32.mxu0 0.0
      %5304 = vmatmul.mubr.f32.gmra.mrb[0].mxu0 %v5135
      %v5305 = vpop.f32.mrb[0].mxu0
      %v5306 = vadd.f32 0.0, %v5305
      %v5307 = vpop.f32.mrb[0].mxu0
      %5308 = vmatprep.mubr.f32.mxu0 0.0
      %5309 = vmatmul.mubr.f32.gmra.mrb[0].mxu0 %v5137
      %v5310 = vpop.f32.mrb[0].mxu0
      %v5311 = vadd.f32 0.0, %v5310
      %v5312 = vpop.f32.mrb[0].mxu0
      %5313 = vmatprep.mubr.f32.mxu0 0.0
      %5314 = vmatmul.mubr.f32.gmra.mrb[0].mxu0 %v5139
      %v5315 = vpop.f32.mrb[0].mxu0
      %v5316 = vadd.f32 0.0, %v5315
      %v5317 = vpop.f32.mrb[0].mxu0
      %5318 = vmatprep.mubr.f32.mxu0 0.0
      %5319 = vmatmul.mubr.f32.gmra.mrb[0].mxu0 %v5141
      %v5320 = vpop.f32.mrb[0].mxu0
      %v5321 = vadd.f32 0.0, %v5320
      %v5322 = vpop.f32.mrb[0].mxu0
      %5323 = vmatprep.mubr.f32.mxu0 0.0
      %5324 = vmatmul.mubr.f32.gmra.mrb[0].mxu0 %v5143
      %v5325 = vpop.f32.mrb[0].mxu0
      %v5326 = vadd.f32 0.0, %v5325
      %v5327 = vpop.f32.mrb[0].mxu0
      %5328 = vmatprep.mubr.f32.mxu0 0.0
      %5329 = vmatmul.mubr.f32.gmra.mrb[0].mxu0 %v5145
      %v5330 = vpop.f32.mrb[0].mxu0
      %v5331 = vadd.f32 0.0, %v5330
      %v5332 = vpop.f32.mrb[0].mxu0
      %5333 = vmatprep.mubr.f32.mxu0 0.0
      %5334 = vmatmul.mubr.f32.gmra.mrb[0].mxu0 %v5147
      %v5335 = vpop.f32.mrb[0].mxu0
      %v5336 = vadd.f32 0.0, %v5335
      %v5337 = vpop.f32.mrb[0].mxu0
      %5338 = vmatprep.mubr.f32.mxu0 0.0
      %5339 = vmatmul.mubr.f32.gmra.mrb[0].mxu0 %v5149
      %v5340 = vpop.f32.mrb[0].mxu0
      %v5341 = vadd.f32 0.0, %v5340
      %v5342 = vpop.f32.mrb[0].mxu0
      %5343 = vdwg.mxu0
      %v5344 = vadd.f32 %v4971, %v5221
      %v5345 = vadd.f32 %v4972, %v5226
      %v5346 = vadd.f32 %v4973, %v5231
      %v5347 = vadd.f32 %v4974, %v5236
      %v5348 = vadd.f32 %v4975, %v5241
      %v5349 = vadd.f32 %v4976, %v5246
      %v5350 = vadd.f32 %v4977, %v5251
      %v5351 = vadd.f32 %v4978, %v5256
      %v5352 = vadd.f32 %v4979, %v5261
      %v5353 = vadd.f32 %v4980, %v5266
      %v5354 = vadd.f32 %v4981, %v5271
      %v5355 = vadd.f32 %v4982, %v5276
      %v5356 = vadd.f32 %v4983, %v5281
      %v5357 = vadd.f32 %v4984, %v5286
      %v5358 = vadd.f32 %v4985, %v5291
      %v5359 = vadd.f32 %v4986, %v5296
      %v5360 = vadd.f32 %v4987, %v5301
      %v5361 = vadd.f32 %v4988, %v5306
      %v5362 = vadd.f32 %v4989, %v5311
      %v5363 = vadd.f32 %v4990, %v5316
      %v5364 = vadd.f32 %v4991, %v5321
      %v5365 = vadd.f32 %v4992, %v5326
      %v5366 = vadd.f32 %v4993, %v5331
      %v5367 = vadd.f32 %v4994, %v5336
      %v5368 = vadd.f32 %v4995, %v5341
      %s5369 = scalar_lea.vmem %s186, 32
      %v5370 = vld [vmem:[%s5369] sm:$0xf]
      %v5371 = vcombine.low %v2460, %v2470
      %v5372 = vcombine.low %v2494, %v2504
      %v5373 = vcombine.low %v2528, %v2538
      %v5374 = vcombine.low %v2545, %v2555
      %v5375 = vcombine.low %v2579, %v2589
      %v5376 = vcombine.low %v2613, %v2623
      %v5377 = vcombine.low %v2647, %v2657
      %v5378 = vcombine.low %v2664, %v2674
      %v5379 = vcombine.low %v2698, %v2708
      %v5380 = vcombine.low %v2732, %v2742
      %v5381 = vcombine.low %v2766, %v2776
      %v5382 = vcombine.low %v2783, %v2792
      %v5383 = vcombine.low %v3526, %v4644
      %v5385 = vunpack.c.l.s4 1983009808
      %v5386 = vunpack.c.0.s8 %v5385
      %v5387 = vlaneseq
      %v5388 = vshrl.u32 %v5387, 7
      %v5389 = vsub.s32 %v5386, %v5388
      %v5390 = vrot.slane %v5383, %v5389
      %v5391 = vcombine.low %v3257, %v5390
      %v5392 = vcombine.low %v4643, %v4645
      %v5393 = vcombine.low %v4653, %v4661
      %v5395 = vunpack.c.l.s4 1983009808
      %v5396 = vunpack.c.0.s8 %v5395
      %v5397 = vlaneseq
      %v5398 = vshrl.u32 %v5397, 7
      %v5399 = vsub.s32 %v5396, %v5398
      %v5400 = vrot.slane %v5392, %v5399
      %v5402 = vunpack.c.l.s4 1983009808
      %v5403 = vunpack.c.0.s8 %v5402
      %v5404 = vlaneseq
      %v5405 = vshrl.u32 %v5404, 7
      %v5406 = vsub.s32 %v5403, %v5405
      %v5407 = vrot.slane %v5393, %v5406
      %v5408 = vcombine.low %v5400, %v5407
      %v5409 = vcombine.low %v4660, %v4996
      %v5411 = vunpack.c.l.s4 1983009808
      %v5412 = vunpack.c.0.s8 %v5411
      %v5413 = vlaneseq
      %v5414 = vshrl.u32 %v5413, 7
      %v5415 = vsub.s32 %v5412, %v5414
      %v5416 = vrot.slane %v5409, %v5415
      %v5417 = vsel %vm1471, %v5371, 0
      %v5419 = vsel %vm1471, %v5372, 0
      %v5421 = vsel %vm1471, %v5373, 0
      %v5423 = vsel %vm1471, %v5374, 0
      %v5425 = vsel %vm1471, %v5375, 0
      %v5427 = vsel %vm1471, %v5376, 0
      %v5429 = vsel %vm1471, %v5377, 0
      %v5431 = vsel %vm1471, %v5378, 0
      %v5433 = vsel %vm1471, %v5379, 0
      %v5435 = vsel %vm1471, %v5380, 0
      %v5437 = vsel %vm1471, %v5381, 0
      %v5439 = vsel %vm1471, %v5382, 0
      %v5441 = vsel %vm1471, %v5391, 0
      %v5443 = vsel %vm1471, %v5408, 0
      %v5445 = vsel %vm1471, %v5416, 0
      %v5448 = vsel %vm1522, %v5370, 0
      %5450 = vmatprep.subr.mxu0 0.0
      %5451 = vmatpush1.msra.mxu0 %v5448
      %5452 = vmatprep.subr.mxu0 0.0
      %5453 = vmatpush1.msra.mxu0 0.0
      %5454 = vmatprep.subr.mxu0 0.0
      %5455 = vmatpush1.msra.mxu0 0.0
      %5456 = vmatprep.subr.mxu0 0.0
      %5457 = vmatpush1.msra.mxu0 0.0
      %5458 = vmatprep.subr.mxu0 0.0
      %5459 = vmatpush1.msra.mxu0 0.0
      %5460 = vmatprep.subr.mxu0 0.0
      %5461 = vmatpush1.msra.mxu0 0.0
      %5462 = vmatprep.subr.mxu0 0.0
      %5463 = vmatpush1.msra.mxu0 0.0
      %5464 = vmatprep.subr.mxu0 0.0
      %5465 = vmatpush1.msra.mxu0 0.0
      %5466 = vmatprep.subr.mxu0 0.0
      %5467 = vmatpush1.msra.mxu0 0.0
      %5468 = vmatprep.subr.mxu0 0.0
      %5469 = vmatpush1.msra.mxu0 0.0
      %5470 = vmatprep.subr.mxu0 0.0
      %5471 = vmatpush1.msra.mxu0 0.0
      %5472 = vmatprep.subr.mxu0 0.0
      %5473 = vmatpush1.msra.mxu0 0.0
      %5474 = vmatprep.subr.mxu0 0.0
      %5475 = vmatpush1.msra.mxu0 0.0
      %5476 = vmatprep.subr.mxu0 0.0
      %5477 = vmatpush1.msra.mxu0 0.0
      %5478 = vmatprep.subr.mxu0 0.0
      %5479 = vmatpush1.msra.mxu0 0.0
      %5480 = vmatprep.subr.mxu0 0.0
      %5481 = vmatpush1.msra.mxu0 0.0
      %5482 = vmatprep.subr.mxu0 0.0
      %5483 = vmatpush1.msra.mxu0 0.0
      %5484 = vmatprep.subr.mxu0 0.0
      %5485 = vmatpush1.msra.mxu0 0.0
      %5486 = vmatprep.subr.mxu0 0.0
      %5487 = vmatpush1.msra.mxu0 0.0
      %5488 = vmatprep.subr.mxu0 0.0
      %5489 = vmatpush1.msra.mxu0 0.0
      %5490 = vmatprep.subr.mxu0 0.0
      %5491 = vmatpush1.msra.mxu0 0.0
      %5492 = vmatprep.subr.mxu0 0.0
      %5493 = vmatpush1.msra.mxu0 0.0
      %5494 = vmatprep.subr.mxu0 0.0
      %5495 = vmatpush1.msra.mxu0 0.0
      %5496 = vmatprep.subr.mxu0 0.0
      %5497 = vmatpush1.msra.mxu0 0.0
      %5498 = vmatprep.subr.mxu0 0.0
      %5499 = vmatpush1.msra.mxu0 0.0
      %5500 = vmatprep.subr.mxu0 0.0
      %5501 = vmatpush1.msra.mxu0 0.0
      %5502 = vmatprep.subr.mxu0 0.0
      %5503 = vmatpush1.msra.mxu0 0.0
      %5504 = vmatprep.subr.mxu0 0.0
      %5505 = vmatpush1.msra.mxu0 0.0
      %5506 = vmatprep.subr.mxu0 0.0
      %5507 = vmatpush1.msra.mxu0 0.0
      %5508 = vmatprep.subr.mxu0 0.0
      %5509 = vmatpush1.msra.mxu0 0.0
      %5510 = vmatprep.subr.mxu0 0.0
      %5511 = vmatpush1.msra.mxu0 0.0
      %5512 = vmatprep.subr.mxu0 0.0
      %5513 = vmatpush1.msra.mxu0 0.0
      %5514 = vmatprep.mubr.f32.mxu0 0.0
      %5515 = vmatmul.mubr.f32.gmra.mrb[0].mxu0 %v3262
      %v5516 = vpop.f32.mrb[0].mxu0
      %v5517 = vadd.f32 0.0, %v5516
      %v5518 = vpop.f32.mrb[0].mxu0
      %5519 = vmatprep.mubr.f32.mxu0 0.0
      %5520 = vmatmul.mubr.f32.gmra.mrb[0].mxu0 %v5417
      %v5521 = vpop.f32.mrb[0].mxu0
      %v5522 = vadd.f32 0.0, %v5521
      %v5523 = vpop.f32.mrb[0].mxu0
      %5524 = vmatprep.mubr.f32.mxu0 0.0
      %5525 = vmatmul.mubr.f32.gmra.mrb[0].mxu0 %v3266
      %v5526 = vpop.f32.mrb[0].mxu0
      %v5527 = vadd.f32 0.0, %v5526
      %v5528 = vpop.f32.mrb[0].mxu0
      %5529 = vmatprep.mubr.f32.mxu0 0.0
      %5530 = vmatmul.mubr.f32.gmra.mrb[0].mxu0 %v5419
      %v5531 = vpop.f32.mrb[0].mxu0
      %v5532 = vadd.f32 0.0, %v5531
      %v5533 = vpop.f32.mrb[0].mxu0
      %5534 = vmatprep.mubr.f32.mxu0 0.0
      %5535 = vmatmul.mubr.f32.gmra.mrb[0].mxu0 %v3270
      %v5536 = vpop.f32.mrb[0].mxu0
      %v5537 = vadd.f32 0.0, %v5536
      %v5538 = vpop.f32.mrb[0].mxu0
      %5539 = vmatprep.mubr.f32.mxu0 0.0
      %5540 = vmatmul.mubr.f32.gmra.mrb[0].mxu0 %v5421
      %v5541 = vpop.f32.mrb[0].mxu0
      %v5542 = vadd.f32 0.0, %v5541
      %v5543 = vpop.f32.mrb[0].mxu0
      %5544 = vmatprep.mubr.f32.mxu0 0.0
      %5545 = vmatmul.mubr.f32.gmra.mrb[0].mxu0 %v5423
      %v5546 = vpop.f32.mrb[0].mxu0
      %v5547 = vadd.f32 0.0, %v5546
      %v5548 = vpop.f32.mrb[0].mxu0
      %5549 = vmatprep.mubr.f32.mxu0 0.0
      %5550 = vmatmul.mubr.f32.gmra.mrb[0].mxu0 %v3276
      %v5551 = vpop.f32.mrb[0].mxu0
      %v5552 = vadd.f32 0.0, %v5551
      %v5553 = vpop.f32.mrb[0].mxu0
      %5554 = vmatprep.mubr.f32.mxu0 0.0
      %5555 = vmatmul.mubr.f32.gmra.mrb[0].mxu0 %v5425
      %v5556 = vpop.f32.mrb[0].mxu0
      %v5557 = vadd.f32 0.0, %v5556
      %v5558 = vpop.f32.mrb[0].mxu0
      %5559 = vmatprep.mubr.f32.mxu0 0.0
      %5560 = vmatmul.mubr.f32.gmra.mrb[0].mxu0 %v3280
      %v5561 = vpop.f32.mrb[0].mxu0
      %v5562 = vadd.f32 0.0, %v5561
      %v5563 = vpop.f32.mrb[0].mxu0
      %5564 = vmatprep.mubr.f32.mxu0 0.0
      %5565 = vmatmul.mubr.f32.gmra.mrb[0].mxu0 %v5427
      %v5566 = vpop.f32.mrb[0].mxu0
      %v5567 = vadd.f32 0.0, %v5566
      %v5568 = vpop.f32.mrb[0].mxu0
      %5569 = vmatprep.mubr.f32.mxu0 0.0
      %5570 = vmatmul.mubr.f32.gmra.mrb[0].mxu0 %v3284
      %v5571 = vpop.f32.mrb[0].mxu0
      %v5572 = vadd.f32 0.0, %v5571
      %v5573 = vpop.f32.mrb[0].mxu0
      %5574 = vmatprep.mubr.f32.mxu0 0.0
      %5575 = vmatmul.mubr.f32.gmra.mrb[0].mxu0 %v5429
      %v5576 = vpop.f32.mrb[0].mxu0
      %v5577 = vadd.f32 0.0, %v5576
      %v5578 = vpop.f32.mrb[0].mxu0
      %5579 = vmatprep.mubr.f32.mxu0 0.0
      %5580 = vmatmul.mubr.f32.gmra.mrb[0].mxu0 %v5431
      %v5581 = vpop.f32.mrb[0].mxu0
      %v5582 = vadd.f32 0.0, %v5581
      %v5583 = vpop.f32.mrb[0].mxu0
      %5584 = vmatprep.mubr.f32.mxu0 0.0
      %5585 = vmatmul.mubr.f32.gmra.mrb[0].mxu0 %v3290
      %v5586 = vpop.f32.mrb[0].mxu0
      %v5587 = vadd.f32 0.0, %v5586
      %v5588 = vpop.f32.mrb[0].mxu0
      %5589 = vmatprep.mubr.f32.mxu0 0.0
      %5590 = vmatmul.mubr.f32.gmra.mrb[0].mxu0 %v5433
      %v5591 = vpop.f32.mrb[0].mxu0
      %v5592 = vadd.f32 0.0, %v5591
      %v5593 = vpop.f32.mrb[0].mxu0
      %5594 = vmatprep.mubr.f32.mxu0 0.0
      %5595 = vmatmul.mubr.f32.gmra.mrb[0].mxu0 %v3294
      %v5596 = vpop.f32.mrb[0].mxu0
      %v5597 = vadd.f32 0.0, %v5596
      %v5598 = vpop.f32.mrb[0].mxu0
      %5599 = vmatprep.mubr.f32.mxu0 0.0
      %5600 = vmatmul.mubr.f32.gmra.mrb[0].mxu0 %v5435
      %v5601 = vpop.f32.mrb[0].mxu0
      %v5602 = vadd.f32 0.0, %v5601
      %v5603 = vpop.f32.mrb[0].mxu0
      %5604 = vmatprep.mubr.f32.mxu0 0.0
      %5605 = vmatmul.mubr.f32.gmra.mrb[0].mxu0 %v3298
      %v5606 = vpop.f32.mrb[0].mxu0
      %v5607 = vadd.f32 0.0, %v5606
      %v5608 = vpop.f32.mrb[0].mxu0
      %5609 = vmatprep.mubr.f32.mxu0 0.0
      %5610 = vmatmul.mubr.f32.gmra.mrb[0].mxu0 %v5437
      %v5611 = vpop.f32.mrb[0].mxu0
      %v5612 = vadd.f32 0.0, %v5611
      %v5613 = vpop.f32.mrb[0].mxu0
      %5614 = vmatprep.mubr.f32.mxu0 0.0
      %5615 = vmatmul.mubr.f32.gmra.mrb[0].mxu0 %v5439
      %v5616 = vpop.f32.mrb[0].mxu0
      %v5617 = vadd.f32 0.0, %v5616
      %v5618 = vpop.f32.mrb[0].mxu0
      %5619 = vmatprep.mubr.f32.mxu0 0.0
      %5620 = vmatmul.mubr.f32.gmra.mrb[0].mxu0 %v3304
      %v5621 = vpop.f32.mrb[0].mxu0
      %v5622 = vadd.f32 0.0, %v5621
      %v5623 = vpop.f32.mrb[0].mxu0
      %5624 = vmatprep.mubr.f32.mxu0 0.0
      %5625 = vmatmul.mubr.f32.gmra.mrb[0].mxu0 %v5441
      %v5626 = vpop.f32.mrb[0].mxu0
      %v5627 = vadd.f32 0.0, %v5626
      %v5628 = vpop.f32.mrb[0].mxu0
      %5629 = vmatprep.mubr.f32.mxu0 0.0
      %5630 = vmatmul.mubr.f32.gmra.mrb[0].mxu0 %v5443
      %v5631 = vpop.f32.mrb[0].mxu0
      %v5632 = vadd.f32 0.0, %v5631
      %v5633 = vpop.f32.mrb[0].mxu0
      %5634 = vmatprep.mubr.f32.mxu0 0.0
      %5635 = vmatmul.mubr.f32.gmra.mrb[0].mxu0 %v5445
      %v5636 = vpop.f32.mrb[0].mxu0
      %v5637 = vadd.f32 0.0, %v5636
      %v5638 = vpop.f32.mrb[0].mxu0
      %5639 = vdwg.mxu0
      %v5640 = vadd.f32 %v5344, %v5517
      %v5641 = vadd.f32 %v5345, %v5522
      %v5642 = vadd.f32 %v5346, %v5527
      %v5643 = vadd.f32 %v5347, %v5532
      %v5644 = vadd.f32 %v5348, %v5537
      %v5645 = vadd.f32 %v5349, %v5542
      %v5646 = vadd.f32 %v5350, %v5547
      %v5647 = vadd.f32 %v5351, %v5552
      %v5648 = vadd.f32 %v5352, %v5557
      %v5649 = vadd.f32 %v5353, %v5562
      %v5650 = vadd.f32 %v5354, %v5567
      %v5651 = vadd.f32 %v5355, %v5572
      %v5652 = vadd.f32 %v5356, %v5577
      %v5653 = vadd.f32 %v5357, %v5582
      %v5654 = vadd.f32 %v5358, %v5587
      %v5655 = vadd.f32 %v5359, %v5592
      %v5656 = vadd.f32 %v5360, %v5597
      %v5657 = vadd.f32 %v5361, %v5602
      %v5658 = vadd.f32 %v5362, %v5607
      %v5659 = vadd.f32 %v5363, %v5612
      %v5660 = vadd.f32 %v5364, %v5617
      %v5661 = vadd.f32 %v5365, %v5622
      %v5662 = vadd.f32 %v5366, %v5627
      %v5663 = vadd.f32 %v5367, %v5632
      %v5664 = vadd.f32 %v5368, %v5637
      %v5690 = vcombine.high %v5640, %v5640
      %v5692 = vunpack.c.l.s4 1983009808
      %v5693 = vunpack.c.0.s8 %v5692
      %v5694 = vlaneseq
      %v5695 = vshrl.u32 %v5694, 7
      %v5696 = vsub.s32 %v5693, %v5695
      %v5697 = vrot.slane %v5640, %v5696
      %v5699 = vunpack.c.l.s4 1983009808
      %v5700 = vunpack.c.0.s8 %v5699
      %v5701 = vlaneseq
      %v5702 = vshrl.u32 %v5701, 7
      %v5703 = vsub.s32 %v5700, %v5702
      %v5704 = vrot.slane %v5690, %v5703
      %v5705 = vcombine.high %v5697, %v5697
      %v5706 = vcombine.high %v5704, %v5704
      %v5707 = vcombine.high %v5641, %v5641
      %v5709 = vunpack.c.l.s4 1983009808
      %v5710 = vunpack.c.0.s8 %v5709
      %v5711 = vlaneseq
      %v5712 = vshrl.u32 %v5711, 7
      %v5713 = vsub.s32 %v5710, %v5712
      %v5714 = vrot.slane %v5641, %v5713
      %v5716 = vunpack.c.l.s4 1983009808
      %v5717 = vunpack.c.0.s8 %v5716
      %v5718 = vlaneseq
      %v5719 = vshrl.u32 %v5718, 7
      %v5720 = vsub.s32 %v5717, %v5719
      %v5721 = vrot.slane %v5707, %v5720
      %v5722 = vcombine.high %v5714, %v5714
      %v5723 = vcombine.high %v5721, %v5721
      %v5724 = vcombine.high %v5642, %v5642
      %v5726 = vunpack.c.l.s4 1983009808
      %v5727 = vunpack.c.0.s8 %v5726
      %v5728 = vlaneseq
      %v5729 = vshrl.u32 %v5728, 7
      %v5730 = vsub.s32 %v5727, %v5729
      %v5731 = vrot.slane %v5642, %v5730
      %v5733 = vunpack.c.l.s4 1983009808
      %v5734 = vunpack.c.0.s8 %v5733
      %v5735 = vlaneseq
      %v5736 = vshrl.u32 %v5735, 7
      %v5737 = vsub.s32 %v5734, %v5736
      %v5738 = vrot.slane %v5724, %v5737
      %v5739 = vcombine.high %v5731, %v5731
      %v5740 = vcombine.high %v5738, %v5738
      %v5741 = vcombine.high %v5643, %v5643
      %v5743 = vunpack.c.l.s4 1983009808
      %v5744 = vunpack.c.0.s8 %v5743
      %v5745 = vlaneseq
      %v5746 = vshrl.u32 %v5745, 7
      %v5747 = vsub.s32 %v5744, %v5746
      %v5748 = vrot.slane %v5643, %v5747
      %v5750 = vunpack.c.l.s4 1983009808
      %v5751 = vunpack.c.0.s8 %v5750
      %v5752 = vlaneseq
      %v5753 = vshrl.u32 %v5752, 7
      %v5754 = vsub.s32 %v5751, %v5753
      %v5755 = vrot.slane %v5741, %v5754
      %v5756 = vcombine.high %v5748, %v5748
      %v5757 = vcombine.high %v5755, %v5755
      %v5758 = vcombine.high %v5644, %v5644
      %v5760 = vunpack.c.l.s4 1983009808
      %v5761 = vunpack.c.0.s8 %v5760
      %v5762 = vlaneseq
      %v5763 = vshrl.u32 %v5762, 7
      %v5764 = vsub.s32 %v5761, %v5763
      %v5765 = vrot.slane %v5644, %v5764
      %v5767 = vunpack.c.l.s4 1983009808
      %v5768 = vunpack.c.0.s8 %v5767
      %v5769 = vlaneseq
      %v5770 = vshrl.u32 %v5769, 7
      %v5771 = vsub.s32 %v5768, %v5770
      %v5772 = vrot.slane %v5758, %v5771
      %v5773 = vcombine.high %v5765, %v5765
      %v5774 = vcombine.high %v5772, %v5772
      %v5775 = vcombine.high %v5645, %v5645
      %v5777 = vunpack.c.l.s4 1983009808
      %v5778 = vunpack.c.0.s8 %v5777
      %v5779 = vlaneseq
      %v5780 = vshrl.u32 %v5779, 7
      %v5781 = vsub.s32 %v5778, %v5780
      %v5782 = vrot.slane %v5645, %v5781
      %v5784 = vunpack.c.l.s4 1983009808
      %v5785 = vunpack.c.0.s8 %v5784
      %v5786 = vlaneseq
      %v5787 = vshrl.u32 %v5786, 7
      %v5788 = vsub.s32 %v5785, %v5787
      %v5789 = vrot.slane %v5775, %v5788
      %v5790 = vcombine.high %v5782, %v5782
      %v5791 = vcombine.high %v5789, %v5789
      %v5792 = vcombine.high %v5646, %v5646
      %v5794 = vunpack.c.l.s4 1983009808
      %v5795 = vunpack.c.0.s8 %v5794
      %v5796 = vlaneseq
      %v5797 = vshrl.u32 %v5796, 7
      %v5798 = vsub.s32 %v5795, %v5797
      %v5799 = vrot.slane %v5646, %v5798
      %v5801 = vunpack.c.l.s4 1983009808
      %v5802 = vunpack.c.0.s8 %v5801
      %v5803 = vlaneseq
      %v5804 = vshrl.u32 %v5803, 7
      %v5805 = vsub.s32 %v5802, %v5804
      %v5806 = vrot.slane %v5792, %v5805
      %v5807 = vcombine.high %v5799, %v5799
      %v5808 = vcombine.high %v5806, %v5806
      %v5809 = vcombine.high %v5647, %v5647
      %v5811 = vunpack.c.l.s4 1983009808
      %v5812 = vunpack.c.0.s8 %v5811
      %v5813 = vlaneseq
      %v5814 = vshrl.u32 %v5813, 7
      %v5815 = vsub.s32 %v5812, %v5814
      %v5816 = vrot.slane %v5647, %v5815
      %v5818 = vunpack.c.l.s4 1983009808
      %v5819 = vunpack.c.0.s8 %v5818
      %v5820 = vlaneseq
      %v5821 = vshrl.u32 %v5820, 7
      %v5822 = vsub.s32 %v5819, %v5821
      %v5823 = vrot.slane %v5809, %v5822
      %v5824 = vcombine.high %v5816, %v5816
      %v5825 = vcombine.high %v5823, %v5823
      %v5826 = vcombine.high %v5648, %v5648
      %v5828 = vunpack.c.l.s4 1983009808
      %v5829 = vunpack.c.0.s8 %v5828
      %v5830 = vlaneseq
      %v5831 = vshrl.u32 %v5830, 7
      %v5832 = vsub.s32 %v5829, %v5831
      %v5833 = vrot.slane %v5648, %v5832
      %v5835 = vunpack.c.l.s4 1983009808
      %v5836 = vunpack.c.0.s8 %v5835
      %v5837 = vlaneseq
      %v5838 = vshrl.u32 %v5837, 7
      %v5839 = vsub.s32 %v5836, %v5838
      %v5840 = vrot.slane %v5826, %v5839
      %v5841 = vcombine.high %v5833, %v5833
      %v5842 = vcombine.high %v5840, %v5840
      %v5843 = vcombine.high %v5649, %v5649
      %v5845 = vunpack.c.l.s4 1983009808
      %v5846 = vunpack.c.0.s8 %v5845
      %v5847 = vlaneseq
      %v5848 = vshrl.u32 %v5847, 7
      %v5849 = vsub.s32 %v5846, %v5848
      %v5850 = vrot.slane %v5649, %v5849
      %v5852 = vunpack.c.l.s4 1983009808
      %v5853 = vunpack.c.0.s8 %v5852
      %v5854 = vlaneseq
      %v5855 = vshrl.u32 %v5854, 7
      %v5856 = vsub.s32 %v5853, %v5855
      %v5857 = vrot.slane %v5843, %v5856
      %v5858 = vcombine.high %v5850, %v5850
      %v5859 = vcombine.high %v5857, %v5857
      %v5860 = vcombine.high %v5650, %v5650
      %v5862 = vunpack.c.l.s4 1983009808
      %v5863 = vunpack.c.0.s8 %v5862
      %v5864 = vlaneseq
      %v5865 = vshrl.u32 %v5864, 7
      %v5866 = vsub.s32 %v5863, %v5865
      %v5867 = vrot.slane %v5650, %v5866
      %v5869 = vunpack.c.l.s4 1983009808
      %v5870 = vunpack.c.0.s8 %v5869
      %v5871 = vlaneseq
      %v5872 = vshrl.u32 %v5871, 7
      %v5873 = vsub.s32 %v5870, %v5872
      %v5874 = vrot.slane %v5860, %v5873
      %v5875 = vcombine.high %v5867, %v5867
      %v5876 = vcombine.high %v5874, %v5874
      %v5877 = vcombine.high %v5651, %v5651
      %v5879 = vunpack.c.l.s4 1983009808
      %v5880 = vunpack.c.0.s8 %v5879
      %v5881 = vlaneseq
      %v5882 = vshrl.u32 %v5881, 7
      %v5883 = vsub.s32 %v5880, %v5882
      %v5884 = vrot.slane %v5651, %v5883
      %v5886 = vunpack.c.l.s4 1983009808
      %v5887 = vunpack.c.0.s8 %v5886
      %v5888 = vlaneseq
      %v5889 = vshrl.u32 %v5888, 7
      %v5890 = vsub.s32 %v5887, %v5889
      %v5891 = vrot.slane %v5877, %v5890
      %v5892 = vcombine.high %v5884, %v5884
      %v5893 = vcombine.high %v5891, %v5891
      %v5894 = vcombine.high %v5652, %v5652
      %v5896 = vunpack.c.l.s4 1983009808
      %v5897 = vunpack.c.0.s8 %v5896
      %v5898 = vlaneseq
      %v5899 = vshrl.u32 %v5898, 7
      %v5900 = vsub.s32 %v5897, %v5899
      %v5901 = vrot.slane %v5652, %v5900
      %v5903 = vunpack.c.l.s4 1983009808
      %v5904 = vunpack.c.0.s8 %v5903
      %v5905 = vlaneseq
      %v5906 = vshrl.u32 %v5905, 7
      %v5907 = vsub.s32 %v5904, %v5906
      %v5908 = vrot.slane %v5894, %v5907
      %v5909 = vcombine.high %v5901, %v5901
      %v5910 = vcombine.high %v5908, %v5908
      %v5911 = vcombine.high %v5653, %v5653
      %v5913 = vunpack.c.l.s4 1983009808
      %v5914 = vunpack.c.0.s8 %v5913
      %v5915 = vlaneseq
      %v5916 = vshrl.u32 %v5915, 7
      %v5917 = vsub.s32 %v5914, %v5916
      %v5918 = vrot.slane %v5653, %v5917
      %v5920 = vunpack.c.l.s4 1983009808
      %v5921 = vunpack.c.0.s8 %v5920
      %v5922 = vlaneseq
      %v5923 = vshrl.u32 %v5922, 7
      %v5924 = vsub.s32 %v5921, %v5923
      %v5925 = vrot.slane %v5911, %v5924
      %v5926 = vcombine.high %v5918, %v5918
      %v5927 = vcombine.high %v5925, %v5925
      %v5928 = vcombine.high %v5654, %v5654
      %v5930 = vunpack.c.l.s4 1983009808
      %v5931 = vunpack.c.0.s8 %v5930
      %v5932 = vlaneseq
      %v5933 = vshrl.u32 %v5932, 7
      %v5934 = vsub.s32 %v5931, %v5933
      %v5935 = vrot.slane %v5654, %v5934
      %v5937 = vunpack.c.l.s4 1983009808
      %v5938 = vunpack.c.0.s8 %v5937
      %v5939 = vlaneseq
      %v5940 = vshrl.u32 %v5939, 7
      %v5941 = vsub.s32 %v5938, %v5940
      %v5942 = vrot.slane %v5928, %v5941
      %v5943 = vcombine.high %v5935, %v5935
      %v5944 = vcombine.high %v5942, %v5942
      %v5945 = vcombine.high %v5655, %v5655
      %v5947 = vunpack.c.l.s4 1983009808
      %v5948 = vunpack.c.0.s8 %v5947
      %v5949 = vlaneseq
      %v5950 = vshrl.u32 %v5949, 7
      %v5951 = vsub.s32 %v5948, %v5950
      %v5952 = vrot.slane %v5655, %v5951
      %v5954 = vunpack.c.l.s4 1983009808
      %v5955 = vunpack.c.0.s8 %v5954
      %v5956 = vlaneseq
      %v5957 = vshrl.u32 %v5956, 7
      %v5958 = vsub.s32 %v5955, %v5957
      %v5959 = vrot.slane %v5945, %v5958
      %v5960 = vcombine.high %v5952, %v5952
      %v5961 = vcombine.high %v5959, %v5959
      %v5962 = vcombine.high %v5656, %v5656
      %v5964 = vunpack.c.l.s4 1983009808
      %v5965 = vunpack.c.0.s8 %v5964
      %v5966 = vlaneseq
      %v5967 = vshrl.u32 %v5966, 7
      %v5968 = vsub.s32 %v5965, %v5967
      %v5969 = vrot.slane %v5656, %v5968
      %v5971 = vunpack.c.l.s4 1983009808
      %v5972 = vunpack.c.0.s8 %v5971
      %v5973 = vlaneseq
      %v5974 = vshrl.u32 %v5973, 7
      %v5975 = vsub.s32 %v5972, %v5974
      %v5976 = vrot.slane %v5962, %v5975
      %v5977 = vcombine.high %v5969, %v5969
      %v5978 = vcombine.high %v5976, %v5976
      %v5979 = vcombine.high %v5657, %v5657
      %v5981 = vunpack.c.l.s4 1983009808
      %v5982 = vunpack.c.0.s8 %v5981
      %v5983 = vlaneseq
      %v5984 = vshrl.u32 %v5983, 7
      %v5985 = vsub.s32 %v5982, %v5984
      %v5986 = vrot.slane %v5657, %v5985
      %v5988 = vunpack.c.l.s4 1983009808
      %v5989 = vunpack.c.0.s8 %v5988
      %v5990 = vlaneseq
      %v5991 = vshrl.u32 %v5990, 7
      %v5992 = vsub.s32 %v5989, %v5991
      %v5993 = vrot.slane %v5979, %v5992
      %v5994 = vcombine.high %v5986, %v5986
      %v5995 = vcombine.high %v5993, %v5993
      %v5996 = vcombine.high %v5658, %v5658
      %v5998 = vunpack.c.l.s4 1983009808
      %v5999 = vunpack.c.0.s8 %v5998
      %v6000 = vlaneseq
      %v6001 = vshrl.u32 %v6000, 7
      %v6002 = vsub.s32 %v5999, %v6001
      %v6003 = vrot.slane %v5658, %v6002
      %v6005 = vunpack.c.l.s4 1983009808
      %v6006 = vunpack.c.0.s8 %v6005
      %v6007 = vlaneseq
      %v6008 = vshrl.u32 %v6007, 7
      %v6009 = vsub.s32 %v6006, %v6008
      %v6010 = vrot.slane %v5996, %v6009
      %v6011 = vcombine.high %v6003, %v6003
      %v6012 = vcombine.high %v6010, %v6010
      %v6013 = vcombine.high %v5659, %v5659
      %v6015 = vunpack.c.l.s4 1983009808
      %v6016 = vunpack.c.0.s8 %v6015
      %v6017 = vlaneseq
      %v6018 = vshrl.u32 %v6017, 7
      %v6019 = vsub.s32 %v6016, %v6018
      %v6020 = vrot.slane %v5659, %v6019
      %v6022 = vunpack.c.l.s4 1983009808
      %v6023 = vunpack.c.0.s8 %v6022
      %v6024 = vlaneseq
      %v6025 = vshrl.u32 %v6024, 7
      %v6026 = vsub.s32 %v6023, %v6025
      %v6027 = vrot.slane %v6013, %v6026
      %v6028 = vcombine.high %v6020, %v6020
      %v6029 = vcombine.high %v6027, %v6027
      %v6030 = vcombine.high %v5660, %v5660
      %v6032 = vunpack.c.l.s4 1983009808
      %v6033 = vunpack.c.0.s8 %v6032
      %v6034 = vlaneseq
      %v6035 = vshrl.u32 %v6034, 7
      %v6036 = vsub.s32 %v6033, %v6035
      %v6037 = vrot.slane %v5660, %v6036
      %v6039 = vunpack.c.l.s4 1983009808
      %v6040 = vunpack.c.0.s8 %v6039
      %v6041 = vlaneseq
      %v6042 = vshrl.u32 %v6041, 7
      %v6043 = vsub.s32 %v6040, %v6042
      %v6044 = vrot.slane %v6030, %v6043
      %v6045 = vcombine.high %v6037, %v6037
      %v6046 = vcombine.high %v6044, %v6044
      %v6047 = vcombine.high %v5661, %v5661
      %v6049 = vunpack.c.l.s4 1983009808
      %v6050 = vunpack.c.0.s8 %v6049
      %v6051 = vlaneseq
      %v6052 = vshrl.u32 %v6051, 7
      %v6053 = vsub.s32 %v6050, %v6052
      %v6054 = vrot.slane %v5661, %v6053
      %v6056 = vunpack.c.l.s4 1983009808
      %v6057 = vunpack.c.0.s8 %v6056
      %v6058 = vlaneseq
      %v6059 = vshrl.u32 %v6058, 7
      %v6060 = vsub.s32 %v6057, %v6059
      %v6061 = vrot.slane %v6047, %v6060
      %v6062 = vcombine.high %v6054, %v6054
      %v6063 = vcombine.high %v6061, %v6061
      %v6064 = vcombine.high %v5662, %v5662
      %v6066 = vunpack.c.l.s4 1983009808
      %v6067 = vunpack.c.0.s8 %v6066
      %v6068 = vlaneseq
      %v6069 = vshrl.u32 %v6068, 7
      %v6070 = vsub.s32 %v6067, %v6069
      %v6071 = vrot.slane %v5662, %v6070
      %v6073 = vunpack.c.l.s4 1983009808
      %v6074 = vunpack.c.0.s8 %v6073
      %v6075 = vlaneseq
      %v6076 = vshrl.u32 %v6075, 7
      %v6077 = vsub.s32 %v6074, %v6076
      %v6078 = vrot.slane %v6064, %v6077
      %v6079 = vcombine.high %v6071, %v6071
      %v6080 = vcombine.high %v6078, %v6078
      %v6081 = vcombine.high %v5663, %v5663
      %v6083 = vunpack.c.l.s4 1983009808
      %v6084 = vunpack.c.0.s8 %v6083
      %v6085 = vlaneseq
      %v6086 = vshrl.u32 %v6085, 7
      %v6087 = vsub.s32 %v6084, %v6086
      %v6088 = vrot.slane %v5663, %v6087
      %v6090 = vunpack.c.l.s4 1983009808
      %v6091 = vunpack.c.0.s8 %v6090
      %v6092 = vlaneseq
      %v6093 = vshrl.u32 %v6092, 7
      %v6094 = vsub.s32 %v6091, %v6093
      %v6095 = vrot.slane %v6081, %v6094
      %v6096 = vcombine.high %v6088, %v6088
      %v6097 = vcombine.high %v6095, %v6095
      %v6099 = vunpack.c.l.s4 1983009808
      %v6100 = vunpack.c.0.s8 %v6099
      %v6101 = vlaneseq
      %v6102 = vshrl.u32 %v6101, 7
      %v6103 = vsub.s32 %v6100, %v6102
      %v6104 = vrot.slane %v5664, %v6103
      %v6105 = vcombine.high %v6104, %v6104
      %v6106 = vcombine.low %v5697, %v5705
      %v6107 = vcombine.low %v5704, %v5706
      %v6109 = vunpack.c.l.s4 1983009808
      %v6110 = vunpack.c.0.s8 %v6109
      %v6111 = vlaneseq
      %v6112 = vshrl.u32 %v6111, 7
      %v6113 = vsub.s32 %v6110, %v6112
      %v6114 = vrot.slane %v6106, %v6113
      %v6116 = vunpack.c.l.s4 1983009808
      %v6117 = vunpack.c.0.s8 %v6116
      %v6118 = vlaneseq
      %v6119 = vshrl.u32 %v6118, 7
      %v6120 = vsub.s32 %v6117, %v6119
      %v6121 = vrot.slane %v6107, %v6120
      %v6122 = vcombine.low %v6114, %v6121
      %v6123 = vcombine.low %v5714, %v5722
      %v6125 = vunpack.c.l.s4 1983009808
      %v6126 = vunpack.c.0.s8 %v6125
      %v6127 = vlaneseq
      %v6128 = vshrl.u32 %v6127, 7
      %v6129 = vsub.s32 %v6126, %v6128
      %v6130 = vrot.slane %v6123, %v6129
      %v6132 = vunpack.c.l.s4 1983009808
      %v6133 = vunpack.c.0.s8 %v6132
      %v6134 = vlaneseq
      %v6135 = vshrl.u32 %v6134, 7
      %v6136 = vsub.s32 %v6133, %v6135
      %v6137 = vrot.slane %v5721, %v6136
      %v6138 = vcombine.low %v6130, %v6137
      %v6139 = vcombine.low %v5723, %v5731
      %v6140 = vcombine.low %v5739, %v5738
      %v6142 = vunpack.c.l.s4 1983009808
      %v6143 = vunpack.c.0.s8 %v6142
      %v6144 = vlaneseq
      %v6145 = vshrl.u32 %v6144, 7
      %v6146 = vsub.s32 %v6143, %v6145
      %v6147 = vrot.slane %v6139, %v6146
      %v6149 = vunpack.c.l.s4 1983009808
      %v6150 = vunpack.c.0.s8 %v6149
      %v6151 = vlaneseq
      %v6152 = vshrl.u32 %v6151, 7
      %v6153 = vsub.s32 %v6150, %v6152
      %v6154 = vrot.slane %v6140, %v6153
      %v6155 = vcombine.low %v6147, %v6154
      %v6156 = vcombine.low %v5740, %v5748
      %v6158 = vunpack.c.l.s4 1983009808
      %v6159 = vunpack.c.0.s8 %v6158
      %v6160 = vlaneseq
      %v6161 = vshrl.u32 %v6160, 7
      %v6162 = vsub.s32 %v6159, %v6161
      %v6163 = vrot.slane %v6156, %v6162
      %v6165 = vunpack.c.l.s4 1983009808
      %v6166 = vunpack.c.0.s8 %v6165
      %v6167 = vlaneseq
      %v6168 = vshrl.u32 %v6167, 7
      %v6169 = vsub.s32 %v6166, %v6168
      %v6170 = vrot.slane %v5756, %v6169
      %v6171 = vcombine.low %v6163, %v6170
      %v6172 = vcombine.low %v5755, %v5757
      %v6173 = vcombine.low %v5765, %v5773
      %v6175 = vunpack.c.l.s4 1983009808
      %v6176 = vunpack.c.0.s8 %v6175
      %v6177 = vlaneseq
      %v6178 = vshrl.u32 %v6177, 7
      %v6179 = vsub.s32 %v6176, %v6178
      %v6180 = vrot.slane %v6172, %v6179
      %v6182 = vunpack.c.l.s4 1983009808
      %v6183 = vunpack.c.0.s8 %v6182
      %v6184 = vlaneseq
      %v6185 = vshrl.u32 %v6184, 7
      %v6186 = vsub.s32 %v6183, %v6185
      %v6187 = vrot.slane %v6173, %v6186
      %v6188 = vcombine.low %v6180, %v6187
      %v6189 = vcombine.low %v5772, %v5774
      %v6191 = vunpack.c.l.s4 1983009808
      %v6192 = vunpack.c.0.s8 %v6191
      %v6193 = vlaneseq
      %v6194 = vshrl.u32 %v6193, 7
      %v6195 = vsub.s32 %v6192, %v6194
      %v6196 = vrot.slane %v6189, %v6195
      %v6198 = vunpack.c.l.s4 1983009808
      %v6199 = vunpack.c.0.s8 %v6198
      %v6200 = vlaneseq
      %v6201 = vshrl.u32 %v6200, 7
      %v6202 = vsub.s32 %v6199, %v6201
      %v6203 = vrot.slane %v5782, %v6202
      %v6204 = vcombine.low %v6196, %v6203
      %v6205 = vcombine.low %v5790, %v5789
      %v6206 = vcombine.low %v5791, %v5799
      %v6208 = vunpack.c.l.s4 1983009808
      %v6209 = vunpack.c.0.s8 %v6208
      %v6210 = vlaneseq
      %v6211 = vshrl.u32 %v6210, 7
      %v6212 = vsub.s32 %v6209, %v6211
      %v6213 = vrot.slane %v6205, %v6212
      %v6215 = vunpack.c.l.s4 1983009808
      %v6216 = vunpack.c.0.s8 %v6215
      %v6217 = vlaneseq
      %v6218 = vshrl.u32 %v6217, 7
      %v6219 = vsub.s32 %v6216, %v6218
      %v6220 = vrot.slane %v6206, %v6219
      %v6221 = vcombine.low %v6213, %v6220
      %v6222 = vcombine.low %v5807, %v5806
      %v6224 = vunpack.c.l.s4 1983009808
      %v6225 = vunpack.c.0.s8 %v6224
      %v6226 = vlaneseq
      %v6227 = vshrl.u32 %v6226, 7
      %v6228 = vsub.s32 %v6225, %v6227
      %v6229 = vrot.slane %v6222, %v6228
      %v6231 = vunpack.c.l.s4 1983009808
      %v6232 = vunpack.c.0.s8 %v6231
      %v6233 = vlaneseq
      %v6234 = vshrl.u32 %v6233, 7
      %v6235 = vsub.s32 %v6232, %v6234
      %v6236 = vrot.slane %v5808, %v6235
      %v6237 = vcombine.low %v6229, %v6236
      %v6238 = vcombine.low %v5816, %v5824
      %v6239 = vcombine.low %v5823, %v5825
      %v6241 = vunpack.c.l.s4 1983009808
      %v6242 = vunpack.c.0.s8 %v6241
      %v6243 = vlaneseq
      %v6244 = vshrl.u32 %v6243, 7
      %v6245 = vsub.s32 %v6242, %v6244
      %v6246 = vrot.slane %v6238, %v6245
      %v6248 = vunpack.c.l.s4 1983009808
      %v6249 = vunpack.c.0.s8 %v6248
      %v6250 = vlaneseq
      %v6251 = vshrl.u32 %v6250, 7
      %v6252 = vsub.s32 %v6249, %v6251
      %v6253 = vrot.slane %v6239, %v6252
      %v6254 = vcombine.low %v6246, %v6253
      %v6255 = vcombine.low %v5833, %v5841
      %v6257 = vunpack.c.l.s4 1983009808
      %v6258 = vunpack.c.0.s8 %v6257
      %v6259 = vlaneseq
      %v6260 = vshrl.u32 %v6259, 7
      %v6261 = vsub.s32 %v6258, %v6260
      %v6262 = vrot.slane %v6255, %v6261
      %v6264 = vunpack.c.l.s4 1983009808
      %v6265 = vunpack.c.0.s8 %v6264
      %v6266 = vlaneseq
      %v6267 = vshrl.u32 %v6266, 7
      %v6268 = vsub.s32 %v6265, %v6267
      %v6269 = vrot.slane %v5840, %v6268
      %v6270 = vcombine.low %v6262, %v6269
      %v6271 = vcombine.low %v5842, %v5850
      %v6272 = vcombine.low %v5858, %v5857
      %v6274 = vunpack.c.l.s4 1983009808
      %v6275 = vunpack.c.0.s8 %v6274
      %v6276 = vlaneseq
      %v6277 = vshrl.u32 %v6276, 7
      %v6278 = vsub.s32 %v6275, %v6277
      %v6279 = vrot.slane %v6271, %v6278
      %v6281 = vunpack.c.l.s4 1983009808
      %v6282 = vunpack.c.0.s8 %v6281
      %v6283 = vlaneseq
      %v6284 = vshrl.u32 %v6283, 7
      %v6285 = vsub.s32 %v6282, %v6284
      %v6286 = vrot.slane %v6272, %v6285
      %v6287 = vcombine.low %v6279, %v6286
      %v6288 = vcombine.low %v5859, %v5867
      %v6290 = vunpack.c.l.s4 1983009808
      %v6291 = vunpack.c.0.s8 %v6290
      %v6292 = vlaneseq
      %v6293 = vshrl.u32 %v6292, 7
      %v6294 = vsub.s32 %v6291, %v6293
      %v6295 = vrot.slane %v6288, %v6294
      %v6297 = vunpack.c.l.s4 1983009808
      %v6298 = vunpack.c.0.s8 %v6297
      %v6299 = vlaneseq
      %v6300 = vshrl.u32 %v6299, 7
      %v6301 = vsub.s32 %v6298, %v6300
      %v6302 = vrot.slane %v5875, %v6301
      %v6303 = vcombine.low %v6295, %v6302
      %v6304 = vcombine.low %v5874, %v5876
      %v6305 = vcombine.low %v5884, %v5892
      %v6307 = vunpack.c.l.s4 1983009808
      %v6308 = vunpack.c.0.s8 %v6307
      %v6309 = vlaneseq
      %v6310 = vshrl.u32 %v6309, 7
      %v6311 = vsub.s32 %v6308, %v6310
      %v6312 = vrot.slane %v6304, %v6311
      %v6314 = vunpack.c.l.s4 1983009808
      %v6315 = vunpack.c.0.s8 %v6314
      %v6316 = vlaneseq
      %v6317 = vshrl.u32 %v6316, 7
      %v6318 = vsub.s32 %v6315, %v6317
      %v6319 = vrot.slane %v6305, %v6318
      %v6320 = vcombine.low %v6312, %v6319
      %v6321 = vcombine.low %v5891, %v5893
      %v6323 = vunpack.c.l.s4 1983009808
      %v6324 = vunpack.c.0.s8 %v6323
      %v6325 = vlaneseq
      %v6326 = vshrl.u32 %v6325, 7
      %v6327 = vsub.s32 %v6324, %v6326
      %v6328 = vrot.slane %v6321, %v6327
      %v6330 = vunpack.c.l.s4 1983009808
      %v6331 = vunpack.c.0.s8 %v6330
      %v6332 = vlaneseq
      %v6333 = vshrl.u32 %v6332, 7
      %v6334 = vsub.s32 %v6331, %v6333
      %v6335 = vrot.slane %v5901, %v6334
      %v6336 = vcombine.low %v6328, %v6335
      %v6337 = vcombine.low %v5909, %v5908
      %v6338 = vcombine.low %v5910, %v5918
      %v6340 = vunpack.c.l.s4 1983009808
      %v6341 = vunpack.c.0.s8 %v6340
      %v6342 = vlaneseq
      %v6343 = vshrl.u32 %v6342, 7
      %v6344 = vsub.s32 %v6341, %v6343
      %v6345 = vrot.slane %v6337, %v6344
      %v6347 = vunpack.c.l.s4 1983009808
      %v6348 = vunpack.c.0.s8 %v6347
      %v6349 = vlaneseq
      %v6350 = vshrl.u32 %v6349, 7
      %v6351 = vsub.s32 %v6348, %v6350
      %v6352 = vrot.slane %v6338, %v6351
      %v6353 = vcombine.low %v6345, %v6352
      %v6354 = vcombine.low %v5926, %v5925
      %v6356 = vunpack.c.l.s4 1983009808
      %v6357 = vunpack.c.0.s8 %v6356
      %v6358 = vlaneseq
      %v6359 = vshrl.u32 %v6358, 7
      %v6360 = vsub.s32 %v6357, %v6359
      %v6361 = vrot.slane %v6354, %v6360
      %v6363 = vunpack.c.l.s4 1983009808
      %v6364 = vunpack.c.0.s8 %v6363
      %v6365 = vlaneseq
      %v6366 = vshrl.u32 %v6365, 7
      %v6367 = vsub.s32 %v6364, %v6366
      %v6368 = vrot.slane %v5927, %v6367
      %v6369 = vcombine.low %v6361, %v6368
      %v6370 = vcombine.low %v5935, %v5943
      %v6371 = vcombine.low %v5942, %v5944
      %v6373 = vunpack.c.l.s4 1983009808
      %v6374 = vunpack.c.0.s8 %v6373
      %v6375 = vlaneseq
      %v6376 = vshrl.u32 %v6375, 7
      %v6377 = vsub.s32 %v6374, %v6376
      %v6378 = vrot.slane %v6370, %v6377
      %v6380 = vunpack.c.l.s4 1983009808
      %v6381 = vunpack.c.0.s8 %v6380
      %v6382 = vlaneseq
      %v6383 = vshrl.u32 %v6382, 7
      %v6384 = vsub.s32 %v6381, %v6383
      %v6385 = vrot.slane %v6371, %v6384
      %v6386 = vcombine.low %v6378, %v6385
      %v6387 = vcombine.low %v5952, %v5960
      %v6389 = vunpack.c.l.s4 1983009808
      %v6390 = vunpack.c.0.s8 %v6389
      %v6391 = vlaneseq
      %v6392 = vshrl.u32 %v6391, 7
      %v6393 = vsub.s32 %v6390, %v6392
      %v6394 = vrot.slane %v6387, %v6393
      %v6396 = vunpack.c.l.s4 1983009808
      %v6397 = vunpack.c.0.s8 %v6396
      %v6398 = vlaneseq
      %v6399 = vshrl.u32 %v6398, 7
      %v6400 = vsub.s32 %v6397, %v6399
      %v6401 = vrot.slane %v5959, %v6400
      %v6402 = vcombine.low %v6394, %v6401
      %v6403 = vcombine.low %v5961, %v5969
      %v6404 = vcombine.low %v5977, %v5976
      %v6406 = vunpack.c.l.s4 1983009808
      %v6407 = vunpack.c.0.s8 %v6406
      %v6408 = vlaneseq
      %v6409 = vshrl.u32 %v6408, 7
      %v6410 = vsub.s32 %v6407, %v6409
      %v6411 = vrot.slane %v6403, %v6410
      %v6413 = vunpack.c.l.s4 1983009808
      %v6414 = vunpack.c.0.s8 %v6413
      %v6415 = vlaneseq
      %v6416 = vshrl.u32 %v6415, 7
      %v6417 = vsub.s32 %v6414, %v6416
      %v6418 = vrot.slane %v6404, %v6417
      %v6419 = vcombine.low %v6411, %v6418
      %v6420 = vcombine.low %v5978, %v5986
      %v6422 = vunpack.c.l.s4 1983009808
      %v6423 = vunpack.c.0.s8 %v6422
      %v6424 = vlaneseq
      %v6425 = vshrl.u32 %v6424, 7
      %v6426 = vsub.s32 %v6423, %v6425
      %v6427 = vrot.slane %v6420, %v6426
      %v6429 = vunpack.c.l.s4 1983009808
      %v6430 = vunpack.c.0.s8 %v6429
      %v6431 = vlaneseq
      %v6432 = vshrl.u32 %v6431, 7
      %v6433 = vsub.s32 %v6430, %v6432
      %v6434 = vrot.slane %v5994, %v6433
      %v6435 = vcombine.low %v6427, %v6434
      %v6436 = vcombine.low %v5993, %v5995
      %v6437 = vcombine.low %v6003, %v6011
      %v6439 = vunpack.c.l.s4 1983009808
      %v6440 = vunpack.c.0.s8 %v6439
      %v6441 = vlaneseq
      %v6442 = vshrl.u32 %v6441, 7
      %v6443 = vsub.s32 %v6440, %v6442
      %v6444 = vrot.slane %v6436, %v6443
      %v6446 = vunpack.c.l.s4 1983009808
      %v6447 = vunpack.c.0.s8 %v6446
      %v6448 = vlaneseq
      %v6449 = vshrl.u32 %v6448, 7
      %v6450 = vsub.s32 %v6447, %v6449
      %v6451 = vrot.slane %v6437, %v6450
      %v6452 = vcombine.low %v6444, %v6451
      %v6453 = vcombine.low %v6010, %v6012
      %v6455 = vunpack.c.l.s4 1983009808
      %v6456 = vunpack.c.0.s8 %v6455
      %v6457 = vlaneseq
      %v6458 = vshrl.u32 %v6457, 7
      %v6459 = vsub.s32 %v6456, %v6458
      %v6460 = vrot.slane %v6453, %v6459
      %v6462 = vunpack.c.l.s4 1983009808
      %v6463 = vunpack.c.0.s8 %v6462
      %v6464 = vlaneseq
      %v6465 = vshrl.u32 %v6464, 7
      %v6466 = vsub.s32 %v6463, %v6465
      %v6467 = vrot.slane %v6020, %v6466
      %v6468 = vcombine.low %v6460, %v6467
      %v6469 = vcombine.low %v6028, %v6027
      %v6470 = vcombine.low %v6029, %v6037
      %v6472 = vunpack.c.l.s4 1983009808
      %v6473 = vunpack.c.0.s8 %v6472
      %v6474 = vlaneseq
      %v6475 = vshrl.u32 %v6474, 7
      %v6476 = vsub.s32 %v6473, %v6475
      %v6477 = vrot.slane %v6469, %v6476
      %v6479 = vunpack.c.l.s4 1983009808
      %v6480 = vunpack.c.0.s8 %v6479
      %v6481 = vlaneseq
      %v6482 = vshrl.u32 %v6481, 7
      %v6483 = vsub.s32 %v6480, %v6482
      %v6484 = vrot.slane %v6470, %v6483
      %v6485 = vcombine.low %v6477, %v6484
      %v6486 = vcombine.low %v6045, %v6044
      %v6488 = vunpack.c.l.s4 1983009808
      %v6489 = vunpack.c.0.s8 %v6488
      %v6490 = vlaneseq
      %v6491 = vshrl.u32 %v6490, 7
      %v6492 = vsub.s32 %v6489, %v6491
      %v6493 = vrot.slane %v6486, %v6492
      %v6495 = vunpack.c.l.s4 1983009808
      %v6496 = vunpack.c.0.s8 %v6495
      %v6497 = vlaneseq
      %v6498 = vshrl.u32 %v6497, 7
      %v6499 = vsub.s32 %v6496, %v6498
      %v6500 = vrot.slane %v6046, %v6499
      %v6501 = vcombine.low %v6493, %v6500
      %v6502 = vcombine.low %v6054, %v6062
      %v6503 = vcombine.low %v6061, %v6063
      %v6505 = vunpack.c.l.s4 1983009808
      %v6506 = vunpack.c.0.s8 %v6505
      %v6507 = vlaneseq
      %v6508 = vshrl.u32 %v6507, 7
      %v6509 = vsub.s32 %v6506, %v6508
      %v6510 = vrot.slane %v6502, %v6509
      %v6512 = vunpack.c.l.s4 1983009808
      %v6513 = vunpack.c.0.s8 %v6512
      %v6514 = vlaneseq
      %v6515 = vshrl.u32 %v6514, 7
      %v6516 = vsub.s32 %v6513, %v6515
      %v6517 = vrot.slane %v6503, %v6516
      %v6518 = vcombine.low %v6510, %v6517
      %v6519 = vcombine.low %v6071, %v6079
      %v6521 = vunpack.c.l.s4 1983009808
      %v6522 = vunpack.c.0.s8 %v6521
      %v6523 = vlaneseq
      %v6524 = vshrl.u32 %v6523, 7
      %v6525 = vsub.s32 %v6522, %v6524
      %v6526 = vrot.slane %v6519, %v6525
      %v6528 = vunpack.c.l.s4 1983009808
      %v6529 = vunpack.c.0.s8 %v6528
      %v6530 = vlaneseq
      %v6531 = vshrl.u32 %v6530, 7
      %v6532 = vsub.s32 %v6529, %v6531
      %v6533 = vrot.slane %v6078, %v6532
      %v6534 = vcombine.low %v6526, %v6533
      %v6535 = vcombine.low %v6080, %v6088
      %v6536 = vcombine.low %v6096, %v6095
      %v6538 = vunpack.c.l.s4 1983009808
      %v6539 = vunpack.c.0.s8 %v6538
      %v6540 = vlaneseq
      %v6541 = vshrl.u32 %v6540, 7
      %v6542 = vsub.s32 %v6539, %v6541
      %v6543 = vrot.slane %v6535, %v6542
      %v6545 = vunpack.c.l.s4 1983009808
      %v6546 = vunpack.c.0.s8 %v6545
      %v6547 = vlaneseq
      %v6548 = vshrl.u32 %v6547, 7
      %v6549 = vsub.s32 %v6546, %v6548
      %v6550 = vrot.slane %v6536, %v6549
      %v6551 = vcombine.low %v6543, %v6550
      %v6552 = vcombine.low %v6097, %v6104
      %v6554 = vunpack.c.l.s4 1983009808
      %v6555 = vunpack.c.0.s8 %v6554
      %v6556 = vlaneseq
      %v6557 = vshrl.u32 %v6556, 7
      %v6558 = vsub.s32 %v6555, %v6557
      %v6559 = vrot.slane %v6552, %v6558
      %v6561 = vunpack.c.l.s4 1983009808
      %v6562 = vunpack.c.0.s8 %v6561
      %v6563 = vlaneseq
      %v6564 = vshrl.u32 %v6563, 7
      %v6565 = vsub.s32 %v6562, %v6564
      %v6566 = vrot.slane %v6105, %v6565
      %v6567 = vcombine.low %v6559, %v6566
      %6596 = vst [vmem:[%s199] sm:$0xff] %v6122
      %6597 = vst [vmem:[%s199 + $0x8] sm:$0x3f] %v6138
      %6598 = vst [vmem:[%s199 + $0x10] sm:$0xff] %v6155
      %6599 = vst [vmem:[%s199 + $0x18] sm:$0x3f] %v6171
      %6600 = vst [vmem:[%s199 + $0x20] sm:$0xff] %v6188
      %6601 = vst [vmem:[%s199 + $0x28] sm:$0x3f] %v6204
      %6602 = vst [vmem:[%s199 + $0x30] sm:$0xff] %v6221
      %6603 = vst [vmem:[%s199 + $0x38] sm:$0x3f] %v6237
      %6604 = vst [vmem:[%s199 + $0x40] sm:$0xff] %v6254
      %6605 = vst [vmem:[%s199 + $0x48] sm:$0x3f] %v6270
      %6606 = vst [vmem:[%s199 + $0x50] sm:$0xff] %v6287
      %6607 = vst [vmem:[%s199 + $0x58] sm:$0x3f] %v6303
      %6608 = vst [vmem:[%s199 + $0x60] sm:$0xff] %v6320
      %6609 = vst [vmem:[%s199 + $0x68] sm:$0x3f] %v6336
      %6610 = vst [vmem:[%s199 + $0x70] sm:$0xff] %v6353
      %6611 = vst [vmem:[%s199 + $0x78] sm:$0x3f] %v6369
      %6612 = vst [vmem:[%s199 + $0x80] sm:$0xff] %v6386
      %6613 = vst [vmem:[%s199 + $0x88] sm:$0x3f] %v6402
      %6614 = vst [vmem:[%s199 + $0x90] sm:$0xff] %v6419
      %6615 = vst [vmem:[%s199 + $0x98] sm:$0x3f] %v6435
      %6616 = vst [vmem:[%s199 + $0xa0] sm:$0xff] %v6452
      %6617 = vst [vmem:[%s199 + $0xa8] sm:$0x3f] %v6468
      %6618 = vst [vmem:[%s199 + $0xb0] sm:$0xff] %v6485
      %6619 = vst [vmem:[%s199 + $0xb8] sm:$0x3f] %v6501
      %6620 = vst [vmem:[%s199 + $0xc0] sm:$0xff] %v6518
      %6621 = vst [vmem:[%s199 + $0xc8] sm:$0x3f] %v6534
      %6622 = vst [vmem:[%s199 + $0xd0] sm:$0xff] %v6551
      %6623 = vst [vmem:[%s199 + $0xd8] sm:$0x3f] %v6567
      %s6624 = smul.u32 14, %s19
      %p6625 = scmp.lt.s32.totalorder %s18, 1
      %s6626 = scalar_select %p6625, %s18, 1
      %p6627 = scmp.lt.s32.totalorder %s6624, 13
      %s6628 = scalar_select %p6627, %s6624, 13
      %p6629 = scmp.lt.s32.totalorder %s20, 0
      %s6630 = scalar_select %p6629, %s20, 0
      %s6631 = smul.addr %s6628, 2
      %s6632 = sadd.s32 %s6630, %s6631
      %s6633 = smul.addr %s6626, 28
      %s6634 = sadd.s32 %s6632, %s6633
      %s6635 = smul.addr %s6634, 8
      %s6636 = scalar_lea.vmem %s2, %s6635
      // Predicated region
      $region29: #{tpu_custom_call.1} parent=27 // pred_check
        %p6637 = pneg %p106
      $region30: #{tpu_custom_call.1} parent=27 // pred_check_branch
        %6639 = sbr.rel (%p6637) target = $region32
      $region31: #{tpu_custom_call.1} parent=27 // pred_region
        %s6640 = smul.u32 14, %s19
      $region32: #{tpu_custom_call.1} parent=27 // pred_fallthru
        _
    $region28: #{tpu_custom_call.1} parent=5 // pred_fallthru
      _
    %p6641 = scmp.le.s32.totalorder 2, %s8
    // Predicated region
    $region33: #{tpu_custom_call.1} parent=5 // pred_check
      %p6642 = pneg %p6641
    $region34: #{tpu_custom_call.1} parent=5 // pred_check_branch
      %6644 = sbr.rel (%p6642) target = $region36
    $region35: #{tpu_custom_call.1} parent=5 // pred_region
      %s6645 = ssub.s32 %s8, 2
      // Predicated region
      $region37: #{tpu_custom_call.1} parent=35 // pred_check
        %p6646 = pneg %p112
      $region38: #{tpu_custom_call.1} parent=35 // pred_check_branch
        %6648 = sbr.rel (%p6646) target = $region40
      $region39: #{tpu_custom_call.1} parent=35 // pred_region
        %s6649 = smul.u32 14, %s22
        %p6650 = scmp.lt.s32.totalorder %s21, 1
        %s6651 = scalar_select %p6650, %s21, 1
        %p6652 = scmp.lt.s32.totalorder %s6649, 13
        %s6653 = scalar_select %p6652, %s6649, 13
        %p6654 = scmp.lt.s32.totalorder %s23, 0
        %s6655 = scalar_select %p6654, %s23, 0
        %s6656 = smul.addr %s6653, 2
        %s6657 = sadd.s32 %s6655, %s6656
        %s6658 = smul.addr %s6651, 28
        %s6659 = sadd.s32 %s6657, %s6658
        %s6660 = smul.addr %s6659, 8
        %s6661 = scalar_lea.vmem %s2, %s6660
      $region40: #{tpu_custom_call.1} parent=35 // pred_fallthru
        _
    $region36: #{tpu_custom_call.1} parent=5 // pred_fallthru
      _
  $region6: #{tpu_custom_call.1} parent=0 // loop_footer
    %s12 = sadd.s32 1, %s8
  $region7: #{tpu_custom_call.1} parent=0 // loop_footer_branch
    %7 = sbr.rel target = $region3
  $region8: #{tpu_custom_call.1} parent=0 // loop_exit
    _

</llo_original>
